<compile_context>
chip_gen: v5e
topology: v5e:2x2
jax: 0.10.0
libtpu: 0.0.40
codegen_flags: <defaults>
</compile_context>

<pallas_src>
import functools

import jax
import jax.numpy as jnp
import numpy as np
from jax.experimental import pallas as pl
from jax.experimental.pallas import tpu as pltpu


def _rc_stml_v2_packed_kernel(probs_ref, feats_ref, out_ref, *,
                              n: int, b_blk: int, topk: int, delta: float):
    """One grid step: b_blk independent instances packed as P = b_blk * n rows."""
    f32 = jnp.float32
    probs = probs_ref[...]                      # (P, C) teacher logits (unpadded C)
    feats = feats_ref[...]                      # (P, D) student features (unpadded D)
    p_rows, c = probs.shape                     # P = b_blk * n

    # ---- pseudo-label argmax over classes (first occurrence on ties) ----
    row_max = jnp.max(probs, axis=1, keepdims=True)                       # (P,1)
    col_c = jax.lax.broadcasted_iota(jnp.int32, (p_rows, c), 1)
    label = jnp.min(jnp.where(probs == row_max, col_c, c),
                    axis=1, keepdims=True)                                # (P,1) int32
    label_f = label.astype(f32)

    # ---- structural masks for the packed block-diagonal layout ----
    row_i = jax.lax.broadcasted_iota(jnp.int32, (p_rows, p_rows), 0)
    col_i = jax.lax.broadcasted_iota(jnp.int32, (p_rows, p_rows), 1)
    eye_b = row_i == col_i
    eye = eye_b.astype(f32)
    # instance index per row, built with compares only (no integer div / reshape)
    inst_r = jnp.zeros((p_rows, p_rows), jnp.int32)
    for g in range(1, b_blk):
        inst_r = inst_r + (row_i >= g * n).astype(jnp.int32)
    base_r = inst_r * n                                                   # first column of own block
    same_inst = jnp.logical_and(col_i >= base_r, col_i < base_r + n)      # block-diagonal mask

    # ---- W_P values needed by the scatter: wp_t[i] = [label[i] == label[base(i)+t]] ----
    # labels as a (1,P) row via diag extraction (avoids a thin transpose)
    label_row = jnp.sum(label_f * eye, axis=0, keepdims=True)             # (1,P)
    label_eq = (label_f == label_row).astype(f32)                         # (P,P)
    wp_cols = []
    for t in range(topk):
        head_hit = col_i == base_r + t                                    # one hit per row
        wp_cols.append(jnp.max(jnp.where(head_hit, label_eq, 0.0),
                               axis=1, keepdims=True))                    # (P,1)

    # ---- pairwise squared distances from one packed Gram matmul ----
    dn = (((1,), (1,)), ((), ()))                                         # A @ B.T, no transpose
    gram = jax.lax.dot_general(feats, feats, dn, preferred_element_type=f32)   # (P,P)
    # both norms from the Gram diagonal -> d2 is bitwise symmetric, so w_nn.T below is
    # exactly the reference's W_NN.T (no near-tie divergence between row/column sides)
    sq_row = jnp.sum(gram * eye, axis=0, keepdims=True)                   # (1,P)
    sq_col = jnp.sum(gram * eye, axis=1, keepdims=True)                   # (P,1)
    d2 = jnp.maximum(sq_col + sq_row - 2.0 * gram, 0.0)                   # (P,P)
    dist = jnp.sqrt(d2)       # EUP; only feeds the push term, off the top-k chain

    # ---- top-k-largest per row, restricted to the own n x n block (sqrt monotone:
    #      rank on d2; cross-instance columns masked below any real distance) ----
    masked = jnp.where(same_inst, d2, -1.0)
    w_nn = jnp.zeros((p_rows, p_rows), f32)
    for t in range(topk):
        rmax = jnp.max(masked, axis=1, keepdims=True)                     # (P,1)
        rarg = jnp.min(jnp.where(masked == rmax, col_i, p_rows),
                       axis=1, keepdims=True)                             # first occurrence
        rhit = col_i == rarg                                              # one hit per row
        w_nn = w_nn + jnp.where(rhit, wp_cols[t], 0.0)                    # value = W_P[i, t]
        masked = jnp.where(rhit, -1.0, masked)

    # single transpose replaces the old column-side selection pass
    w_nn_t = w_nn.T
    # ((W_NN + W_NN.T)/2 == 0.5)  <=>  sum == 1.0 exactly (entries are 0/1)
    w = ((w_nn + w_nn_t) == 1.0).astype(f32)

    offdiag = jnp.where(jnp.logical_and(same_inst, jnp.logical_not(eye_b)), 1.0, 0.0)
    pos_w = w * offdiag
    neg_w = (1.0 - w) * offdiag

    relu_m = jnp.maximum(delta - dist, 0.0)
    # relu(dist)^2 == d2 (dist >= 0); zero off the block diagonal via pos_w/neg_w
    l_mat = d2 * pos_w + relu_m * relu_m * neg_w

    # ---- per-instance reduction: loss of instance g lands in lane g ----
    row_sum = jnp.sum(l_mat, axis=1, keepdims=True)                       # (P,1)
    sel = (col_i == inst_r).astype(f32)                                   # sel[i,g]=1 iff g == i//n
    per_inst = jnp.sum(row_sum * sel, axis=0, keepdims=True)              # (1,P), lanes [0, b_blk)
    loss_row = per_inst * (1.0 / float(n * (n - 1)))
    out_ref[...] = jnp.broadcast_to(loss_row, out_ref.shape)              # lane-dense (8,P) slab


def rc_stml_v2_batched(s_emb_b, t_emb_b, *, topk: int = 4, delta: float = 1.0,
                       block_instances=None):
    """B independent RC_STML.forward_v2 losses through one pallas_call.

    s_emb_b: (B, N, D) student features; t_emb_b: (B, N, C) teacher logits.
    Returns (B,) float32 losses.
    """
    b, n, d = s_emb_b.shape
    bt, nt, c = t_emb_b.shape
    assert bt == b and nt == n and n >= 2 and topk <= n

    if block_instances is None:
        block_instances = max(1, 128 // n)      # pack up to 128 rows per grid step
    b_blk = int(block_instances)
    p = b_blk * n
    g = -(-b // b_blk)                          # cdiv: >= 2 steps for B >= 2*b_blk (v7x megacore)
    b_pad = g * b_blk

    feats = s_emb_b.astype(jnp.float32)
    probs = t_emb_b.astype(jnp.float32)
    if b_pad > b:                               # pad only the batch axis; padded losses discarded
        feats = jnp.pad(feats, ((0, b_pad - b), (0, 0), (0, 0)))
        probs = jnp.pad(probs, ((0, b_pad - b), (0, 0), (0, 0)))
    feats = feats.reshape(g, p, d)              # contiguous reshape, no copy
    probs = probs.reshape(g, p, c)

    kernel = functools.partial(_rc_stml_v2_packed_kernel, n=n, b_blk=b_blk,
                               topk=int(topk), delta=float(delta))
    out = pl.pallas_call(
        kernel,
        out_shape=jax.ShapeDtypeStruct((g, 8, p), jnp.float32),
        grid=(g,),
        in_specs=[
            # block dims equal the full array dims -> no lane padding needed for C / D
            pl.BlockSpec((None, p, c), lambda i: (i, 0, 0)),   # probs (t_emb)
            pl.BlockSpec((None, p, d), lambda i: (i, 0, 0)),   # feats (s_emb)
        ],
        out_specs=pl.BlockSpec((None, 8, p), lambda i: (i, 0, 0)),
        compiler_params=pltpu.CompilerParams(
            dimension_semantics=("parallel",),
        ),
    )(probs, feats)
    return out[:, 0, :b_blk].reshape(-1)[:b]


def rc_stml_forward(s_emb, t_emb, idx=None, *, v2: bool = True,
                    topk: int = 4, delta: float = 1.0):
    """Pallas implementation of RC_STML.forward at the v2=True call site.

    s_emb: (N, D) student features; t_emb: (N, C) teacher logits; idx is unused on
    the v2 path (matching the PyTorch code). Returns a scalar float32 loss.
    """
    del idx  # unused on the v2 path, kept for signature parity
    if not v2:
        # TODO(synk): v1 path (normalize + exp(-T_dist^2/sigma) + reciprocal-neighbour
        #             W_C refinement) not implemented — unreachable at the v2=True call site.
        raise NotImplementedError("RC_STML v2=False path not implemented in Pallas")
    return rc_stml_v2_batched(s_emb[None], t_emb[None], topk=topk, delta=delta)[0]


def rc_stml_v2_ref(s_emb, t_emb, *, topk: int = 4, delta: float = 1.0):
    """Pure-JAX reference mirroring the PyTorch forward_v2 semantics."""
    probs = t_emb.astype(jnp.float32)
    feats = s_emb.astype(jnp.float32)
    n = probs.shape[0]
    pseudo = jnp.argmax(probs, axis=1)
    one_hot = jax.nn.one_hot(pseudo, probs.shape[1], dtype=jnp.float32)
    w_p = one_hot @ one_hot.T
    sq = jnp.sum(feats * feats, axis=1)
    dist = jnp.sqrt(jnp.maximum(sq[:, None] + sq[None, :] - 2.0 * (feats @ feats.T), 0.0))
    topk_idx = jax.lax.top_k(dist, topk)[1]                       # (N, topk), largest
    rows = jnp.arange(n)[:, None]
    w_nn = jnp.zeros_like(dist).at[rows, topk_idx].set(w_p[:, :topk])
    w = ((w_nn + w_nn.T) / 2.0 == 0.5).astype(jnp.float32)
    eye = jnp.eye(n, dtype=jnp.float32)
    pos_w = w * (1.0 - eye)
    neg_w = (1.0 - w) * (1.0 - eye)
    pull = jnp.maximum(dist, 0.0) ** 2 * pos_w
    push = jnp.maximum(delta - dist, 0.0) ** 2 * neg_w
    return (pull.sum() + push.sum()) / (n * (n - 1))


if __name__ == "__main__":
    # Shapes implied by the forward: N = view * batch = 2 * 8 = 16 samples,
    # D = 32 feature dim (s_emb), C = 64 "class-logit" dim (t_emb).
    N, D, C = 16, 32, 64
    key = jax.random.PRNGKey(0)
    k1, k2, k3, k4 = jax.random.split(key, 4)
    s_g = jax.random.normal(k1, (N, D), dtype=jnp.float32)
    t_g = jax.random.normal(k2, (N, C), dtype=jnp.float32)
    idx = jnp.tile(jnp.arange(N // 2, dtype=jnp.int32), 2)  # unused on v2 path

    loss = jax.block_until_ready(rc_stml_forward(s_g, t_g, idx, topk=4, delta=1.0))
    ref = jax.block_until_ready(rc_stml_v2_ref(s_g, t_g, topk=4, delta=1.0))
    np.testing.assert_allclose(np.asarray(loss), np.asarray(ref), rtol=2e-4, atol=2e-5)

    # Batched path: 16 instances -> 8 packed per grid step -> 2 grid steps
    # (keeps both TensorCores busy on v7x, amortizes step overhead everywhere).
    B = 16
    s_b = jax.random.normal(k3, (B, N, D), dtype=jnp.float32)
    t_b = jax.random.normal(k4, (B, N, C), dtype=jnp.float32)
    losses = jax.block_until_ready(rc_stml_v2_batched(s_b, t_b, topk=4, delta=1.0))
    refs = jax.block_until_ready(
        jax.vmap(lambda s, t: rc_stml_v2_ref(s, t, topk=4, delta=1.0))(s_b, t_b))
    np.testing.assert_allclose(np.asarray(losses), np.asarray(refs), rtol=2e-4, atol=2e-5)

    # Ragged batch exercising the batch-padding path (same compiled shapes as B=16).
    B2 = 12
    losses2 = jax.block_until_ready(
        rc_stml_v2_batched(s_b[:B2], t_b[:B2], topk=4, delta=1.0))
    np.testing.assert_allclose(np.asarray(losses2), np.asarray(refs[:B2]),
                               rtol=2e-4, atol=2e-5)

    print("KERNEL_OK")
</pallas_src>

<mosaic_0001>
module attributes {stable_mosaic.version = 11 : i64} {
  func.func @_rc_stml_v2_packed_kernel(%arg0: i32, %arg1: memref<1x128x64xf32, #tpu.memory_space<vmem>>, %arg2: memref<1x128x32xf32, #tpu.memory_space<vmem>>, %arg3: memref<1x8x128xf32, #tpu.memory_space<vmem>>) attributes {dimension_semantics = [#tpu.dimension_semantics<parallel>], iteration_bounds = array<i64: 1>, scalar_prefetch = 0 : i64, scratch_operands = 0 : i64, tpu.core_type = #tpu.core_type<tc>, window_params = [{transform_indices = @transform_0, window_bounds = array<i64: 1, 128, 64>}, {transform_indices = @transform_1, window_bounds = array<i64: 1, 128, 32>}, {transform_indices = @transform_2, window_bounds = array<i64: 1, 8, 128>}]} {
    %c0 = arith.constant 0 : index
    %c0_0 = arith.constant 0 : index
    %c0_1 = arith.constant 0 : index
    %0 = vector.load %arg1[%c0, %c0_0, %c0_1] : memref<1x128x64xf32, #tpu.memory_space<vmem>>, vector<1x128x64xf32>
    %1 = vector.shape_cast %0 : vector<1x128x64xf32> to vector<128x64xf32>
    %c0_2 = arith.constant 0 : index
    %c0_3 = arith.constant 0 : index
    %c0_4 = arith.constant 0 : index
    %2 = vector.load %arg2[%c0_2, %c0_3, %c0_4] : memref<1x128x32xf32, #tpu.memory_space<vmem>>, vector<1x128x32xf32>
    %3 = vector.shape_cast %2 : vector<1x128x32xf32> to vector<128x32xf32>
    %cst = arith.constant dense<0xFF800000> : vector<128xf32>
    %4 = vector.multi_reduction <maximumf>, %1, %cst [1] : vector<128x64xf32> to vector<128xf32>
    %5 = vector.shape_cast %4 : vector<128xf32> to vector<128x1xf32>
    %6 = tpu.iota {dimensions = array<i32: 1>} : vector<128x64xi32>
    %7 = vector.broadcast %5 : vector<128x1xf32> to vector<128x64xf32>
    %8 = arith.cmpf oeq, %1, %7 : vector<128x64xf32>
    %c64_i32 = arith.constant 64 : i32
    %9 = vector.broadcast %c64_i32 : i32 to vector<128x64xi32>
    %10 = arith.select %8, %6, %9 : vector<128x64xi1>, vector<128x64xi32>
    %cst_5 = arith.constant dense<2147483647> : vector<128xi32>
    %11 = vector.multi_reduction <minsi>, %10, %cst_5 [1] : vector<128x64xi32> to vector<128xi32>
    %12 = vector.shape_cast %11 : vector<128xi32> to vector<128x1xi32>
    %13 = arith.sitofp %12 : vector<128x1xi32> to vector<128x1xf32>
    %14 = tpu.iota {dimensions = array<i32: 0>} : vector<128x128xi32>
    %15 = tpu.iota {dimensions = array<i32: 1>} : vector<128x128xi32>
    %16 = arith.cmpi eq, %14, %15 : vector<128x128xi32>
    %17 = arith.extui %16 : vector<128x128xi1> to vector<128x128xi32>
    %18 = arith.sitofp %17 : vector<128x128xi32> to vector<128x128xf32>
    %c0_i32 = arith.constant 0 : i32
    %19 = vector.broadcast %c0_i32 : i32 to vector<128x128xi32>
    %c16_i32 = arith.constant 16 : i32
    %20 = vector.broadcast %c16_i32 : i32 to vector<128x128xi32>
    %21 = arith.cmpi sge, %14, %20 : vector<128x128xi32>
    %22 = arith.extui %21 : vector<128x128xi1> to vector<128x128xi32>
    %23 = arith.addi %19, %22 : vector<128x128xi32>
    %c32_i32 = arith.constant 32 : i32
    %24 = vector.broadcast %c32_i32 : i32 to vector<128x128xi32>
    %25 = arith.cmpi sge, %14, %24 : vector<128x128xi32>
    %26 = arith.extui %25 : vector<128x128xi1> to vector<128x128xi32>
    %27 = arith.addi %23, %26 : vector<128x128xi32>
    %c48_i32 = arith.constant 48 : i32
    %28 = vector.broadcast %c48_i32 : i32 to vector<128x128xi32>
    %29 = arith.cmpi sge, %14, %28 : vector<128x128xi32>
    %30 = arith.extui %29 : vector<128x128xi1> to vector<128x128xi32>
    %31 = arith.addi %27, %30 : vector<128x128xi32>
    %c64_i32_6 = arith.constant 64 : i32
    %32 = vector.broadcast %c64_i32_6 : i32 to vector<128x128xi32>
    %33 = arith.cmpi sge, %14, %32 : vector<128x128xi32>
    %34 = arith.extui %33 : vector<128x128xi1> to vector<128x128xi32>
    %35 = arith.addi %31, %34 : vector<128x128xi32>
    %c80_i32 = arith.constant 80 : i32
    %36 = vector.broadcast %c80_i32 : i32 to vector<128x128xi32>
    %37 = arith.cmpi sge, %14, %36 : vector<128x128xi32>
    %38 = arith.extui %37 : vector<128x128xi1> to vector<128x128xi32>
    %39 = arith.addi %35, %38 : vector<128x128xi32>
    %c96_i32 = arith.constant 96 : i32
    %40 = vector.broadcast %c96_i32 : i32 to vector<128x128xi32>
    %41 = arith.cmpi sge, %14, %40 : vector<128x128xi32>
    %42 = arith.extui %41 : vector<128x128xi1> to vector<128x128xi32>
    %43 = arith.addi %39, %42 : vector<128x128xi32>
    %c112_i32 = arith.constant 112 : i32
    %44 = vector.broadcast %c112_i32 : i32 to vector<128x128xi32>
    %45 = arith.cmpi sge, %14, %44 : vector<128x128xi32>
    %46 = arith.extui %45 : vector<128x128xi1> to vector<128x128xi32>
    %47 = arith.addi %43, %46 : vector<128x128xi32>
    %c16_i32_7 = arith.constant 16 : i32
    %48 = vector.broadcast %c16_i32_7 : i32 to vector<128x128xi32>
    %49 = arith.muli %47, %48 : vector<128x128xi32>
    %50 = arith.cmpi sge, %15, %49 : vector<128x128xi32>
    %c16_i32_8 = arith.constant 16 : i32
    %51 = vector.broadcast %c16_i32_8 : i32 to vector<128x128xi32>
    %52 = arith.addi %49, %51 : vector<128x128xi32>
    %53 = arith.cmpi slt, %15, %52 : vector<128x128xi32>
    %54 = arith.andi %50, %53 : vector<128x128xi1>
    %55 = vector.broadcast %13 : vector<128x1xf32> to vector<128x128xf32>
    %56 = arith.mulf %55, %18 : vector<128x128xf32>
    %cst_9 = arith.constant dense<0.000000e+00> : vector<128xf32>
    %57 = vector.multi_reduction <add>, %56, %cst_9 [0] : vector<128x128xf32> to vector<128xf32>
    %58 = vector.shape_cast %57 : vector<128xf32> to vector<1x128xf32>
    %59 = vector.broadcast %13 : vector<128x1xf32> to vector<128x128xf32>
    %60 = vector.broadcast %58 : vector<1x128xf32> to vector<128x128xf32>
    %61 = arith.cmpf oeq, %59, %60 : vector<128x128xf32>
    %62 = arith.extui %61 : vector<128x128xi1> to vector<128x128xi32>
    %63 = arith.sitofp %62 : vector<128x128xi32> to vector<128x128xf32>
    %c0_i32_10 = arith.constant 0 : i32
    %64 = vector.broadcast %c0_i32_10 : i32 to vector<128x128xi32>
    %65 = arith.addi %49, %64 : vector<128x128xi32>
    %66 = arith.cmpi eq, %15, %65 : vector<128x128xi32>
    %cst_11 = arith.constant 0.000000e+00 : f32
    %67 = vector.broadcast %cst_11 : f32 to vector<128x128xf32>
    %68 = arith.select %66, %63, %67 : vector<128x128xi1>, vector<128x128xf32>
    %cst_12 = arith.constant dense<0xFF800000> : vector<128xf32>
    %69 = vector.multi_reduction <maximumf>, %68, %cst_12 [1] : vector<128x128xf32> to vector<128xf32>
    %70 = vector.shape_cast %69 : vector<128xf32> to vector<128x1xf32>
    %c1_i32 = arith.constant 1 : i32
    %71 = vector.broadcast %c1_i32 : i32 to vector<128x128xi32>
    %72 = arith.addi %49, %71 : vector<128x128xi32>
    %73 = arith.cmpi eq, %15, %72 : vector<128x128xi32>
    %cst_13 = arith.constant 0.000000e+00 : f32
    %74 = vector.broadcast %cst_13 : f32 to vector<128x128xf32>
    %75 = arith.select %73, %63, %74 : vector<128x128xi1>, vector<128x128xf32>
    %cst_14 = arith.constant dense<0xFF800000> : vector<128xf32>
    %76 = vector.multi_reduction <maximumf>, %75, %cst_14 [1] : vector<128x128xf32> to vector<128xf32>
    %77 = vector.shape_cast %76 : vector<128xf32> to vector<128x1xf32>
    %c2_i32 = arith.constant 2 : i32
    %78 = vector.broadcast %c2_i32 : i32 to vector<128x128xi32>
    %79 = arith.addi %49, %78 : vector<128x128xi32>
    %80 = arith.cmpi eq, %15, %79 : vector<128x128xi32>
    %cst_15 = arith.constant 0.000000e+00 : f32
    %81 = vector.broadcast %cst_15 : f32 to vector<128x128xf32>
    %82 = arith.select %80, %63, %81 : vector<128x128xi1>, vector<128x128xf32>
    %cst_16 = arith.constant dense<0xFF800000> : vector<128xf32>
    %83 = vector.multi_reduction <maximumf>, %82, %cst_16 [1] : vector<128x128xf32> to vector<128xf32>
    %84 = vector.shape_cast %83 : vector<128xf32> to vector<128x1xf32>
    %c3_i32 = arith.constant 3 : i32
    %85 = vector.broadcast %c3_i32 : i32 to vector<128x128xi32>
    %86 = arith.addi %49, %85 : vector<128x128xi32>
    %87 = arith.cmpi eq, %15, %86 : vector<128x128xi32>
    %cst_17 = arith.constant 0.000000e+00 : f32
    %88 = vector.broadcast %cst_17 : f32 to vector<128x128xf32>
    %89 = arith.select %87, %63, %88 : vector<128x128xi1>, vector<128x128xf32>
    %cst_18 = arith.constant dense<0xFF800000> : vector<128xf32>
    %90 = vector.multi_reduction <maximumf>, %89, %cst_18 [1] : vector<128x128xf32> to vector<128xf32>
    %91 = vector.shape_cast %90 : vector<128xf32> to vector<128x1xf32>
    %cst_19 = arith.constant dense<0.000000e+00> : vector<128x128xf32>
    %92 = tpu.matmul %3, %3, %cst_19 {dimension_numbers = #tpu.dot_dimension_numbers<[1], [1], [0], [0], [0, 0, 1, 0], [], []>} : vector<128x32xf32>, vector<128x32xf32>, vector<128x128xf32> -> vector<128x128xf32>
    %93 = arith.mulf %92, %18 : vector<128x128xf32>
    %cst_20 = arith.constant dense<0.000000e+00> : vector<128xf32>
    %94 = vector.multi_reduction <add>, %93, %cst_20 [0] : vector<128x128xf32> to vector<128xf32>
    %95 = vector.shape_cast %94 : vector<128xf32> to vector<1x128xf32>
    %96 = arith.mulf %92, %18 : vector<128x128xf32>
    %cst_21 = arith.constant dense<0.000000e+00> : vector<128xf32>
    %97 = vector.multi_reduction <add>, %96, %cst_21 [1] : vector<128x128xf32> to vector<128xf32>
    %98 = vector.shape_cast %97 : vector<128xf32> to vector<128x1xf32>
    %99 = vector.broadcast %98 : vector<128x1xf32> to vector<128x128xf32>
    %100 = vector.broadcast %95 : vector<1x128xf32> to vector<128x128xf32>
    %101 = arith.addf %99, %100 : vector<128x128xf32>
    %cst_22 = arith.constant 2.000000e+00 : f32
    %102 = vector.broadcast %cst_22 : f32 to vector<128x128xf32>
    %103 = arith.mulf %102, %92 : vector<128x128xf32>
    %104 = arith.subf %101, %103 : vector<128x128xf32>
    %cst_23 = arith.constant 0.000000e+00 : f32
    %105 = vector.broadcast %cst_23 : f32 to vector<128x128xf32>
    %106 = arith.maximumf %104, %105 : vector<128x128xf32>
    %107 = math.sqrt %106 : vector<128x128xf32>
    %cst_24 = arith.constant -1.000000e+00 : f32
    %108 = vector.broadcast %cst_24 : f32 to vector<128x128xf32>
    %109 = arith.select %54, %106, %108 : vector<128x128xi1>, vector<128x128xf32>
    %cst_25 = arith.constant 0.000000e+00 : f32
    %110 = vector.broadcast %cst_25 : f32 to vector<128x128xf32>
    %cst_26 = arith.constant dense<0xFF800000> : vector<128xf32>
    %111 = vector.multi_reduction <maximumf>, %109, %cst_26 [1] : vector<128x128xf32> to vector<128xf32>
    %112 = vector.shape_cast %111 : vector<128xf32> to vector<128x1xf32>
    %113 = vector.broadcast %112 : vector<128x1xf32> to vector<128x128xf32>
    %114 = arith.cmpf oeq, %109, %113 : vector<128x128xf32>
    %c128_i32 = arith.constant 128 : i32
    %115 = vector.broadcast %c128_i32 : i32 to vector<128x128xi32>
    %116 = arith.select %114, %15, %115 : vector<128x128xi1>, vector<128x128xi32>
    %cst_27 = arith.constant dense<2147483647> : vector<128xi32>
    %117 = vector.multi_reduction <minsi>, %116, %cst_27 [1] : vector<128x128xi32> to vector<128xi32>
    %118 = vector.shape_cast %117 : vector<128xi32> to vector<128x1xi32>
    %119 = vector.broadcast %118 : vector<128x1xi32> to vector<128x128xi32>
    %120 = arith.cmpi eq, %15, %119 : vector<128x128xi32>
    %cst_28 = arith.constant 0.000000e+00 : f32
    %121 = vector.shape_cast %70 : vector<128x1xf32> to vector<128x1xf32>
    %122 = vector.broadcast %121 : vector<128x1xf32> to vector<128x128xf32>
    %123 = vector.broadcast %cst_28 : f32 to vector<128x128xf32>
    %124 = arith.select %120, %122, %123 : vector<128x128xi1>, vector<128x128xf32>
    %125 = arith.addf %110, %124 : vector<128x128xf32>
    %cst_29 = arith.constant -1.000000e+00 : f32
    %126 = vector.broadcast %cst_29 : f32 to vector<128x128xf32>
    %127 = arith.select %120, %126, %109 : vector<128x128xi1>, vector<128x128xf32>
    %cst_30 = arith.constant dense<0xFF800000> : vector<128xf32>
    %128 = vector.multi_reduction <maximumf>, %127, %cst_30 [1] : vector<128x128xf32> to vector<128xf32>
    %129 = vector.shape_cast %128 : vector<128xf32> to vector<128x1xf32>
    %130 = vector.broadcast %129 : vector<128x1xf32> to vector<128x128xf32>
    %131 = arith.cmpf oeq, %127, %130 : vector<128x128xf32>
    %c128_i32_31 = arith.constant 128 : i32
    %132 = vector.broadcast %c128_i32_31 : i32 to vector<128x128xi32>
    %133 = arith.select %131, %15, %132 : vector<128x128xi1>, vector<128x128xi32>
    %cst_32 = arith.constant dense<2147483647> : vector<128xi32>
    %134 = vector.multi_reduction <minsi>, %133, %cst_32 [1] : vector<128x128xi32> to vector<128xi32>
    %135 = vector.shape_cast %134 : vector<128xi32> to vector<128x1xi32>
    %136 = vector.broadcast %135 : vector<128x1xi32> to vector<128x128xi32>
    %137 = arith.cmpi eq, %15, %136 : vector<128x128xi32>
    %cst_33 = arith.constant 0.000000e+00 : f32
    %138 = vector.shape_cast %77 : vector<128x1xf32> to vector<128x1xf32>
    %139 = vector.broadcast %138 : vector<128x1xf32> to vector<128x128xf32>
    %140 = vector.broadcast %cst_33 : f32 to vector<128x128xf32>
    %141 = arith.select %137, %139, %140 : vector<128x128xi1>, vector<128x128xf32>
    %142 = arith.addf %125, %141 : vector<128x128xf32>
    %cst_34 = arith.constant -1.000000e+00 : f32
    %143 = vector.broadcast %cst_34 : f32 to vector<128x128xf32>
    %144 = arith.select %137, %143, %127 : vector<128x128xi1>, vector<128x128xf32>
    %cst_35 = arith.constant dense<0xFF800000> : vector<128xf32>
    %145 = vector.multi_reduction <maximumf>, %144, %cst_35 [1] : vector<128x128xf32> to vector<128xf32>
    %146 = vector.shape_cast %145 : vector<128xf32> to vector<128x1xf32>
    %147 = vector.broadcast %146 : vector<128x1xf32> to vector<128x128xf32>
    %148 = arith.cmpf oeq, %144, %147 : vector<128x128xf32>
    %c128_i32_36 = arith.constant 128 : i32
    %149 = vector.broadcast %c128_i32_36 : i32 to vector<128x128xi32>
    %150 = arith.select %148, %15, %149 : vector<128x128xi1>, vector<128x128xi32>
    %cst_37 = arith.constant dense<2147483647> : vector<128xi32>
    %151 = vector.multi_reduction <minsi>, %150, %cst_37 [1] : vector<128x128xi32> to vector<128xi32>
    %152 = vector.shape_cast %151 : vector<128xi32> to vector<128x1xi32>
    %153 = vector.broadcast %152 : vector<128x1xi32> to vector<128x128xi32>
    %154 = arith.cmpi eq, %15, %153 : vector<128x128xi32>
    %cst_38 = arith.constant 0.000000e+00 : f32
    %155 = vector.shape_cast %84 : vector<128x1xf32> to vector<128x1xf32>
    %156 = vector.broadcast %155 : vector<128x1xf32> to vector<128x128xf32>
    %157 = vector.broadcast %cst_38 : f32 to vector<128x128xf32>
    %158 = arith.select %154, %156, %157 : vector<128x128xi1>, vector<128x128xf32>
    %159 = arith.addf %142, %158 : vector<128x128xf32>
    %cst_39 = arith.constant -1.000000e+00 : f32
    %160 = vector.broadcast %cst_39 : f32 to vector<128x128xf32>
    %161 = arith.select %154, %160, %144 : vector<128x128xi1>, vector<128x128xf32>
    %cst_40 = arith.constant dense<0xFF800000> : vector<128xf32>
    %162 = vector.multi_reduction <maximumf>, %161, %cst_40 [1] : vector<128x128xf32> to vector<128xf32>
    %163 = vector.shape_cast %162 : vector<128xf32> to vector<128x1xf32>
    %164 = vector.broadcast %163 : vector<128x1xf32> to vector<128x128xf32>
    %165 = arith.cmpf oeq, %161, %164 : vector<128x128xf32>
    %c128_i32_41 = arith.constant 128 : i32
    %166 = vector.broadcast %c128_i32_41 : i32 to vector<128x128xi32>
    %167 = arith.select %165, %15, %166 : vector<128x128xi1>, vector<128x128xi32>
    %cst_42 = arith.constant dense<2147483647> : vector<128xi32>
    %168 = vector.multi_reduction <minsi>, %167, %cst_42 [1] : vector<128x128xi32> to vector<128xi32>
    %169 = vector.shape_cast %168 : vector<128xi32> to vector<128x1xi32>
    %170 = vector.broadcast %169 : vector<128x1xi32> to vector<128x128xi32>
    %171 = arith.cmpi eq, %15, %170 : vector<128x128xi32>
    %cst_43 = arith.constant 0.000000e+00 : f32
    %172 = vector.shape_cast %91 : vector<128x1xf32> to vector<128x1xf32>
    %173 = vector.broadcast %172 : vector<128x1xf32> to vector<128x128xf32>
    %174 = vector.broadcast %cst_43 : f32 to vector<128x128xf32>
    %175 = arith.select %171, %173, %174 : vector<128x128xi1>, vector<128x128xf32>
    %176 = arith.addf %159, %175 : vector<128x128xf32>
    %177 = tpu.transpose %176, [1, 0] : vector<128x128xf32> -> vector<128x128xf32>
    %178 = arith.addf %176, %177 : vector<128x128xf32>
    %cst_44 = arith.constant 1.000000e+00 : f32
    %179 = vector.broadcast %cst_44 : f32 to vector<128x128xf32>
    %180 = arith.cmpf oeq, %178, %179 : vector<128x128xf32>
    %181 = arith.extui %180 : vector<128x128xi1> to vector<128x128xi32>
    %182 = arith.sitofp %181 : vector<128x128xi32> to vector<128x128xf32>
    %cst_45 = arith.constant dense<true> : vector<128x128xi1>
    %183 = arith.xori %16, %cst_45 : vector<128x128xi1>
    %184 = arith.andi %54, %183 : vector<128x128xi1>
    %cst_46 = arith.constant 1.000000e+00 : f32
    %cst_47 = arith.constant 0.000000e+00 : f32
    %185 = vector.broadcast %cst_46 : f32 to vector<128x128xf32>
    %186 = vector.broadcast %cst_47 : f32 to vector<128x128xf32>
    %187 = arith.select %184, %185, %186 : vector<128x128xi1>, vector<128x128xf32>
    %188 = arith.mulf %182, %187 : vector<128x128xf32>
    %cst_48 = arith.constant 1.000000e+00 : f32
    %189 = vector.broadcast %cst_48 : f32 to vector<128x128xf32>
    %190 = arith.subf %189, %182 : vector<128x128xf32>
    %191 = arith.mulf %190, %187 : vector<128x128xf32>
    %cst_49 = arith.constant 1.000000e+00 : f32
    %192 = vector.broadcast %cst_49 : f32 to vector<128x128xf32>
    %193 = arith.subf %192, %107 : vector<128x128xf32>
    %cst_50 = arith.constant 0.000000e+00 : f32
    %194 = vector.broadcast %cst_50 : f32 to vector<128x128xf32>
    %195 = arith.maximumf %193, %194 : vector<128x128xf32>
    %196 = arith.mulf %106, %188 : vector<128x128xf32>
    %197 = arith.mulf %195, %195 : vector<128x128xf32>
    %198 = arith.mulf %197, %191 : vector<128x128xf32>
    %199 = arith.addf %196, %198 : vector<128x128xf32>
    %cst_51 = arith.constant dense<0.000000e+00> : vector<128xf32>
    %200 = vector.multi_reduction <add>, %199, %cst_51 [1] : vector<128x128xf32> to vector<128xf32>
    %201 = vector.shape_cast %200 : vector<128xf32> to vector<128x1xf32>
    %202 = arith.cmpi eq, %15, %47 : vector<128x128xi32>
    %203 = arith.extui %202 : vector<128x128xi1> to vector<128x128xi32>
    %204 = arith.sitofp %203 : vector<128x128xi32> to vector<128x128xf32>
    %205 = vector.broadcast %201 : vector<128x1xf32> to vector<128x128xf32>
    %206 = arith.mulf %205, %204 : vector<128x128xf32>
    %cst_52 = arith.constant dense<0.000000e+00> : vector<128xf32>
    %207 = vector.multi_reduction <add>, %206, %cst_52 [0] : vector<128x128xf32> to vector<128xf32>
    %208 = vector.shape_cast %207 : vector<128xf32> to vector<1x128xf32>
    %cst_53 = arith.constant 0.00416666688 : f32
    %209 = vector.broadcast %cst_53 : f32 to vector<1x128xf32>
    %210 = arith.mulf %208, %209 : vector<1x128xf32>
    %211 = vector.shape_cast %210 : vector<1x128xf32> to vector<1x128xf32>
    %212 = vector.broadcast %211 : vector<1x128xf32> to vector<8x128xf32>
    %c0_54 = arith.constant 0 : index
    %c0_55 = arith.constant 0 : index
    %c0_56 = arith.constant 0 : index
    %213 = vector.load %arg3[%c0_54, %c0_55, %c0_56] : memref<1x8x128xf32, #tpu.memory_space<vmem>>, vector<1x8x128xf32>
    %214 = vector.shape_cast %213 : vector<1x8x128xf32> to vector<8x128xf32>
    %215 = vector.shape_cast %212 : vector<8x128xf32> to vector<1x8x128xf32>
    tpu.vector_store %arg3[%c0_54, %c0_55, %c0_56], %215 {strides = array<i32>} : memref<1x8x128xf32, #tpu.memory_space<vmem>>, vector<1x8x128xf32>,
    return
  }
  func.func @transform_0(%arg0: i32) -> (i32, i32, i32) {
    %c0_i32 = arith.constant 0 : i32
    %c0_i32_0 = arith.constant 0 : i32
    %c0_i32_1 = arith.constant 0 : i32
    return %arg0, %c0_i32, %c0_i32_0 : i32, i32, i32
  }
  func.func @transform_1(%arg0: i32) -> (i32, i32, i32) {
    %c0_i32 = arith.constant 0 : i32
    %c0_i32_0 = arith.constant 0 : i32
    %c0_i32_1 = arith.constant 0 : i32
    return %arg0, %c0_i32, %c0_i32_0 : i32, i32, i32
  }
  func.func @transform_2(%arg0: i32) -> (i32, i32, i32) {
    %c0_i32 = arith.constant 0 : i32
    %c0_i32_0 = arith.constant 0 : i32
    %c0_i32_1 = arith.constant 0 : i32
    return %arg0, %c0_i32, %c0_i32_0 : i32, i32, i32
  }
}

</mosaic_0001>

<llo_original>
// kernel: tpu_custom_call.1
$region0: #{tpu_custom_call.1}
  #allocation0 [shape = 'u32[]', space=smem, size = 0x4, offset = 0x4, fixed_abs, tag = 'smem constant byte address 0x4 - core index']
  #allocation1 [shape = 'u32[72,128]{1,0:T(1,128)}', space=vmem, size = 0x9000, scoped, tag = 'internal scratch']
  %s0 = inlined_call_operand.vmem [shape: f32[1,128,64], index: 0, kind: input, shape index: {}]
  %s1 = inlined_call_operand.vmem [shape: f32[1,128,32], index: 1, kind: input, shape index: {}]
  %s2 = inlined_call_operand.hbm [shape: f32[1,8,128], index: 2, kind: output, shape index: {}]
  %s3 = sld [smem:[#allocation0]]
  $region18: #{tpu_custom_call.1} parent=0
    _
  %s5 = ssub.s32 1, %s3
  %s6 = scalar_select 0, %s5, %s3
  $region1: #{tpu_custom_call.1} parent=0
    #allocation2 [shape = 'u8[4096]{0}', space=vmem, size = 0x1000, scoped, tag = 'output window, operand 0, single buffered']
    #allocation3 [shape = 's32[1]{0}', space=sflag, size = 0x4, scoped, tag = 'scoped memory for tpu_custom_call.1']
    %7 = vsyncpa [#allocation3], 0
    // Predicated region
    $region2: #{tpu_custom_call.1} parent=1 // pred_check
      _
    $region3: #{tpu_custom_call.1} parent=1 // pred_check_branch
      %9 = sbr.rel (0) target = $region5
    $region4: #{tpu_custom_call.1} parent=1 // pred_region
      _
    $region5: #{tpu_custom_call.1} parent=1 // pred_fallthru
      _
    // Predicated region
    $region6: #{tpu_custom_call.1} parent=1 // pred_check
      _
    $region7: #{tpu_custom_call.1} parent=1 // pred_check_branch
      %11 = sbr.rel (0) target = $region9
    $region8: #{tpu_custom_call.1} parent=1 // pred_region
      _
    $region9: #{tpu_custom_call.1} parent=1 // pred_fallthru
      _
    %v12 = vld [vmem:[%s0] sm:$0xff]
    %v13 = vld [vmem:[%s0 + $0x8] sm:$0xff]
    %v14 = vld [vmem:[%s0 + $0x10] sm:$0xff]
    %v15 = vld [vmem:[%s0 + $0x18] sm:$0xff]
    %v16 = vld [vmem:[%s0 + $0x20] sm:$0xff]
    %v17 = vld [vmem:[%s0 + $0x28] sm:$0xff]
    %v18 = vld [vmem:[%s0 + $0x30] sm:$0xff]
    %v19 = vld [vmem:[%s0 + $0x38] sm:$0xff]
    %v20 = vld [vmem:[%s0 + $0x40] sm:$0xff]
    %v21 = vld [vmem:[%s0 + $0x48] sm:$0xff]
    %v22 = vld [vmem:[%s0 + $0x50] sm:$0xff]
    %v23 = vld [vmem:[%s0 + $0x58] sm:$0xff]
    %v24 = vld [vmem:[%s0 + $0x60] sm:$0xff]
    %v25 = vld [vmem:[%s0 + $0x68] sm:$0xff]
    %v26 = vld [vmem:[%s0 + $0x70] sm:$0xff]
    %v27 = vld [vmem:[%s0 + $0x78] sm:$0xff]
    %v28 = vld [vmem:[%s1] sm:$0xff]
    %v29 = vld [vmem:[%s1 + $0x8] sm:$0xff]
    %v30 = vld [vmem:[%s1 + $0x10] sm:$0xff]
    %v31 = vld [vmem:[%s1 + $0x18] sm:$0xff]
    %v32 = vld [vmem:[%s1 + $0x20] sm:$0xff]
    %v33 = vld [vmem:[%s1 + $0x28] sm:$0xff]
    %v34 = vld [vmem:[%s1 + $0x30] sm:$0xff]
    %v35 = vld [vmem:[%s1 + $0x38] sm:$0xff]
    %v36 = vld [vmem:[%s1 + $0x40] sm:$0xff]
    %v37 = vld [vmem:[%s1 + $0x48] sm:$0xff]
    %v38 = vld [vmem:[%s1 + $0x50] sm:$0xff]
    %v39 = vld [vmem:[%s1 + $0x58] sm:$0xff]
    %v40 = vld [vmem:[%s1 + $0x60] sm:$0xff]
    %v41 = vld [vmem:[%s1 + $0x68] sm:$0xff]
    %v42 = vld [vmem:[%s1 + $0x70] sm:$0xff]
    %v43 = vld [vmem:[%s1 + $0x78] sm:$0xff]
    %vm44 = vcmask 523264
    %v45 = vsel %vm44, %v12, -inf
    %46 = vmax.xlane.f32.xlu0 %v45
    %v47 = vpop.xlane.xlu0 %46
    %v48 = vsel %vm44, %v13, -inf
    %49 = vmax.xlane.f32.xlu0 %v48
    %v50 = vpop.xlane.xlu0 %49
    %v51 = vsel %vm44, %v14, -inf
    %52 = vmax.xlane.f32.xlu0 %v51
    %v53 = vpop.xlane.xlu0 %52
    %v54 = vsel %vm44, %v15, -inf
    %55 = vmax.xlane.f32.xlu0 %v54
    %v56 = vpop.xlane.xlu0 %55
    %v57 = vsel %vm44, %v16, -inf
    %58 = vmax.xlane.f32.xlu0 %v57
    %v59 = vpop.xlane.xlu0 %58
    %v60 = vsel %vm44, %v17, -inf
    %61 = vmax.xlane.f32.xlu0 %v60
    %v62 = vpop.xlane.xlu0 %61
    %v63 = vsel %vm44, %v18, -inf
    %64 = vmax.xlane.f32.xlu0 %v63
    %v65 = vpop.xlane.xlu0 %64
    %v66 = vsel %vm44, %v19, -inf
    %67 = vmax.xlane.f32.xlu0 %v66
    %v68 = vpop.xlane.xlu0 %67
    %v69 = vsel %vm44, %v20, -inf
    %70 = vmax.xlane.f32.xlu0 %v69
    %v71 = vpop.xlane.xlu0 %70
    %v72 = vsel %vm44, %v21, -inf
    %73 = vmax.xlane.f32.xlu0 %v72
    %v74 = vpop.xlane.xlu0 %73
    %v75 = vsel %vm44, %v22, -inf
    %76 = vmax.xlane.f32.xlu0 %v75
    %v77 = vpop.xlane.xlu0 %76
    %v78 = vsel %vm44, %v23, -inf
    %79 = vmax.xlane.f32.xlu0 %v78
    %v80 = vpop.xlane.xlu0 %79
    %v81 = vsel %vm44, %v24, -inf
    %82 = vmax.xlane.f32.xlu0 %v81
    %v83 = vpop.xlane.xlu0 %82
    %v84 = vsel %vm44, %v25, -inf
    %85 = vmax.xlane.f32.xlu0 %v84
    %v86 = vpop.xlane.xlu0 %85
    %v87 = vsel %vm44, %v26, -inf
    %88 = vmax.xlane.f32.xlu0 %v87
    %v89 = vpop.xlane.xlu0 %88
    %v90 = vsel %vm44, %v27, -inf
    %91 = vmax.xlane.f32.xlu0 %v90
    %v92 = vpop.xlane.xlu0 %91
    %v93 = vlaneseq
    %v94 = vand.u32 %v93, 127
    %vm95 = vcmp.eq.f32.partialorder %v12, %v47
    %vm96 = vcmp.eq.f32.partialorder %v13, %v50
    %vm97 = vcmp.eq.f32.partialorder %v14, %v53
    %vm98 = vcmp.eq.f32.partialorder %v15, %v56
    %vm99 = vcmp.eq.f32.partialorder %v16, %v59
    %vm100 = vcmp.eq.f32.partialorder %v17, %v62
    %vm101 = vcmp.eq.f32.partialorder %v18, %v65
    %vm102 = vcmp.eq.f32.partialorder %v19, %v68
    %vm103 = vcmp.eq.f32.partialorder %v20, %v71
    %vm104 = vcmp.eq.f32.partialorder %v21, %v74
    %vm105 = vcmp.eq.f32.partialorder %v22, %v77
    %vm106 = vcmp.eq.f32.partialorder %v23, %v80
    %vm107 = vcmp.eq.f32.partialorder %v24, %v83
    %vm108 = vcmp.eq.f32.partialorder %v25, %v86
    %vm109 = vcmp.eq.f32.partialorder %v26, %v89
    %vm110 = vcmp.eq.f32.partialorder %v27, %v92
    %v111 = vsel %vm95, %v94, 64
    %v112 = vsel %vm96, %v94, 64
    %v113 = vsel %vm97, %v94, 64
    %v114 = vsel %vm98, %v94, 64
    %v115 = vsel %vm99, %v94, 64
    %v116 = vsel %vm100, %v94, 64
    %v117 = vsel %vm101, %v94, 64
    %v118 = vsel %vm102, %v94, 64
    %v119 = vsel %vm103, %v94, 64
    %v120 = vsel %vm104, %v94, 64
    %v121 = vsel %vm105, %v94, 64
    %v122 = vsel %vm106, %v94, 64
    %v123 = vsel %vm107, %v94, 64
    %v124 = vsel %vm108, %v94, 64
    %v125 = vsel %vm109, %v94, 64
    %v126 = vsel %vm110, %v94, 64
    %v127 = vsel %vm44, %v111, 2147483647
    %v128 = vand.u32 %v127, 65535
    %v129 = vshra.s32 %v127, 16
    %v130 = vcvt.s32.f32 %v128
    %v131 = vcvt.s32.f32 %v129
    %132 = vmin.xlane.f32.xlu0 %v131
    %v133 = vpop.xlane.xlu0 %132
    %vm134 = vcmp.eq.f32.partialorder %v131, %v133
    %v135 = vsel %vm134, %v130, inf
    %136 = vmin.xlane.f32.xlu0 %v135
    %v137 = vpop.xlane.xlu0 %136
    %v138 = vcvt.f32.s32 %v137
    %v139 = vcvt.f32.s32 %v133
    %v140 = vshll.u32 %v139, 16
    %v141 = vadd.s32 %v140, %v138
    %v142 = vsel %vm44, %v112, 2147483647
    %v143 = vand.u32 %v142, 65535
    %v144 = vshra.s32 %v142, 16
    %v145 = vcvt.s32.f32 %v143
    %v146 = vcvt.s32.f32 %v144
    %147 = vmin.xlane.f32.xlu0 %v146
    %v148 = vpop.xlane.xlu0 %147
    %vm149 = vcmp.eq.f32.partialorder %v146, %v148
    %v150 = vsel %vm149, %v145, inf
    %151 = vmin.xlane.f32.xlu0 %v150
    %v152 = vpop.xlane.xlu0 %151
    %v153 = vcvt.f32.s32 %v152
    %v154 = vcvt.f32.s32 %v148
    %v155 = vshll.u32 %v154, 16
    %v156 = vadd.s32 %v155, %v153
    %v157 = vsel %vm44, %v113, 2147483647
    %v158 = vand.u32 %v157, 65535
    %v159 = vshra.s32 %v157, 16
    %v160 = vcvt.s32.f32 %v158
    %v161 = vcvt.s32.f32 %v159
    %162 = vmin.xlane.f32.xlu0 %v161
    %v163 = vpop.xlane.xlu0 %162
    %vm164 = vcmp.eq.f32.partialorder %v161, %v163
    %v165 = vsel %vm164, %v160, inf
    %166 = vmin.xlane.f32.xlu0 %v165
    %v167 = vpop.xlane.xlu0 %166
    %v168 = vcvt.f32.s32 %v167
    %v169 = vcvt.f32.s32 %v163
    %v170 = vshll.u32 %v169, 16
    %v171 = vadd.s32 %v170, %v168
    %v172 = vsel %vm44, %v114, 2147483647
    %v173 = vand.u32 %v172, 65535
    %v174 = vshra.s32 %v172, 16
    %v175 = vcvt.s32.f32 %v173
    %v176 = vcvt.s32.f32 %v174
    %177 = vmin.xlane.f32.xlu0 %v176
    %v178 = vpop.xlane.xlu0 %177
    %vm179 = vcmp.eq.f32.partialorder %v176, %v178
    %v180 = vsel %vm179, %v175, inf
    %181 = vmin.xlane.f32.xlu0 %v180
    %v182 = vpop.xlane.xlu0 %181
    %v183 = vcvt.f32.s32 %v182
    %v184 = vcvt.f32.s32 %v178
    %v185 = vshll.u32 %v184, 16
    %v186 = vadd.s32 %v185, %v183
    %v187 = vsel %vm44, %v115, 2147483647
    %v188 = vand.u32 %v187, 65535
    %v189 = vshra.s32 %v187, 16
    %v190 = vcvt.s32.f32 %v188
    %v191 = vcvt.s32.f32 %v189
    %192 = vmin.xlane.f32.xlu0 %v191
    %v193 = vpop.xlane.xlu0 %192
    %vm194 = vcmp.eq.f32.partialorder %v191, %v193
    %v195 = vsel %vm194, %v190, inf
    %196 = vmin.xlane.f32.xlu0 %v195
    %v197 = vpop.xlane.xlu0 %196
    %v198 = vcvt.f32.s32 %v197
    %v199 = vcvt.f32.s32 %v193
    %v200 = vshll.u32 %v199, 16
    %v201 = vadd.s32 %v200, %v198
    %v202 = vsel %vm44, %v116, 2147483647
    %v203 = vand.u32 %v202, 65535
    %v204 = vshra.s32 %v202, 16
    %v205 = vcvt.s32.f32 %v203
    %v206 = vcvt.s32.f32 %v204
    %207 = vmin.xlane.f32.xlu0 %v206
    %v208 = vpop.xlane.xlu0 %207
    %vm209 = vcmp.eq.f32.partialorder %v206, %v208
    %v210 = vsel %vm209, %v205, inf
    %211 = vmin.xlane.f32.xlu0 %v210
    %v212 = vpop.xlane.xlu0 %211
    %v213 = vcvt.f32.s32 %v212
    %v214 = vcvt.f32.s32 %v208
    %v215 = vshll.u32 %v214, 16
    %v216 = vadd.s32 %v215, %v213
    %v217 = vsel %vm44, %v117, 2147483647
    %v218 = vand.u32 %v217, 65535
    %v219 = vshra.s32 %v217, 16
    %v220 = vcvt.s32.f32 %v218
    %v221 = vcvt.s32.f32 %v219
    %222 = vmin.xlane.f32.xlu0 %v221
    %v223 = vpop.xlane.xlu0 %222
    %vm224 = vcmp.eq.f32.partialorder %v221, %v223
    %v225 = vsel %vm224, %v220, inf
    %226 = vmin.xlane.f32.xlu0 %v225
    %v227 = vpop.xlane.xlu0 %226
    %v228 = vcvt.f32.s32 %v227
    %v229 = vcvt.f32.s32 %v223
    %v230 = vshll.u32 %v229, 16
    %v231 = vadd.s32 %v230, %v228
    %v232 = vsel %vm44, %v118, 2147483647
    %v233 = vand.u32 %v232, 65535
    %v234 = vshra.s32 %v232, 16
    %v235 = vcvt.s32.f32 %v233
    %v236 = vcvt.s32.f32 %v234
    %237 = vmin.xlane.f32.xlu0 %v236
    %v238 = vpop.xlane.xlu0 %237
    %vm239 = vcmp.eq.f32.partialorder %v236, %v238
    %v240 = vsel %vm239, %v235, inf
    %241 = vmin.xlane.f32.xlu0 %v240
    %v242 = vpop.xlane.xlu0 %241
    %v243 = vcvt.f32.s32 %v242
    %v244 = vcvt.f32.s32 %v238
    %v245 = vshll.u32 %v244, 16
    %v246 = vadd.s32 %v245, %v243
    %v247 = vsel %vm44, %v119, 2147483647
    %v248 = vand.u32 %v247, 65535
    %v249 = vshra.s32 %v247, 16
    %v250 = vcvt.s32.f32 %v248
    %v251 = vcvt.s32.f32 %v249
    %252 = vmin.xlane.f32.xlu0 %v251
    %v253 = vpop.xlane.xlu0 %252
    %vm254 = vcmp.eq.f32.partialorder %v251, %v253
    %v255 = vsel %vm254, %v250, inf
    %256 = vmin.xlane.f32.xlu0 %v255
    %v257 = vpop.xlane.xlu0 %256
    %v258 = vcvt.f32.s32 %v257
    %v259 = vcvt.f32.s32 %v253
    %v260 = vshll.u32 %v259, 16
    %v261 = vadd.s32 %v260, %v258
    %v262 = vsel %vm44, %v120, 2147483647
    %v263 = vand.u32 %v262, 65535
    %v264 = vshra.s32 %v262, 16
    %v265 = vcvt.s32.f32 %v263
    %v266 = vcvt.s32.f32 %v264
    %267 = vmin.xlane.f32.xlu0 %v266
    %v268 = vpop.xlane.xlu0 %267
    %vm269 = vcmp.eq.f32.partialorder %v266, %v268
    %v270 = vsel %vm269, %v265, inf
    %271 = vmin.xlane.f32.xlu0 %v270
    %v272 = vpop.xlane.xlu0 %271
    %v273 = vcvt.f32.s32 %v272
    %v274 = vcvt.f32.s32 %v268
    %v275 = vshll.u32 %v274, 16
    %v276 = vadd.s32 %v275, %v273
    %v277 = vsel %vm44, %v121, 2147483647
    %v278 = vand.u32 %v277, 65535
    %v279 = vshra.s32 %v277, 16
    %v280 = vcvt.s32.f32 %v278
    %v281 = vcvt.s32.f32 %v279
    %282 = vmin.xlane.f32.xlu0 %v281
    %v283 = vpop.xlane.xlu0 %282
    %vm284 = vcmp.eq.f32.partialorder %v281, %v283
    %v285 = vsel %vm284, %v280, inf
    %286 = vmin.xlane.f32.xlu0 %v285
    %v287 = vpop.xlane.xlu0 %286
    %v288 = vcvt.f32.s32 %v287
    %v289 = vcvt.f32.s32 %v283
    %v290 = vshll.u32 %v289, 16
    %v291 = vadd.s32 %v290, %v288
    %v292 = vsel %vm44, %v122, 2147483647
    %v293 = vand.u32 %v292, 65535
    %v294 = vshra.s32 %v292, 16
    %v295 = vcvt.s32.f32 %v293
    %v296 = vcvt.s32.f32 %v294
    %297 = vmin.xlane.f32.xlu0 %v296
    %v298 = vpop.xlane.xlu0 %297
    %vm299 = vcmp.eq.f32.partialorder %v296, %v298
    %v300 = vsel %vm299, %v295, inf
    %301 = vmin.xlane.f32.xlu0 %v300
    %v302 = vpop.xlane.xlu0 %301
    %v303 = vcvt.f32.s32 %v302
    %v304 = vcvt.f32.s32 %v298
    %v305 = vshll.u32 %v304, 16
    %v306 = vadd.s32 %v305, %v303
    %v307 = vsel %vm44, %v123, 2147483647
    %v308 = vand.u32 %v307, 65535
    %v309 = vshra.s32 %v307, 16
    %v310 = vcvt.s32.f32 %v308
    %v311 = vcvt.s32.f32 %v309
    %312 = vmin.xlane.f32.xlu0 %v311
    %v313 = vpop.xlane.xlu0 %312
    %vm314 = vcmp.eq.f32.partialorder %v311, %v313
    %v315 = vsel %vm314, %v310, inf
    %316 = vmin.xlane.f32.xlu0 %v315
    %v317 = vpop.xlane.xlu0 %316
    %v318 = vcvt.f32.s32 %v317
    %v319 = vcvt.f32.s32 %v313
    %v320 = vshll.u32 %v319, 16
    %v321 = vadd.s32 %v320, %v318
    %v322 = vsel %vm44, %v124, 2147483647
    %v323 = vand.u32 %v322, 65535
    %v324 = vshra.s32 %v322, 16
    %v325 = vcvt.s32.f32 %v323
    %v326 = vcvt.s32.f32 %v324
    %327 = vmin.xlane.f32.xlu0 %v326
    %v328 = vpop.xlane.xlu0 %327
    %vm329 = vcmp.eq.f32.partialorder %v326, %v328
    %v330 = vsel %vm329, %v325, inf
    %331 = vmin.xlane.f32.xlu0 %v330
    %v332 = vpop.xlane.xlu0 %331
    %v333 = vcvt.f32.s32 %v332
    %v334 = vcvt.f32.s32 %v328
    %v335 = vshll.u32 %v334, 16
    %v336 = vadd.s32 %v335, %v333
    %v337 = vsel %vm44, %v125, 2147483647
    %v338 = vand.u32 %v337, 65535
    %v339 = vshra.s32 %v337, 16
    %v340 = vcvt.s32.f32 %v338
    %v341 = vcvt.s32.f32 %v339
    %342 = vmin.xlane.f32.xlu0 %v341
    %v343 = vpop.xlane.xlu0 %342
    %vm344 = vcmp.eq.f32.partialorder %v341, %v343
    %v345 = vsel %vm344, %v340, inf
    %346 = vmin.xlane.f32.xlu0 %v345
    %v347 = vpop.xlane.xlu0 %346
    %v348 = vcvt.f32.s32 %v347
    %v349 = vcvt.f32.s32 %v343
    %v350 = vshll.u32 %v349, 16
    %v351 = vadd.s32 %v350, %v348
    %v352 = vsel %vm44, %v126, 2147483647
    %v353 = vand.u32 %v352, 65535
    %v354 = vshra.s32 %v352, 16
    %v355 = vcvt.s32.f32 %v353
    %v356 = vcvt.s32.f32 %v354
    %357 = vmin.xlane.f32.xlu0 %v356
    %v358 = vpop.xlane.xlu0 %357
    %vm359 = vcmp.eq.f32.partialorder %v356, %v358
    %v360 = vsel %vm359, %v355, inf
    %361 = vmin.xlane.f32.xlu0 %v360
    %v362 = vpop.xlane.xlu0 %361
    %v363 = vcvt.f32.s32 %v362
    %v364 = vcvt.f32.s32 %v358
    %v365 = vshll.u32 %v364, 16
    %v366 = vadd.s32 %v365, %v363
    %v367 = vcvt.s32.f32 %v141
    %v368 = vcvt.s32.f32 %v156
    %v369 = vcvt.s32.f32 %v171
    %v370 = vcvt.s32.f32 %v186
    %v371 = vcvt.s32.f32 %v201
    %v372 = vcvt.s32.f32 %v216
    %v373 = vcvt.s32.f32 %v231
    %v374 = vcvt.s32.f32 %v246
    %v375 = vcvt.s32.f32 %v261
    %v376 = vcvt.s32.f32 %v276
    %v377 = vcvt.s32.f32 %v291
    %v378 = vcvt.s32.f32 %v306
    %v379 = vcvt.s32.f32 %v321
    %v380 = vcvt.s32.f32 %v336
    %v381 = vcvt.s32.f32 %v351
    %v382 = vcvt.s32.f32 %v366
    %v383 = vlaneseq
    %v384 = vshrl.u32 %v383, 7
    %v385 = vadd.s32 %v384, 8
    %v386 = vadd.s32 %v384, 16
    %v387 = vadd.s32 %v384, 24
    %v388 = vadd.s32 %v384, 32
    %v389 = vadd.s32 %v384, 40
    %v390 = vadd.s32 %v384, 48
    %v391 = vadd.s32 %v384, 56
    %v392 = vadd.s32 %v384, 64
    %v393 = vadd.s32 %v384, 72
    %v394 = vadd.s32 %v384, 80
    %v395 = vadd.s32 %v384, 88
    %v396 = vadd.s32 %v384, 96
    %v397 = vadd.s32 %v384, 104
    %v398 = vadd.s32 %v384, 112
    %v399 = vadd.s32 %v384, 120
    %vm400 = vcmp.eq.s32.totalorder %v384, %v94
    %vm401 = vcmp.eq.s32.totalorder %v385, %v94
    %vm402 = vcmp.eq.s32.totalorder %v386, %v94
    %vm403 = vcmp.eq.s32.totalorder %v387, %v94
    %vm404 = vcmp.eq.s32.totalorder %v388, %v94
    %vm405 = vcmp.eq.s32.totalorder %v389, %v94
    %vm406 = vcmp.eq.s32.totalorder %v390, %v94
    %vm407 = vcmp.eq.s32.totalorder %v391, %v94
    %vm408 = vcmp.eq.s32.totalorder %v392, %v94
    %vm409 = vcmp.eq.s32.totalorder %v393, %v94
    %vm410 = vcmp.eq.s32.totalorder %v394, %v94
    %vm411 = vcmp.eq.s32.totalorder %v395, %v94
    %vm412 = vcmp.eq.s32.totalorder %v396, %v94
    %vm413 = vcmp.eq.s32.totalorder %v397, %v94
    %vm414 = vcmp.eq.s32.totalorder %v398, %v94
    %vm415 = vcmp.eq.s32.totalorder %v399, %v94
    %v416 = vsel %vm400, 1, 0
    %v417 = vsel %vm401, 1, 0
    %v418 = vsel %vm402, 1, 0
    %v419 = vsel %vm403, 1, 0
    %v420 = vsel %vm404, 1, 0
    %v421 = vsel %vm405, 1, 0
    %v422 = vsel %vm406, 1, 0
    %v423 = vsel %vm407, 1, 0
    %v424 = vsel %vm408, 1, 0
    %v425 = vsel %vm409, 1, 0
    %v426 = vsel %vm410, 1, 0
    %v427 = vsel %vm411, 1, 0
    %v428 = vsel %vm412, 1, 0
    %v429 = vsel %vm413, 1, 0
    %v430 = vsel %vm414, 1, 0
    %v431 = vsel %vm415, 1, 0
    %v432 = vcvt.s32.f32 %v416
    %v433 = vcvt.s32.f32 %v417
    %v434 = vcvt.s32.f32 %v418
    %v435 = vcvt.s32.f32 %v419
    %v436 = vcvt.s32.f32 %v420
    %v437 = vcvt.s32.f32 %v421
    %v438 = vcvt.s32.f32 %v422
    %v439 = vcvt.s32.f32 %v423
    %v440 = vcvt.s32.f32 %v424
    %v441 = vcvt.s32.f32 %v425
    %v442 = vcvt.s32.f32 %v426
    %v443 = vcvt.s32.f32 %v427
    %v444 = vcvt.s32.f32 %v428
    %v445 = vcvt.s32.f32 %v429
    %v446 = vcvt.s32.f32 %v430
    %v447 = vcvt.s32.f32 %v431
    %vm448 = vcmp.ge.s32.totalorder %v384, 16
    %vm449 = vcmp.ge.s32.totalorder %v385, 16
    %vm450 = vcmp.ge.s32.totalorder %v386, 16
    %vm451 = vcmp.ge.s32.totalorder %v387, 16
    %vm452 = vcmp.ge.s32.totalorder %v388, 16
    %vm453 = vcmp.ge.s32.totalorder %v389, 16
    %vm454 = vcmp.ge.s32.totalorder %v390, 16
    %vm455 = vcmp.ge.s32.totalorder %v391, 16
    %vm456 = vcmp.ge.s32.totalorder %v392, 16
    %vm457 = vcmp.ge.s32.totalorder %v393, 16
    %vm458 = vcmp.ge.s32.totalorder %v394, 16
    %vm459 = vcmp.ge.s32.totalorder %v395, 16
    %vm460 = vcmp.ge.s32.totalorder %v396, 16
    %vm461 = vcmp.ge.s32.totalorder %v397, 16
    %vm462 = vcmp.ge.s32.totalorder %v398, 16
    %vm463 = vcmp.ge.s32.totalorder %v399, 16
    %v464 = vsel %vm448, 1, 0
    %v465 = vsel %vm449, 1, 0
    %v466 = vsel %vm450, 1, 0
    %v467 = vsel %vm451, 1, 0
    %v468 = vsel %vm452, 1, 0
    %v469 = vsel %vm453, 1, 0
    %v470 = vsel %vm454, 1, 0
    %v471 = vsel %vm455, 1, 0
    %v472 = vsel %vm456, 1, 0
    %v473 = vsel %vm457, 1, 0
    %v474 = vsel %vm458, 1, 0
    %v475 = vsel %vm459, 1, 0
    %v476 = vsel %vm460, 1, 0
    %v477 = vsel %vm461, 1, 0
    %v478 = vsel %vm462, 1, 0
    %v479 = vsel %vm463, 1, 0
    %vm480 = vcmp.ge.s32.totalorder %v384, 32
    %vm481 = vcmp.ge.s32.totalorder %v385, 32
    %vm482 = vcmp.ge.s32.totalorder %v386, 32
    %vm483 = vcmp.ge.s32.totalorder %v387, 32
    %vm484 = vcmp.ge.s32.totalorder %v388, 32
    %vm485 = vcmp.ge.s32.totalorder %v389, 32
    %vm486 = vcmp.ge.s32.totalorder %v390, 32
    %vm487 = vcmp.ge.s32.totalorder %v391, 32
    %vm488 = vcmp.ge.s32.totalorder %v392, 32
    %vm489 = vcmp.ge.s32.totalorder %v393, 32
    %vm490 = vcmp.ge.s32.totalorder %v394, 32
    %vm491 = vcmp.ge.s32.totalorder %v395, 32
    %vm492 = vcmp.ge.s32.totalorder %v396, 32
    %vm493 = vcmp.ge.s32.totalorder %v397, 32
    %vm494 = vcmp.ge.s32.totalorder %v398, 32
    %vm495 = vcmp.ge.s32.totalorder %v399, 32
    %v496 = vsel %vm480, 1, 0
    %v497 = vsel %vm481, 1, 0
    %v498 = vsel %vm482, 1, 0
    %v499 = vsel %vm483, 1, 0
    %v500 = vsel %vm484, 1, 0
    %v501 = vsel %vm485, 1, 0
    %v502 = vsel %vm486, 1, 0
    %v503 = vsel %vm487, 1, 0
    %v504 = vsel %vm488, 1, 0
    %v505 = vsel %vm489, 1, 0
    %v506 = vsel %vm490, 1, 0
    %v507 = vsel %vm491, 1, 0
    %v508 = vsel %vm492, 1, 0
    %v509 = vsel %vm493, 1, 0
    %v510 = vsel %vm494, 1, 0
    %v511 = vsel %vm495, 1, 0
    %v512 = vadd.s32 %v464, %v496
    %v513 = vadd.s32 %v465, %v497
    %v514 = vadd.s32 %v466, %v498
    %v515 = vadd.s32 %v467, %v499
    %v516 = vadd.s32 %v468, %v500
    %v517 = vadd.s32 %v469, %v501
    %v518 = vadd.s32 %v470, %v502
    %v519 = vadd.s32 %v471, %v503
    %v520 = vadd.s32 %v472, %v504
    %v521 = vadd.s32 %v473, %v505
    %v522 = vadd.s32 %v474, %v506
    %v523 = vadd.s32 %v475, %v507
    %v524 = vadd.s32 %v476, %v508
    %v525 = vadd.s32 %v477, %v509
    %v526 = vadd.s32 %v478, %v510
    %v527 = vadd.s32 %v479, %v511
    %vm528 = vcmp.ge.s32.totalorder %v384, 48
    %vm529 = vcmp.ge.s32.totalorder %v385, 48
    %vm530 = vcmp.ge.s32.totalorder %v386, 48
    %vm531 = vcmp.ge.s32.totalorder %v387, 48
    %vm532 = vcmp.ge.s32.totalorder %v388, 48
    %vm533 = vcmp.ge.s32.totalorder %v389, 48
    %vm534 = vcmp.ge.s32.totalorder %v390, 48
    %vm535 = vcmp.ge.s32.totalorder %v391, 48
    %vm536 = vcmp.ge.s32.totalorder %v392, 48
    %vm537 = vcmp.ge.s32.totalorder %v393, 48
    %vm538 = vcmp.ge.s32.totalorder %v394, 48
    %vm539 = vcmp.ge.s32.totalorder %v395, 48
    %vm540 = vcmp.ge.s32.totalorder %v396, 48
    %vm541 = vcmp.ge.s32.totalorder %v397, 48
    %vm542 = vcmp.ge.s32.totalorder %v398, 48
    %vm543 = vcmp.ge.s32.totalorder %v399, 48
    %v544 = vsel %vm528, 1, 0
    %v545 = vsel %vm529, 1, 0
    %v546 = vsel %vm530, 1, 0
    %v547 = vsel %vm531, 1, 0
    %v548 = vsel %vm532, 1, 0
    %v549 = vsel %vm533, 1, 0
    %v550 = vsel %vm534, 1, 0
    %v551 = vsel %vm535, 1, 0
    %v552 = vsel %vm536, 1, 0
    %v553 = vsel %vm537, 1, 0
    %v554 = vsel %vm538, 1, 0
    %v555 = vsel %vm539, 1, 0
    %v556 = vsel %vm540, 1, 0
    %v557 = vsel %vm541, 1, 0
    %v558 = vsel %vm542, 1, 0
    %v559 = vsel %vm543, 1, 0
    %v560 = vadd.s32 %v512, %v544
    %v561 = vadd.s32 %v513, %v545
    %v562 = vadd.s32 %v514, %v546
    %v563 = vadd.s32 %v515, %v547
    %v564 = vadd.s32 %v516, %v548
    %v565 = vadd.s32 %v517, %v549
    %v566 = vadd.s32 %v518, %v550
    %v567 = vadd.s32 %v519, %v551
    %v568 = vadd.s32 %v520, %v552
    %v569 = vadd.s32 %v521, %v553
    %v570 = vadd.s32 %v522, %v554
    %v571 = vadd.s32 %v523, %v555
    %v572 = vadd.s32 %v524, %v556
    %v573 = vadd.s32 %v525, %v557
    %v574 = vadd.s32 %v526, %v558
    %v575 = vadd.s32 %v527, %v559
    %vm576 = vcmp.ge.s32.totalorder %v384, 64
    %vm577 = vcmp.ge.s32.totalorder %v385, 64
    %vm578 = vcmp.ge.s32.totalorder %v386, 64
    %vm579 = vcmp.ge.s32.totalorder %v387, 64
    %vm580 = vcmp.ge.s32.totalorder %v388, 64
    %vm581 = vcmp.ge.s32.totalorder %v389, 64
    %vm582 = vcmp.ge.s32.totalorder %v390, 64
    %vm583 = vcmp.ge.s32.totalorder %v391, 64
    %vm584 = vcmp.ge.s32.totalorder %v392, 64
    %vm585 = vcmp.ge.s32.totalorder %v393, 64
    %vm586 = vcmp.ge.s32.totalorder %v394, 64
    %vm587 = vcmp.ge.s32.totalorder %v395, 64
    %vm588 = vcmp.ge.s32.totalorder %v396, 64
    %vm589 = vcmp.ge.s32.totalorder %v397, 64
    %vm590 = vcmp.ge.s32.totalorder %v398, 64
    %vm591 = vcmp.ge.s32.totalorder %v399, 64
    %v592 = vsel %vm576, 1, 0
    %v593 = vsel %vm577, 1, 0
    %v594 = vsel %vm578, 1, 0
    %v595 = vsel %vm579, 1, 0
    %v596 = vsel %vm580, 1, 0
    %v597 = vsel %vm581, 1, 0
    %v598 = vsel %vm582, 1, 0
    %v599 = vsel %vm583, 1, 0
    %v600 = vsel %vm584, 1, 0
    %v601 = vsel %vm585, 1, 0
    %v602 = vsel %vm586, 1, 0
    %v603 = vsel %vm587, 1, 0
    %v604 = vsel %vm588, 1, 0
    %v605 = vsel %vm589, 1, 0
    %v606 = vsel %vm590, 1, 0
    %v607 = vsel %vm591, 1, 0
    %v608 = vadd.s32 %v560, %v592
    %v609 = vadd.s32 %v561, %v593
    %v610 = vadd.s32 %v562, %v594
    %v611 = vadd.s32 %v563, %v595
    %v612 = vadd.s32 %v564, %v596
    %v613 = vadd.s32 %v565, %v597
    %v614 = vadd.s32 %v566, %v598
    %v615 = vadd.s32 %v567, %v599
    %v616 = vadd.s32 %v568, %v600
    %v617 = vadd.s32 %v569, %v601
    %v618 = vadd.s32 %v570, %v602
    %v619 = vadd.s32 %v571, %v603
    %v620 = vadd.s32 %v572, %v604
    %v621 = vadd.s32 %v573, %v605
    %v622 = vadd.s32 %v574, %v606
    %v623 = vadd.s32 %v575, %v607
    %vm624 = vcmp.ge.s32.totalorder %v384, 80
    %vm625 = vcmp.ge.s32.totalorder %v385, 80
    %vm626 = vcmp.ge.s32.totalorder %v386, 80
    %vm627 = vcmp.ge.s32.totalorder %v387, 80
    %vm628 = vcmp.ge.s32.totalorder %v388, 80
    %vm629 = vcmp.ge.s32.totalorder %v389, 80
    %vm630 = vcmp.ge.s32.totalorder %v390, 80
    %vm631 = vcmp.ge.s32.totalorder %v391, 80
    %vm632 = vcmp.ge.s32.totalorder %v392, 80
    %vm633 = vcmp.ge.s32.totalorder %v393, 80
    %vm634 = vcmp.ge.s32.totalorder %v394, 80
    %vm635 = vcmp.ge.s32.totalorder %v395, 80
    %vm636 = vcmp.ge.s32.totalorder %v396, 80
    %vm637 = vcmp.ge.s32.totalorder %v397, 80
    %vm638 = vcmp.ge.s32.totalorder %v398, 80
    %vm639 = vcmp.ge.s32.totalorder %v399, 80
    %v640 = vsel %vm624, 1, 0
    %v641 = vsel %vm625, 1, 0
    %v642 = vsel %vm626, 1, 0
    %v643 = vsel %vm627, 1, 0
    %v644 = vsel %vm628, 1, 0
    %v645 = vsel %vm629, 1, 0
    %v646 = vsel %vm630, 1, 0
    %v647 = vsel %vm631, 1, 0
    %v648 = vsel %vm632, 1, 0
    %v649 = vsel %vm633, 1, 0
    %v650 = vsel %vm634, 1, 0
    %v651 = vsel %vm635, 1, 0
    %v652 = vsel %vm636, 1, 0
    %v653 = vsel %vm637, 1, 0
    %v654 = vsel %vm638, 1, 0
    %v655 = vsel %vm639, 1, 0
    %v656 = vadd.s32 %v608, %v640
    %v657 = vadd.s32 %v609, %v641
    %v658 = vadd.s32 %v610, %v642
    %v659 = vadd.s32 %v611, %v643
    %v660 = vadd.s32 %v612, %v644
    %v661 = vadd.s32 %v613, %v645
    %v662 = vadd.s32 %v614, %v646
    %v663 = vadd.s32 %v615, %v647
    %v664 = vadd.s32 %v616, %v648
    %v665 = vadd.s32 %v617, %v649
    %v666 = vadd.s32 %v618, %v650
    %v667 = vadd.s32 %v619, %v651
    %v668 = vadd.s32 %v620, %v652
    %v669 = vadd.s32 %v621, %v653
    %v670 = vadd.s32 %v622, %v654
    %v671 = vadd.s32 %v623, %v655
    %vm672 = vcmp.ge.s32.totalorder %v384, 96
    %vm673 = vcmp.ge.s32.totalorder %v385, 96
    %vm674 = vcmp.ge.s32.totalorder %v386, 96
    %vm675 = vcmp.ge.s32.totalorder %v387, 96
    %vm676 = vcmp.ge.s32.totalorder %v388, 96
    %vm677 = vcmp.ge.s32.totalorder %v389, 96
    %vm678 = vcmp.ge.s32.totalorder %v390, 96
    %vm679 = vcmp.ge.s32.totalorder %v391, 96
    %vm680 = vcmp.ge.s32.totalorder %v392, 96
    %vm681 = vcmp.ge.s32.totalorder %v393, 96
    %vm682 = vcmp.ge.s32.totalorder %v394, 96
    %vm683 = vcmp.ge.s32.totalorder %v395, 96
    %vm684 = vcmp.ge.s32.totalorder %v396, 96
    %vm685 = vcmp.ge.s32.totalorder %v397, 96
    %vm686 = vcmp.ge.s32.totalorder %v398, 96
    %vm687 = vcmp.ge.s32.totalorder %v399, 96
    %v688 = vsel %vm672, 1, 0
    %v689 = vsel %vm673, 1, 0
    %v690 = vsel %vm674, 1, 0
    %v691 = vsel %vm675, 1, 0
    %v692 = vsel %vm676, 1, 0
    %v693 = vsel %vm677, 1, 0
    %v694 = vsel %vm678, 1, 0
    %v695 = vsel %vm679, 1, 0
    %v696 = vsel %vm680, 1, 0
    %v697 = vsel %vm681, 1, 0
    %v698 = vsel %vm682, 1, 0
    %v699 = vsel %vm683, 1, 0
    %v700 = vsel %vm684, 1, 0
    %v701 = vsel %vm685, 1, 0
    %v702 = vsel %vm686, 1, 0
    %v703 = vsel %vm687, 1, 0
    %v704 = vadd.s32 %v656, %v688
    %v705 = vadd.s32 %v657, %v689
    %v706 = vadd.s32 %v658, %v690
    %v707 = vadd.s32 %v659, %v691
    %v708 = vadd.s32 %v660, %v692
    %v709 = vadd.s32 %v661, %v693
    %v710 = vadd.s32 %v662, %v694
    %v711 = vadd.s32 %v663, %v695
    %v712 = vadd.s32 %v664, %v696
    %v713 = vadd.s32 %v665, %v697
    %v714 = vadd.s32 %v666, %v698
    %v715 = vadd.s32 %v667, %v699
    %v716 = vadd.s32 %v668, %v700
    %v717 = vadd.s32 %v669, %v701
    %v718 = vadd.s32 %v670, %v702
    %v719 = vadd.s32 %v671, %v703
    %vm720 = vcmp.ge.s32.totalorder %v384, 112
    %vm721 = vcmp.ge.s32.totalorder %v385, 112
    %vm722 = vcmp.ge.s32.totalorder %v386, 112
    %vm723 = vcmp.ge.s32.totalorder %v387, 112
    %vm724 = vcmp.ge.s32.totalorder %v388, 112
    %vm725 = vcmp.ge.s32.totalorder %v389, 112
    %vm726 = vcmp.ge.s32.totalorder %v390, 112
    %vm727 = vcmp.ge.s32.totalorder %v391, 112
    %vm728 = vcmp.ge.s32.totalorder %v392, 112
    %vm729 = vcmp.ge.s32.totalorder %v393, 112
    %vm730 = vcmp.ge.s32.totalorder %v394, 112
    %vm731 = vcmp.ge.s32.totalorder %v395, 112
    %vm732 = vcmp.ge.s32.totalorder %v396, 112
    %vm733 = vcmp.ge.s32.totalorder %v397, 112
    %vm734 = vcmp.ge.s32.totalorder %v398, 112
    %vm735 = vcmp.ge.s32.totalorder %v399, 112
    %v736 = vsel %vm720, 1, 0
    %v737 = vsel %vm721, 1, 0
    %v738 = vsel %vm722, 1, 0
    %v739 = vsel %vm723, 1, 0
    %v740 = vsel %vm724, 1, 0
    %v741 = vsel %vm725, 1, 0
    %v742 = vsel %vm726, 1, 0
    %v743 = vsel %vm727, 1, 0
    %v744 = vsel %vm728, 1, 0
    %v745 = vsel %vm729, 1, 0
    %v746 = vsel %vm730, 1, 0
    %v747 = vsel %vm731, 1, 0
    %v748 = vsel %vm732, 1, 0
    %v749 = vsel %vm733, 1, 0
    %v750 = vsel %vm734, 1, 0
    %v751 = vsel %vm735, 1, 0
    %v752 = vadd.s32 %v704, %v736
    %v753 = vadd.s32 %v705, %v737
    %v754 = vadd.s32 %v706, %v738
    %v755 = vadd.s32 %v707, %v739
    %v756 = vadd.s32 %v708, %v740
    %v757 = vadd.s32 %v709, %v741
    %v758 = vadd.s32 %v710, %v742
    %v759 = vadd.s32 %v711, %v743
    %v760 = vadd.s32 %v712, %v744
    %v761 = vadd.s32 %v713, %v745
    %v762 = vadd.s32 %v714, %v746
    %v763 = vadd.s32 %v715, %v747
    %v764 = vadd.s32 %v716, %v748
    %v765 = vadd.s32 %v717, %v749
    %v766 = vadd.s32 %v718, %v750
    %v767 = vadd.s32 %v719, %v751
    %v768 = vmul.u32 %v752, 16
    %v769 = vmul.u32 %v753, 16
    %v770 = vmul.u32 %v754, 16
    %v771 = vmul.u32 %v755, 16
    %v772 = vmul.u32 %v756, 16
    %v773 = vmul.u32 %v757, 16
    %v774 = vmul.u32 %v758, 16
    %v775 = vmul.u32 %v759, 16
    %v776 = vmul.u32 %v760, 16
    %v777 = vmul.u32 %v761, 16
    %v778 = vmul.u32 %v762, 16
    %v779 = vmul.u32 %v763, 16
    %v780 = vmul.u32 %v764, 16
    %v781 = vmul.u32 %v765, 16
    %v782 = vmul.u32 %v766, 16
    %v783 = vmul.u32 %v767, 16
    %vm784 = vcmp.ge.s32.totalorder %v94, %v768
    %vm785 = vcmp.ge.s32.totalorder %v94, %v769
    %vm786 = vcmp.ge.s32.totalorder %v94, %v770
    %vm787 = vcmp.ge.s32.totalorder %v94, %v771
    %vm788 = vcmp.ge.s32.totalorder %v94, %v772
    %vm789 = vcmp.ge.s32.totalorder %v94, %v773
    %vm790 = vcmp.ge.s32.totalorder %v94, %v774
    %vm791 = vcmp.ge.s32.totalorder %v94, %v775
    %vm792 = vcmp.ge.s32.totalorder %v94, %v776
    %vm793 = vcmp.ge.s32.totalorder %v94, %v777
    %vm794 = vcmp.ge.s32.totalorder %v94, %v778
    %vm795 = vcmp.ge.s32.totalorder %v94, %v779
    %vm796 = vcmp.ge.s32.totalorder %v94, %v780
    %vm797 = vcmp.ge.s32.totalorder %v94, %v781
    %vm798 = vcmp.ge.s32.totalorder %v94, %v782
    %vm799 = vcmp.ge.s32.totalorder %v94, %v783
    %v800 = vadd.s32 %v768, 16
    %v801 = vadd.s32 %v769, 16
    %v802 = vadd.s32 %v770, 16
    %v803 = vadd.s32 %v771, 16
    %v804 = vadd.s32 %v772, 16
    %v805 = vadd.s32 %v773, 16
    %v806 = vadd.s32 %v774, 16
    %v807 = vadd.s32 %v775, 16
    %v808 = vadd.s32 %v776, 16
    %v809 = vadd.s32 %v777, 16
    %v810 = vadd.s32 %v778, 16
    %v811 = vadd.s32 %v779, 16
    %v812 = vadd.s32 %v780, 16
    %v813 = vadd.s32 %v781, 16
    %v814 = vadd.s32 %v782, 16
    %v815 = vadd.s32 %v783, 16
    %vm816 = vcmp.lt.s32.totalorder %v94, %v800
    %vm817 = vcmp.lt.s32.totalorder %v94, %v801
    %vm818 = vcmp.lt.s32.totalorder %v94, %v802
    %vm819 = vcmp.lt.s32.totalorder %v94, %v803
    %vm820 = vcmp.lt.s32.totalorder %v94, %v804
    %vm821 = vcmp.lt.s32.totalorder %v94, %v805
    %vm822 = vcmp.lt.s32.totalorder %v94, %v806
    %vm823 = vcmp.lt.s32.totalorder %v94, %v807
    %vm824 = vcmp.lt.s32.totalorder %v94, %v808
    %vm825 = vcmp.lt.s32.totalorder %v94, %v809
    %vm826 = vcmp.lt.s32.totalorder %v94, %v810
    %vm827 = vcmp.lt.s32.totalorder %v94, %v811
    %vm828 = vcmp.lt.s32.totalorder %v94, %v812
    %vm829 = vcmp.lt.s32.totalorder %v94, %v813
    %vm830 = vcmp.lt.s32.totalorder %v94, %v814
    %vm831 = vcmp.lt.s32.totalorder %v94, %v815
    %vm832 = vmand %vm784, %vm816
    %vm833 = vmand %vm785, %vm817
    %vm834 = vmand %vm786, %vm818
    %vm835 = vmand %vm787, %vm819
    %vm836 = vmand %vm788, %vm820
    %vm837 = vmand %vm789, %vm821
    %vm838 = vmand %vm790, %vm822
    %vm839 = vmand %vm791, %vm823
    %vm840 = vmand %vm792, %vm824
    %vm841 = vmand %vm793, %vm825
    %vm842 = vmand %vm794, %vm826
    %vm843 = vmand %vm795, %vm827
    %vm844 = vmand %vm796, %vm828
    %vm845 = vmand %vm797, %vm829
    %vm846 = vmand %vm798, %vm830
    %vm847 = vmand %vm799, %vm831
    %v848 = vmul.f32 %v367, %v432
    %v849 = vmul.f32 %v368, %v433
    %v850 = vmul.f32 %v369, %v434
    %v851 = vmul.f32 %v370, %v435
    %v852 = vmul.f32 %v371, %v436
    %v853 = vmul.f32 %v372, %v437
    %v854 = vmul.f32 %v373, %v438
    %v855 = vmul.f32 %v374, %v439
    %v856 = vmul.f32 %v375, %v440
    %v857 = vmul.f32 %v376, %v441
    %v858 = vmul.f32 %v377, %v442
    %v859 = vmul.f32 %v378, %v443
    %v860 = vmul.f32 %v379, %v444
    %v861 = vmul.f32 %v380, %v445
    %v862 = vmul.f32 %v381, %v446
    %v863 = vmul.f32 %v382, %v447
    %v864 = vadd.f32 %v848, %v849
    %v865 = vadd.f32 %v864, %v850
    %v866 = vadd.f32 %v865, %v851
    %v867 = vadd.f32 %v866, %v852
    %v868 = vadd.f32 %v867, %v853
    %v869 = vadd.f32 %v868, %v854
    %v870 = vadd.f32 %v869, %v855
    %v871 = vadd.f32 %v870, %v856
    %v872 = vadd.f32 %v871, %v857
    %v873 = vadd.f32 %v872, %v858
    %v874 = vadd.f32 %v873, %v859
    %v875 = vadd.f32 %v874, %v860
    %v876 = vadd.f32 %v875, %v861
    %v877 = vadd.f32 %v876, %v862
    %v878 = vadd.f32 %v877, %v863
    %v879 = vrot.slane %v878, 4
    %v880 = vadd.f32 %v878, %v879
    %v881 = vrot.slane %v880, 2
    %v882 = vadd.f32 %v880, %v881
    %v883 = vrot.slane %v882, 1
    %v884 = vadd.f32 %v882, %v883
    %vm885 = vcmp.eq.f32.partialorder %v367, %v884
    %vm886 = vcmp.eq.f32.partialorder %v368, %v884
    %vm887 = vcmp.eq.f32.partialorder %v369, %v884
    %vm888 = vcmp.eq.f32.partialorder %v370, %v884
    %vm889 = vcmp.eq.f32.partialorder %v371, %v884
    %vm890 = vcmp.eq.f32.partialorder %v372, %v884
    %vm891 = vcmp.eq.f32.partialorder %v373, %v884
    %vm892 = vcmp.eq.f32.partialorder %v374, %v884
    %vm893 = vcmp.eq.f32.partialorder %v375, %v884
    %vm894 = vcmp.eq.f32.partialorder %v376, %v884
    %vm895 = vcmp.eq.f32.partialorder %v377, %v884
    %vm896 = vcmp.eq.f32.partialorder %v378, %v884
    %vm897 = vcmp.eq.f32.partialorder %v379, %v884
    %vm898 = vcmp.eq.f32.partialorder %v380, %v884
    %vm899 = vcmp.eq.f32.partialorder %v381, %v884
    %vm900 = vcmp.eq.f32.partialorder %v382, %v884
    %v901 = vsel %vm885, 1, 0
    %v902 = vsel %vm886, 1, 0
    %v903 = vsel %vm887, 1, 0
    %v904 = vsel %vm888, 1, 0
    %v905 = vsel %vm889, 1, 0
    %v906 = vsel %vm890, 1, 0
    %v907 = vsel %vm891, 1, 0
    %v908 = vsel %vm892, 1, 0
    %v909 = vsel %vm893, 1, 0
    %v910 = vsel %vm894, 1, 0
    %v911 = vsel %vm895, 1, 0
    %v912 = vsel %vm896, 1, 0
    %v913 = vsel %vm897, 1, 0
    %v914 = vsel %vm898, 1, 0
    %v915 = vsel %vm899, 1, 0
    %v916 = vsel %vm900, 1, 0
    %v917 = vcvt.s32.f32 %v901
    %v918 = vcvt.s32.f32 %v902
    %v919 = vcvt.s32.f32 %v903
    %v920 = vcvt.s32.f32 %v904
    %v921 = vcvt.s32.f32 %v905
    %v922 = vcvt.s32.f32 %v906
    %v923 = vcvt.s32.f32 %v907
    %v924 = vcvt.s32.f32 %v908
    %v925 = vcvt.s32.f32 %v909
    %v926 = vcvt.s32.f32 %v910
    %v927 = vcvt.s32.f32 %v911
    %v928 = vcvt.s32.f32 %v912
    %v929 = vcvt.s32.f32 %v913
    %v930 = vcvt.s32.f32 %v914
    %v931 = vcvt.s32.f32 %v915
    %v932 = vcvt.s32.f32 %v916
    %vm933 = vcmp.eq.s32.totalorder %v94, %v768
    %vm934 = vcmp.eq.s32.totalorder %v94, %v769
    %vm935 = vcmp.eq.s32.totalorder %v94, %v770
    %vm936 = vcmp.eq.s32.totalorder %v94, %v771
    %vm937 = vcmp.eq.s32.totalorder %v94, %v772
    %vm938 = vcmp.eq.s32.totalorder %v94, %v773
    %vm939 = vcmp.eq.s32.totalorder %v94, %v774
    %vm940 = vcmp.eq.s32.totalorder %v94, %v775
    %vm941 = vcmp.eq.s32.totalorder %v94, %v776
    %vm942 = vcmp.eq.s32.totalorder %v94, %v777
    %vm943 = vcmp.eq.s32.totalorder %v94, %v778
    %vm944 = vcmp.eq.s32.totalorder %v94, %v779
    %vm945 = vcmp.eq.s32.totalorder %v94, %v780
    %vm946 = vcmp.eq.s32.totalorder %v94, %v781
    %vm947 = vcmp.eq.s32.totalorder %v94, %v782
    %vm948 = vcmp.eq.s32.totalorder %v94, %v783
    %v949 = vsel %vm933, %v917, 0.0
    %v950 = vsel %vm934, %v918, 0.0
    %v951 = vsel %vm935, %v919, 0.0
    %v952 = vsel %vm936, %v920, 0.0
    %v953 = vsel %vm937, %v921, 0.0
    %v954 = vsel %vm938, %v922, 0.0
    %v955 = vsel %vm939, %v923, 0.0
    %v956 = vsel %vm940, %v924, 0.0
    %v957 = vsel %vm941, %v925, 0.0
    %v958 = vsel %vm942, %v926, 0.0
    %v959 = vsel %vm943, %v927, 0.0
    %v960 = vsel %vm944, %v928, 0.0
    %v961 = vsel %vm945, %v929, 0.0
    %v962 = vsel %vm946, %v930, 0.0
    %v963 = vsel %vm947, %v931, 0.0
    %v964 = vsel %vm948, %v932, 0.0
    %965 = vmax.xlane.f32.xlu0 %v949
    %v966 = vpop.xlane.xlu0 %965
    %967 = vmax.xlane.f32.xlu0 %v950
    %v968 = vpop.xlane.xlu0 %967
    %969 = vmax.xlane.f32.xlu0 %v951
    %v970 = vpop.xlane.xlu0 %969
    %971 = vmax.xlane.f32.xlu0 %v952
    %v972 = vpop.xlane.xlu0 %971
    %973 = vmax.xlane.f32.xlu0 %v953
    %v974 = vpop.xlane.xlu0 %973
    %975 = vmax.xlane.f32.xlu0 %v954
    %v976 = vpop.xlane.xlu0 %975
    %977 = vmax.xlane.f32.xlu0 %v955
    %v978 = vpop.xlane.xlu0 %977
    %979 = vmax.xlane.f32.xlu0 %v956
    %v980 = vpop.xlane.xlu0 %979
    %981 = vmax.xlane.f32.xlu0 %v957
    %v982 = vpop.xlane.xlu0 %981
    %983 = vmax.xlane.f32.xlu0 %v958
    %v984 = vpop.xlane.xlu0 %983
    %985 = vmax.xlane.f32.xlu0 %v959
    %v986 = vpop.xlane.xlu0 %985
    %987 = vmax.xlane.f32.xlu0 %v960
    %v988 = vpop.xlane.xlu0 %987
    %989 = vmax.xlane.f32.xlu0 %v961
    %v990 = vpop.xlane.xlu0 %989
    %991 = vmax.xlane.f32.xlu0 %v962
    %v992 = vpop.xlane.xlu0 %991
    %993 = vmax.xlane.f32.xlu0 %v963
    %v994 = vpop.xlane.xlu0 %993
    %995 = vmax.xlane.f32.xlu0 %v964
    %v996 = vpop.xlane.xlu0 %995
    %v997 = vadd.s32 %v768, 1
    %v998 = vadd.s32 %v769, 1
    %v999 = vadd.s32 %v770, 1
    %v1000 = vadd.s32 %v771, 1
    %v1001 = vadd.s32 %v772, 1
    %v1002 = vadd.s32 %v773, 1
    %v1003 = vadd.s32 %v774, 1
    %v1004 = vadd.s32 %v775, 1
    %v1005 = vadd.s32 %v776, 1
    %v1006 = vadd.s32 %v777, 1
    %v1007 = vadd.s32 %v778, 1
    %v1008 = vadd.s32 %v779, 1
    %v1009 = vadd.s32 %v780, 1
    %v1010 = vadd.s32 %v781, 1
    %v1011 = vadd.s32 %v782, 1
    %v1012 = vadd.s32 %v783, 1
    %vm1013 = vcmp.eq.s32.totalorder %v94, %v997
    %vm1014 = vcmp.eq.s32.totalorder %v94, %v998
    %vm1015 = vcmp.eq.s32.totalorder %v94, %v999
    %vm1016 = vcmp.eq.s32.totalorder %v94, %v1000
    %vm1017 = vcmp.eq.s32.totalorder %v94, %v1001
    %vm1018 = vcmp.eq.s32.totalorder %v94, %v1002
    %vm1019 = vcmp.eq.s32.totalorder %v94, %v1003
    %vm1020 = vcmp.eq.s32.totalorder %v94, %v1004
    %vm1021 = vcmp.eq.s32.totalorder %v94, %v1005
    %vm1022 = vcmp.eq.s32.totalorder %v94, %v1006
    %vm1023 = vcmp.eq.s32.totalorder %v94, %v1007
    %vm1024 = vcmp.eq.s32.totalorder %v94, %v1008
    %vm1025 = vcmp.eq.s32.totalorder %v94, %v1009
    %vm1026 = vcmp.eq.s32.totalorder %v94, %v1010
    %vm1027 = vcmp.eq.s32.totalorder %v94, %v1011
    %vm1028 = vcmp.eq.s32.totalorder %v94, %v1012
    %v1029 = vsel %vm1013, %v917, 0.0
    %v1030 = vsel %vm1014, %v918, 0.0
    %v1031 = vsel %vm1015, %v919, 0.0
    %v1032 = vsel %vm1016, %v920, 0.0
    %v1033 = vsel %vm1017, %v921, 0.0
    %v1034 = vsel %vm1018, %v922, 0.0
    %v1035 = vsel %vm1019, %v923, 0.0
    %v1036 = vsel %vm1020, %v924, 0.0
    %v1037 = vsel %vm1021, %v925, 0.0
    %v1038 = vsel %vm1022, %v926, 0.0
    %v1039 = vsel %vm1023, %v927, 0.0
    %v1040 = vsel %vm1024, %v928, 0.0
    %v1041 = vsel %vm1025, %v929, 0.0
    %v1042 = vsel %vm1026, %v930, 0.0
    %v1043 = vsel %vm1027, %v931, 0.0
    %v1044 = vsel %vm1028, %v932, 0.0
    %1045 = vmax.xlane.f32.xlu0 %v1029
    %v1046 = vpop.xlane.xlu0 %1045
    %1047 = vmax.xlane.f32.xlu0 %v1030
    %v1048 = vpop.xlane.xlu0 %1047
    %1049 = vmax.xlane.f32.xlu0 %v1031
    %v1050 = vpop.xlane.xlu0 %1049
    %1051 = vmax.xlane.f32.xlu0 %v1032
    %v1052 = vpop.xlane.xlu0 %1051
    %1053 = vmax.xlane.f32.xlu0 %v1033
    %v1054 = vpop.xlane.xlu0 %1053
    %1055 = vmax.xlane.f32.xlu0 %v1034
    %v1056 = vpop.xlane.xlu0 %1055
    %1057 = vmax.xlane.f32.xlu0 %v1035
    %v1058 = vpop.xlane.xlu0 %1057
    %1059 = vmax.xlane.f32.xlu0 %v1036
    %v1060 = vpop.xlane.xlu0 %1059
    %1061 = vmax.xlane.f32.xlu0 %v1037
    %v1062 = vpop.xlane.xlu0 %1061
    %1063 = vmax.xlane.f32.xlu0 %v1038
    %v1064 = vpop.xlane.xlu0 %1063
    %1065 = vmax.xlane.f32.xlu0 %v1039
    %v1066 = vpop.xlane.xlu0 %1065
    %1067 = vmax.xlane.f32.xlu0 %v1040
    %v1068 = vpop.xlane.xlu0 %1067
    %1069 = vmax.xlane.f32.xlu0 %v1041
    %v1070 = vpop.xlane.xlu0 %1069
    %1071 = vmax.xlane.f32.xlu0 %v1042
    %v1072 = vpop.xlane.xlu0 %1071
    %1073 = vmax.xlane.f32.xlu0 %v1043
    %v1074 = vpop.xlane.xlu0 %1073
    %1075 = vmax.xlane.f32.xlu0 %v1044
    %v1076 = vpop.xlane.xlu0 %1075
    %v1077 = vadd.s32 %v768, 2
    %v1078 = vadd.s32 %v769, 2
    %v1079 = vadd.s32 %v770, 2
    %v1080 = vadd.s32 %v771, 2
    %v1081 = vadd.s32 %v772, 2
    %v1082 = vadd.s32 %v773, 2
    %v1083 = vadd.s32 %v774, 2
    %v1084 = vadd.s32 %v775, 2
    %v1085 = vadd.s32 %v776, 2
    %v1086 = vadd.s32 %v777, 2
    %v1087 = vadd.s32 %v778, 2
    %v1088 = vadd.s32 %v779, 2
    %v1089 = vadd.s32 %v780, 2
    %v1090 = vadd.s32 %v781, 2
    %v1091 = vadd.s32 %v782, 2
    %v1092 = vadd.s32 %v783, 2
    %vm1093 = vcmp.eq.s32.totalorder %v94, %v1077
    %vm1094 = vcmp.eq.s32.totalorder %v94, %v1078
    %vm1095 = vcmp.eq.s32.totalorder %v94, %v1079
    %vm1096 = vcmp.eq.s32.totalorder %v94, %v1080
    %vm1097 = vcmp.eq.s32.totalorder %v94, %v1081
    %vm1098 = vcmp.eq.s32.totalorder %v94, %v1082
    %vm1099 = vcmp.eq.s32.totalorder %v94, %v1083
    %vm1100 = vcmp.eq.s32.totalorder %v94, %v1084
    %vm1101 = vcmp.eq.s32.totalorder %v94, %v1085
    %vm1102 = vcmp.eq.s32.totalorder %v94, %v1086
    %vm1103 = vcmp.eq.s32.totalorder %v94, %v1087
    %vm1104 = vcmp.eq.s32.totalorder %v94, %v1088
    %vm1105 = vcmp.eq.s32.totalorder %v94, %v1089
    %vm1106 = vcmp.eq.s32.totalorder %v94, %v1090
    %vm1107 = vcmp.eq.s32.totalorder %v94, %v1091
    %vm1108 = vcmp.eq.s32.totalorder %v94, %v1092
    %v1109 = vsel %vm1093, %v917, 0.0
    %v1110 = vsel %vm1094, %v918, 0.0
    %v1111 = vsel %vm1095, %v919, 0.0
    %v1112 = vsel %vm1096, %v920, 0.0
    %v1113 = vsel %vm1097, %v921, 0.0
    %v1114 = vsel %vm1098, %v922, 0.0
    %v1115 = vsel %vm1099, %v923, 0.0
    %v1116 = vsel %vm1100, %v924, 0.0
    %v1117 = vsel %vm1101, %v925, 0.0
    %v1118 = vsel %vm1102, %v926, 0.0
    %v1119 = vsel %vm1103, %v927, 0.0
    %v1120 = vsel %vm1104, %v928, 0.0
    %v1121 = vsel %vm1105, %v929, 0.0
    %v1122 = vsel %vm1106, %v930, 0.0
    %v1123 = vsel %vm1107, %v931, 0.0
    %v1124 = vsel %vm1108, %v932, 0.0
    %1125 = vmax.xlane.f32.xlu0 %v1109
    %v1126 = vpop.xlane.xlu0 %1125
    %1127 = vmax.xlane.f32.xlu0 %v1110
    %v1128 = vpop.xlane.xlu0 %1127
    %1129 = vmax.xlane.f32.xlu0 %v1111
    %v1130 = vpop.xlane.xlu0 %1129
    %1131 = vmax.xlane.f32.xlu0 %v1112
    %v1132 = vpop.xlane.xlu0 %1131
    %1133 = vmax.xlane.f32.xlu0 %v1113
    %v1134 = vpop.xlane.xlu0 %1133
    %1135 = vmax.xlane.f32.xlu0 %v1114
    %v1136 = vpop.xlane.xlu0 %1135
    %1137 = vmax.xlane.f32.xlu0 %v1115
    %v1138 = vpop.xlane.xlu0 %1137
    %1139 = vmax.xlane.f32.xlu0 %v1116
    %v1140 = vpop.xlane.xlu0 %1139
    %1141 = vmax.xlane.f32.xlu0 %v1117
    %v1142 = vpop.xlane.xlu0 %1141
    %1143 = vmax.xlane.f32.xlu0 %v1118
    %v1144 = vpop.xlane.xlu0 %1143
    %1145 = vmax.xlane.f32.xlu0 %v1119
    %v1146 = vpop.xlane.xlu0 %1145
    %1147 = vmax.xlane.f32.xlu0 %v1120
    %v1148 = vpop.xlane.xlu0 %1147
    %1149 = vmax.xlane.f32.xlu0 %v1121
    %v1150 = vpop.xlane.xlu0 %1149
    %1151 = vmax.xlane.f32.xlu0 %v1122
    %v1152 = vpop.xlane.xlu0 %1151
    %1153 = vmax.xlane.f32.xlu0 %v1123
    %v1154 = vpop.xlane.xlu0 %1153
    %1155 = vmax.xlane.f32.xlu0 %v1124
    %v1156 = vpop.xlane.xlu0 %1155
    %v1157 = vadd.s32 %v768, 3
    %v1158 = vadd.s32 %v769, 3
    %v1159 = vadd.s32 %v770, 3
    %v1160 = vadd.s32 %v771, 3
    %v1161 = vadd.s32 %v772, 3
    %v1162 = vadd.s32 %v773, 3
    %v1163 = vadd.s32 %v774, 3
    %v1164 = vadd.s32 %v775, 3
    %v1165 = vadd.s32 %v776, 3
    %v1166 = vadd.s32 %v777, 3
    %v1167 = vadd.s32 %v778, 3
    %v1168 = vadd.s32 %v779, 3
    %v1169 = vadd.s32 %v780, 3
    %v1170 = vadd.s32 %v781, 3
    %v1171 = vadd.s32 %v782, 3
    %v1172 = vadd.s32 %v783, 3
    %vm1173 = vcmp.eq.s32.totalorder %v94, %v1157
    %vm1174 = vcmp.eq.s32.totalorder %v94, %v1158
    %vm1175 = vcmp.eq.s32.totalorder %v94, %v1159
    %vm1176 = vcmp.eq.s32.totalorder %v94, %v1160
    %vm1177 = vcmp.eq.s32.totalorder %v94, %v1161
    %vm1178 = vcmp.eq.s32.totalorder %v94, %v1162
    %vm1179 = vcmp.eq.s32.totalorder %v94, %v1163
    %vm1180 = vcmp.eq.s32.totalorder %v94, %v1164
    %vm1181 = vcmp.eq.s32.totalorder %v94, %v1165
    %vm1182 = vcmp.eq.s32.totalorder %v94, %v1166
    %vm1183 = vcmp.eq.s32.totalorder %v94, %v1167
    %vm1184 = vcmp.eq.s32.totalorder %v94, %v1168
    %vm1185 = vcmp.eq.s32.totalorder %v94, %v1169
    %vm1186 = vcmp.eq.s32.totalorder %v94, %v1170
    %vm1187 = vcmp.eq.s32.totalorder %v94, %v1171
    %vm1188 = vcmp.eq.s32.totalorder %v94, %v1172
    %v1189 = vsel %vm1173, %v917, 0.0
    %v1190 = vsel %vm1174, %v918, 0.0
    %v1191 = vsel %vm1175, %v919, 0.0
    %v1192 = vsel %vm1176, %v920, 0.0
    %v1193 = vsel %vm1177, %v921, 0.0
    %v1194 = vsel %vm1178, %v922, 0.0
    %v1195 = vsel %vm1179, %v923, 0.0
    %v1196 = vsel %vm1180, %v924, 0.0
    %v1197 = vsel %vm1181, %v925, 0.0
    %v1198 = vsel %vm1182, %v926, 0.0
    %v1199 = vsel %vm1183, %v927, 0.0
    %v1200 = vsel %vm1184, %v928, 0.0
    %v1201 = vsel %vm1185, %v929, 0.0
    %v1202 = vsel %vm1186, %v930, 0.0
    %v1203 = vsel %vm1187, %v931, 0.0
    %v1204 = vsel %vm1188, %v932, 0.0
    %1205 = vmax.xlane.f32.xlu0 %v1189
    %v1206 = vpop.xlane.xlu0 %1205
    %1207 = vmax.xlane.f32.xlu0 %v1190
    %v1208 = vpop.xlane.xlu0 %1207
    %1209 = vmax.xlane.f32.xlu0 %v1191
    %v1210 = vpop.xlane.xlu0 %1209
    %1211 = vmax.xlane.f32.xlu0 %v1192
    %v1212 = vpop.xlane.xlu0 %1211
    %1213 = vmax.xlane.f32.xlu0 %v1193
    %v1214 = vpop.xlane.xlu0 %1213
    %1215 = vmax.xlane.f32.xlu0 %v1194
    %v1216 = vpop.xlane.xlu0 %1215
    %1217 = vmax.xlane.f32.xlu0 %v1195
    %v1218 = vpop.xlane.xlu0 %1217
    %1219 = vmax.xlane.f32.xlu0 %v1196
    %v1220 = vpop.xlane.xlu0 %1219
    %1221 = vmax.xlane.f32.xlu0 %v1197
    %v1222 = vpop.xlane.xlu0 %1221
    %1223 = vmax.xlane.f32.xlu0 %v1198
    %v1224 = vpop.xlane.xlu0 %1223
    %1225 = vmax.xlane.f32.xlu0 %v1199
    %v1226 = vpop.xlane.xlu0 %1225
    %1227 = vmax.xlane.f32.xlu0 %v1200
    %v1228 = vpop.xlane.xlu0 %1227
    %1229 = vmax.xlane.f32.xlu0 %v1201
    %v1230 = vpop.xlane.xlu0 %1229
    %1231 = vmax.xlane.f32.xlu0 %v1202
    %v1232 = vpop.xlane.xlu0 %1231
    %1233 = vmax.xlane.f32.xlu0 %v1203
    %v1234 = vpop.xlane.xlu0 %1233
    %1235 = vmax.xlane.f32.xlu0 %v1204
    %v1236 = vpop.xlane.xlu0 %1235
    %vm1237 = vcmask 261120
    %v1239 = vsel %vm1237, %v28, 0
    %v1242 = vsel %vm1237, %v29, 0
    %v1245 = vsel %vm1237, %v30, 0
    %v1248 = vsel %vm1237, %v31, 0
    %v1251 = vsel %vm1237, %v32, 0
    %v1254 = vsel %vm1237, %v33, 0
    %v1257 = vsel %vm1237, %v34, 0
    %v1260 = vsel %vm1237, %v35, 0
    %v1263 = vsel %vm1237, %v36, 0
    %v1266 = vsel %vm1237, %v37, 0
    %v1269 = vsel %vm1237, %v38, 0
    %v1272 = vsel %vm1237, %v39, 0
    %v1275 = vsel %vm1237, %v40, 0
    %v1278 = vsel %vm1237, %v41, 0
    %v1281 = vsel %vm1237, %v42, 0
    %v1284 = vsel %vm1237, %v43, 0
    %1286 = vmatpush.xpose.msra.mxu0 %v1284
    %1287 = vmatpush.xpose.msra.mxu0 %v1281
    %1288 = vmatpush.xpose.msra.mxu0 %v1278
    %1289 = vmatpush.xpose.msra.mxu0 %v1275
    %1290 = vmatpush.xpose.msra.mxu0 %v1272
    %1291 = vmatpush.xpose.msra.mxu0 %v1269
    %1292 = vmatpush.xpose.msra.mxu0 %v1266
    %1293 = vmatpush.xpose.msra.mxu0 %v1263
    %1294 = vmatpush.xpose.msra.mxu0 %v1260
    %1295 = vmatpush.xpose.msra.mxu0 %v1257
    %1296 = vmatpush.xpose.msra.mxu0 %v1254
    %1297 = vmatpush.xpose.msra.mxu0 %v1251
    %1298 = vmatpush.xpose.msra.mxu0 %v1248
    %1299 = vmatpush.xpose.msra.mxu0 %v1245
    %1300 = vmatpush.xpose.msra.mxu0 %v1242
    %1301 = vmatpush.xpose.msra.mxu0 %v1239
    %1302 = vmatmul.f32.gmra.mxu0 %v1239
    %v1303 = vpop.f32.mrf.mxu0
    %v1304 = vadd.f32 0.0, %v1303
    %1305 = vmatmul.f32.gmra.mxu0 %v1242
    %v1306 = vpop.f32.mrf.mxu0
    %v1307 = vadd.f32 0.0, %v1306
    %1308 = vmatmul.f32.gmra.mxu0 %v1245
    %v1309 = vpop.f32.mrf.mxu0
    %v1310 = vadd.f32 0.0, %v1309
    %1311 = vmatmul.f32.gmra.mxu0 %v1248
    %v1312 = vpop.f32.mrf.mxu0
    %v1313 = vadd.f32 0.0, %v1312
    %1314 = vmatmul.f32.gmra.mxu0 %v1251
    %v1315 = vpop.f32.mrf.mxu0
    %v1316 = vadd.f32 0.0, %v1315
    %1317 = vmatmul.f32.gmra.mxu0 %v1254
    %v1318 = vpop.f32.mrf.mxu0
    %v1319 = vadd.f32 0.0, %v1318
    %1320 = vmatmul.f32.gmra.mxu0 %v1257
    %v1321 = vpop.f32.mrf.mxu0
    %v1322 = vadd.f32 0.0, %v1321
    %1323 = vmatmul.f32.gmra.mxu0 %v1260
    %v1324 = vpop.f32.mrf.mxu0
    %v1325 = vadd.f32 0.0, %v1324
    %1326 = vmatmul.f32.gmra.mxu0 %v1263
    %v1327 = vpop.f32.mrf.mxu0
    %v1328 = vadd.f32 0.0, %v1327
    %1329 = vmatmul.f32.gmra.mxu0 %v1266
    %v1330 = vpop.f32.mrf.mxu0
    %v1331 = vadd.f32 0.0, %v1330
    %1332 = vmatmul.f32.gmra.mxu0 %v1269
    %v1333 = vpop.f32.mrf.mxu0
    %v1334 = vadd.f32 0.0, %v1333
    %1335 = vmatmul.f32.gmra.mxu0 %v1272
    %v1336 = vpop.f32.mrf.mxu0
    %v1337 = vadd.f32 0.0, %v1336
    %1338 = vmatmul.f32.gmra.mxu0 %v1275
    %v1339 = vpop.f32.mrf.mxu0
    %v1340 = vadd.f32 0.0, %v1339
    %1341 = vmatmul.f32.gmra.mxu0 %v1278
    %v1342 = vpop.f32.mrf.mxu0
    %v1343 = vadd.f32 0.0, %v1342
    %1344 = vmatmul.f32.gmra.mxu0 %v1281
    %v1345 = vpop.f32.mrf.mxu0
    %v1346 = vadd.f32 0.0, %v1345
    %1347 = vmatmul.f32.gmra.mxu0 %v1284
    %v1348 = vpop.f32.mrf.mxu0
    %v1349 = vadd.f32 0.0, %v1348
    %1350 = vdwg.mxu0
    %v1351 = vmul.f32 %v1304, %v432
    %v1352 = vmul.f32 %v1307, %v433
    %v1353 = vmul.f32 %v1310, %v434
    %v1354 = vmul.f32 %v1313, %v435
    %v1355 = vmul.f32 %v1316, %v436
    %v1356 = vmul.f32 %v1319, %v437
    %v1357 = vmul.f32 %v1322, %v438
    %v1358 = vmul.f32 %v1325, %v439
    %v1359 = vmul.f32 %v1328, %v440
    %v1360 = vmul.f32 %v1331, %v441
    %v1361 = vmul.f32 %v1334, %v442
    %v1362 = vmul.f32 %v1337, %v443
    %v1363 = vmul.f32 %v1340, %v444
    %v1364 = vmul.f32 %v1343, %v445
    %v1365 = vmul.f32 %v1346, %v446
    %v1366 = vmul.f32 %v1349, %v447
    %v1367 = vadd.f32 %v1351, %v1352
    %v1368 = vadd.f32 %v1367, %v1353
    %v1369 = vadd.f32 %v1368, %v1354
    %v1370 = vadd.f32 %v1369, %v1355
    %v1371 = vadd.f32 %v1370, %v1356
    %v1372 = vadd.f32 %v1371, %v1357
    %v1373 = vadd.f32 %v1372, %v1358
    %v1374 = vadd.f32 %v1373, %v1359
    %v1375 = vadd.f32 %v1374, %v1360
    %v1376 = vadd.f32 %v1375, %v1361
    %v1377 = vadd.f32 %v1376, %v1362
    %v1378 = vadd.f32 %v1377, %v1363
    %v1379 = vadd.f32 %v1378, %v1364
    %v1380 = vadd.f32 %v1379, %v1365
    %v1381 = vadd.f32 %v1380, %v1366
    %v1382 = vrot.slane %v1381, 4
    %v1383 = vadd.f32 %v1381, %v1382
    %v1384 = vrot.slane %v1383, 2
    %v1385 = vadd.f32 %v1383, %v1384
    %v1386 = vrot.slane %v1385, 1
    %v1387 = vadd.f32 %v1385, %v1386
    %1388 = vadd.xlane.f32.xlu0 %v1351
    %v1389 = vpop.xlane.xlu0 %1388
    %1390 = vadd.xlane.f32.xlu0 %v1352
    %v1391 = vpop.xlane.xlu0 %1390
    %1392 = vadd.xlane.f32.xlu0 %v1353
    %v1393 = vpop.xlane.xlu0 %1392
    %1394 = vadd.xlane.f32.xlu0 %v1354
    %v1395 = vpop.xlane.xlu0 %1394
    %1396 = vadd.xlane.f32.xlu0 %v1355
    %v1397 = vpop.xlane.xlu0 %1396
    %1398 = vadd.xlane.f32.xlu0 %v1356
    %v1399 = vpop.xlane.xlu0 %1398
    %1400 = vadd.xlane.f32.xlu0 %v1357
    %v1401 = vpop.xlane.xlu0 %1400
    %1402 = vadd.xlane.f32.xlu0 %v1358
    %v1403 = vpop.xlane.xlu0 %1402
    %1404 = vadd.xlane.f32.xlu0 %v1359
    %v1405 = vpop.xlane.xlu0 %1404
    %1406 = vadd.xlane.f32.xlu0 %v1360
    %v1407 = vpop.xlane.xlu0 %1406
    %1408 = vadd.xlane.f32.xlu0 %v1361
    %v1409 = vpop.xlane.xlu0 %1408
    %1410 = vadd.xlane.f32.xlu0 %v1362
    %v1411 = vpop.xlane.xlu0 %1410
    %1412 = vadd.xlane.f32.xlu0 %v1363
    %v1413 = vpop.xlane.xlu0 %1412
    %1414 = vadd.xlane.f32.xlu0 %v1364
    %v1415 = vpop.xlane.xlu0 %1414
    %1416 = vadd.xlane.f32.xlu0 %v1365
    %v1417 = vpop.xlane.xlu0 %1416
    %1418 = vadd.xlane.f32.xlu0 %v1366
    %v1419 = vpop.xlane.xlu0 %1418
    %v1420 = vadd.f32 %v1389, %v1387
    %v1421 = vadd.f32 %v1391, %v1387
    %v1422 = vadd.f32 %v1393, %v1387
    %v1423 = vadd.f32 %v1395, %v1387
    %v1424 = vadd.f32 %v1397, %v1387
    %v1425 = vadd.f32 %v1399, %v1387
    %v1426 = vadd.f32 %v1401, %v1387
    %v1427 = vadd.f32 %v1403, %v1387
    %v1428 = vadd.f32 %v1405, %v1387
    %v1429 = vadd.f32 %v1407, %v1387
    %v1430 = vadd.f32 %v1409, %v1387
    %v1431 = vadd.f32 %v1411, %v1387
    %v1432 = vadd.f32 %v1413, %v1387
    %v1433 = vadd.f32 %v1415, %v1387
    %v1434 = vadd.f32 %v1417, %v1387
    %v1435 = vadd.f32 %v1419, %v1387
    %v1436 = vmul.f32 %v1304, 2.0
    %v1437 = vmul.f32 %v1307, 2.0
    %v1438 = vmul.f32 %v1310, 2.0
    %v1439 = vmul.f32 %v1313, 2.0
    %v1440 = vmul.f32 %v1316, 2.0
    %v1441 = vmul.f32 %v1319, 2.0
    %v1442 = vmul.f32 %v1322, 2.0
    %v1443 = vmul.f32 %v1325, 2.0
    %v1444 = vmul.f32 %v1328, 2.0
    %v1445 = vmul.f32 %v1331, 2.0
    %v1446 = vmul.f32 %v1334, 2.0
    %v1447 = vmul.f32 %v1337, 2.0
    %v1448 = vmul.f32 %v1340, 2.0
    %v1449 = vmul.f32 %v1343, 2.0
    %v1450 = vmul.f32 %v1346, 2.0
    %v1451 = vmul.f32 %v1349, 2.0
    %v1452 = vsub.f32 %v1420, %v1436
    %v1453 = vsub.f32 %v1421, %v1437
    %v1454 = vsub.f32 %v1422, %v1438
    %v1455 = vsub.f32 %v1423, %v1439
    %v1456 = vsub.f32 %v1424, %v1440
    %v1457 = vsub.f32 %v1425, %v1441
    %v1458 = vsub.f32 %v1426, %v1442
    %v1459 = vsub.f32 %v1427, %v1443
    %v1460 = vsub.f32 %v1428, %v1444
    %v1461 = vsub.f32 %v1429, %v1445
    %v1462 = vsub.f32 %v1430, %v1446
    %v1463 = vsub.f32 %v1431, %v1447
    %v1464 = vsub.f32 %v1432, %v1448
    %v1465 = vsub.f32 %v1433, %v1449
    %v1466 = vsub.f32 %v1434, %v1450
    %v1467 = vsub.f32 %v1435, %v1451
    %v1468 = vmax.f32 %v1452, 0.0
    %v1469 = vmax.f32 %v1453, 0.0
    %v1470 = vmax.f32 %v1454, 0.0
    %v1471 = vmax.f32 %v1455, 0.0
    %v1472 = vmax.f32 %v1456, 0.0
    %v1473 = vmax.f32 %v1457, 0.0
    %v1474 = vmax.f32 %v1458, 0.0
    %v1475 = vmax.f32 %v1459, 0.0
    %v1476 = vmax.f32 %v1460, 0.0
    %v1477 = vmax.f32 %v1461, 0.0
    %v1478 = vmax.f32 %v1462, 0.0
    %v1479 = vmax.f32 %v1463, 0.0
    %v1480 = vmax.f32 %v1464, 0.0
    %v1481 = vmax.f32 %v1465, 0.0
    %v1482 = vmax.f32 %v1466, 0.0
    %v1483 = vmax.f32 %v1467, 0.0
    %v1484 = vrsqrt.pop %v1468
    %v1485 = vmul.f32 %v1484, %v1468
    %v1486 = vmul.f32 %v1485, %v1484
    %v1487 = vmul.f32 0.5, %v1486
    %v1488 = vsub.f32 1.5, %v1487
    %v1489 = vmul.f32 %v1484, %v1488
    %v1490 = vmul.f32 %v1468, %v1489
    %vm1491 = vcmp.eq.f32.partialorder %v1468, inf
    %v1492 = vsel %vm1491, %v1468, %v1490
    %vm1493 = vcmp.eq.f32.partialorder %v1468, 0.0
    %v1494 = vand.u32 %v1468, 2147483648
    %v1495 = vsel %vm1493, %v1494, %v1492
    %v1496 = vrsqrt.pop %v1469
    %v1497 = vmul.f32 %v1496, %v1469
    %v1498 = vmul.f32 %v1497, %v1496
    %v1499 = vmul.f32 0.5, %v1498
    %v1500 = vsub.f32 1.5, %v1499
    %v1501 = vmul.f32 %v1496, %v1500
    %v1502 = vmul.f32 %v1469, %v1501
    %vm1503 = vcmp.eq.f32.partialorder %v1469, inf
    %v1504 = vsel %vm1503, %v1469, %v1502
    %vm1505 = vcmp.eq.f32.partialorder %v1469, 0.0
    %v1506 = vand.u32 %v1469, 2147483648
    %v1507 = vsel %vm1505, %v1506, %v1504
    %v1508 = vrsqrt.pop %v1470
    %v1509 = vmul.f32 %v1508, %v1470
    %v1510 = vmul.f32 %v1509, %v1508
    %v1511 = vmul.f32 0.5, %v1510
    %v1512 = vsub.f32 1.5, %v1511
    %v1513 = vmul.f32 %v1508, %v1512
    %v1514 = vmul.f32 %v1470, %v1513
    %vm1515 = vcmp.eq.f32.partialorder %v1470, inf
    %v1516 = vsel %vm1515, %v1470, %v1514
    %vm1517 = vcmp.eq.f32.partialorder %v1470, 0.0
    %v1518 = vand.u32 %v1470, 2147483648
    %v1519 = vsel %vm1517, %v1518, %v1516
    %v1520 = vrsqrt.pop %v1471
    %v1521 = vmul.f32 %v1520, %v1471
    %v1522 = vmul.f32 %v1521, %v1520
    %v1523 = vmul.f32 0.5, %v1522
    %v1524 = vsub.f32 1.5, %v1523
    %v1525 = vmul.f32 %v1520, %v1524
    %v1526 = vmul.f32 %v1471, %v1525
    %vm1527 = vcmp.eq.f32.partialorder %v1471, inf
    %v1528 = vsel %vm1527, %v1471, %v1526
    %vm1529 = vcmp.eq.f32.partialorder %v1471, 0.0
    %v1530 = vand.u32 %v1471, 2147483648
    %v1531 = vsel %vm1529, %v1530, %v1528
    %v1532 = vrsqrt.pop %v1472
    %v1533 = vmul.f32 %v1532, %v1472
    %v1534 = vmul.f32 %v1533, %v1532
    %v1535 = vmul.f32 0.5, %v1534
    %v1536 = vsub.f32 1.5, %v1535
    %v1537 = vmul.f32 %v1532, %v1536
    %v1538 = vmul.f32 %v1472, %v1537
    %vm1539 = vcmp.eq.f32.partialorder %v1472, inf
    %v1540 = vsel %vm1539, %v1472, %v1538
    %vm1541 = vcmp.eq.f32.partialorder %v1472, 0.0
    %v1542 = vand.u32 %v1472, 2147483648
    %v1543 = vsel %vm1541, %v1542, %v1540
    %v1544 = vrsqrt.pop %v1473
    %v1545 = vmul.f32 %v1544, %v1473
    %v1546 = vmul.f32 %v1545, %v1544
    %v1547 = vmul.f32 0.5, %v1546
    %v1548 = vsub.f32 1.5, %v1547
    %v1549 = vmul.f32 %v1544, %v1548
    %v1550 = vmul.f32 %v1473, %v1549
    %vm1551 = vcmp.eq.f32.partialorder %v1473, inf
    %v1552 = vsel %vm1551, %v1473, %v1550
    %vm1553 = vcmp.eq.f32.partialorder %v1473, 0.0
    %v1554 = vand.u32 %v1473, 2147483648
    %v1555 = vsel %vm1553, %v1554, %v1552
    %v1556 = vrsqrt.pop %v1474
    %v1557 = vmul.f32 %v1556, %v1474
    %v1558 = vmul.f32 %v1557, %v1556
    %v1559 = vmul.f32 0.5, %v1558
    %v1560 = vsub.f32 1.5, %v1559
    %v1561 = vmul.f32 %v1556, %v1560
    %v1562 = vmul.f32 %v1474, %v1561
    %vm1563 = vcmp.eq.f32.partialorder %v1474, inf
    %v1564 = vsel %vm1563, %v1474, %v1562
    %vm1565 = vcmp.eq.f32.partialorder %v1474, 0.0
    %v1566 = vand.u32 %v1474, 2147483648
    %v1567 = vsel %vm1565, %v1566, %v1564
    %v1568 = vrsqrt.pop %v1475
    %v1569 = vmul.f32 %v1568, %v1475
    %v1570 = vmul.f32 %v1569, %v1568
    %v1571 = vmul.f32 0.5, %v1570
    %v1572 = vsub.f32 1.5, %v1571
    %v1573 = vmul.f32 %v1568, %v1572
    %v1574 = vmul.f32 %v1475, %v1573
    %vm1575 = vcmp.eq.f32.partialorder %v1475, inf
    %v1576 = vsel %vm1575, %v1475, %v1574
    %vm1577 = vcmp.eq.f32.partialorder %v1475, 0.0
    %v1578 = vand.u32 %v1475, 2147483648
    %v1579 = vsel %vm1577, %v1578, %v1576
    %v1580 = vrsqrt.pop %v1476
    %v1581 = vmul.f32 %v1580, %v1476
    %v1582 = vmul.f32 %v1581, %v1580
    %v1583 = vmul.f32 0.5, %v1582
    %v1584 = vsub.f32 1.5, %v1583
    %v1585 = vmul.f32 %v1580, %v1584
    %v1586 = vmul.f32 %v1476, %v1585
    %vm1587 = vcmp.eq.f32.partialorder %v1476, inf
    %v1588 = vsel %vm1587, %v1476, %v1586
    %vm1589 = vcmp.eq.f32.partialorder %v1476, 0.0
    %v1590 = vand.u32 %v1476, 2147483648
    %v1591 = vsel %vm1589, %v1590, %v1588
    %v1592 = vrsqrt.pop %v1477
    %v1593 = vmul.f32 %v1592, %v1477
    %v1594 = vmul.f32 %v1593, %v1592
    %v1595 = vmul.f32 0.5, %v1594
    %v1596 = vsub.f32 1.5, %v1595
    %v1597 = vmul.f32 %v1592, %v1596
    %v1598 = vmul.f32 %v1477, %v1597
    %vm1599 = vcmp.eq.f32.partialorder %v1477, inf
    %v1600 = vsel %vm1599, %v1477, %v1598
    %vm1601 = vcmp.eq.f32.partialorder %v1477, 0.0
    %v1602 = vand.u32 %v1477, 2147483648
    %v1603 = vsel %vm1601, %v1602, %v1600
    %v1604 = vrsqrt.pop %v1478
    %v1605 = vmul.f32 %v1604, %v1478
    %v1606 = vmul.f32 %v1605, %v1604
    %v1607 = vmul.f32 0.5, %v1606
    %v1608 = vsub.f32 1.5, %v1607
    %v1609 = vmul.f32 %v1604, %v1608
    %v1610 = vmul.f32 %v1478, %v1609
    %vm1611 = vcmp.eq.f32.partialorder %v1478, inf
    %v1612 = vsel %vm1611, %v1478, %v1610
    %vm1613 = vcmp.eq.f32.partialorder %v1478, 0.0
    %v1614 = vand.u32 %v1478, 2147483648
    %v1615 = vsel %vm1613, %v1614, %v1612
    %v1616 = vrsqrt.pop %v1479
    %v1617 = vmul.f32 %v1616, %v1479
    %v1618 = vmul.f32 %v1617, %v1616
    %v1619 = vmul.f32 0.5, %v1618
    %v1620 = vsub.f32 1.5, %v1619
    %v1621 = vmul.f32 %v1616, %v1620
    %v1622 = vmul.f32 %v1479, %v1621
    %vm1623 = vcmp.eq.f32.partialorder %v1479, inf
    %v1624 = vsel %vm1623, %v1479, %v1622
    %vm1625 = vcmp.eq.f32.partialorder %v1479, 0.0
    %v1626 = vand.u32 %v1479, 2147483648
    %v1627 = vsel %vm1625, %v1626, %v1624
    %v1628 = vrsqrt.pop %v1480
    %v1629 = vmul.f32 %v1628, %v1480
    %v1630 = vmul.f32 %v1629, %v1628
    %v1631 = vmul.f32 0.5, %v1630
    %v1632 = vsub.f32 1.5, %v1631
    %v1633 = vmul.f32 %v1628, %v1632
    %v1634 = vmul.f32 %v1480, %v1633
    %vm1635 = vcmp.eq.f32.partialorder %v1480, inf
    %v1636 = vsel %vm1635, %v1480, %v1634
    %vm1637 = vcmp.eq.f32.partialorder %v1480, 0.0
    %v1638 = vand.u32 %v1480, 2147483648
    %v1639 = vsel %vm1637, %v1638, %v1636
    %v1640 = vrsqrt.pop %v1481
    %v1641 = vmul.f32 %v1640, %v1481
    %v1642 = vmul.f32 %v1641, %v1640
    %v1643 = vmul.f32 0.5, %v1642
    %v1644 = vsub.f32 1.5, %v1643
    %v1645 = vmul.f32 %v1640, %v1644
    %v1646 = vmul.f32 %v1481, %v1645
    %vm1647 = vcmp.eq.f32.partialorder %v1481, inf
    %v1648 = vsel %vm1647, %v1481, %v1646
    %vm1649 = vcmp.eq.f32.partialorder %v1481, 0.0
    %v1650 = vand.u32 %v1481, 2147483648
    %v1651 = vsel %vm1649, %v1650, %v1648
    %v1652 = vrsqrt.pop %v1482
    %v1653 = vmul.f32 %v1652, %v1482
    %v1654 = vmul.f32 %v1653, %v1652
    %v1655 = vmul.f32 0.5, %v1654
    %v1656 = vsub.f32 1.5, %v1655
    %v1657 = vmul.f32 %v1652, %v1656
    %v1658 = vmul.f32 %v1482, %v1657
    %vm1659 = vcmp.eq.f32.partialorder %v1482, inf
    %v1660 = vsel %vm1659, %v1482, %v1658
    %vm1661 = vcmp.eq.f32.partialorder %v1482, 0.0
    %v1662 = vand.u32 %v1482, 2147483648
    %v1663 = vsel %vm1661, %v1662, %v1660
    %v1664 = vrsqrt.pop %v1483
    %v1665 = vmul.f32 %v1664, %v1483
    %v1666 = vmul.f32 %v1665, %v1664
    %v1667 = vmul.f32 0.5, %v1666
    %v1668 = vsub.f32 1.5, %v1667
    %v1669 = vmul.f32 %v1664, %v1668
    %v1670 = vmul.f32 %v1483, %v1669
    %vm1671 = vcmp.eq.f32.partialorder %v1483, inf
    %v1672 = vsel %vm1671, %v1483, %v1670
    %vm1673 = vcmp.eq.f32.partialorder %v1483, 0.0
    %v1674 = vand.u32 %v1483, 2147483648
    %v1675 = vsel %vm1673, %v1674, %v1672
    %v1676 = vsel %vm832, %v1468, -1.0
    %v1677 = vsel %vm833, %v1469, -1.0
    %v1678 = vsel %vm834, %v1470, -1.0
    %v1679 = vsel %vm835, %v1471, -1.0
    %v1680 = vsel %vm836, %v1472, -1.0
    %v1681 = vsel %vm837, %v1473, -1.0
    %v1682 = vsel %vm838, %v1474, -1.0
    %v1683 = vsel %vm839, %v1475, -1.0
    %v1684 = vsel %vm840, %v1476, -1.0
    %v1685 = vsel %vm841, %v1477, -1.0
    %v1686 = vsel %vm842, %v1478, -1.0
    %v1687 = vsel %vm843, %v1479, -1.0
    %v1688 = vsel %vm844, %v1480, -1.0
    %v1689 = vsel %vm845, %v1481, -1.0
    %v1690 = vsel %vm846, %v1482, -1.0
    %v1691 = vsel %vm847, %v1483, -1.0
    %1692 = vmax.xlane.f32.xlu0 %v1676
    %v1693 = vpop.xlane.xlu0 %1692
    %1694 = vmax.xlane.f32.xlu0 %v1677
    %v1695 = vpop.xlane.xlu0 %1694
    %1696 = vmax.xlane.f32.xlu0 %v1678
    %v1697 = vpop.xlane.xlu0 %1696
    %1698 = vmax.xlane.f32.xlu0 %v1679
    %v1699 = vpop.xlane.xlu0 %1698
    %1700 = vmax.xlane.f32.xlu0 %v1680
    %v1701 = vpop.xlane.xlu0 %1700
    %1702 = vmax.xlane.f32.xlu0 %v1681
    %v1703 = vpop.xlane.xlu0 %1702
    %1704 = vmax.xlane.f32.xlu0 %v1682
    %v1705 = vpop.xlane.xlu0 %1704
    %1706 = vmax.xlane.f32.xlu0 %v1683
    %v1707 = vpop.xlane.xlu0 %1706
    %1708 = vmax.xlane.f32.xlu0 %v1684
    %v1709 = vpop.xlane.xlu0 %1708
    %1710 = vmax.xlane.f32.xlu0 %v1685
    %v1711 = vpop.xlane.xlu0 %1710
    %1712 = vmax.xlane.f32.xlu0 %v1686
    %v1713 = vpop.xlane.xlu0 %1712
    %1714 = vmax.xlane.f32.xlu0 %v1687
    %v1715 = vpop.xlane.xlu0 %1714
    %1716 = vmax.xlane.f32.xlu0 %v1688
    %v1717 = vpop.xlane.xlu0 %1716
    %1718 = vmax.xlane.f32.xlu0 %v1689
    %v1719 = vpop.xlane.xlu0 %1718
    %1720 = vmax.xlane.f32.xlu0 %v1690
    %v1721 = vpop.xlane.xlu0 %1720
    %1722 = vmax.xlane.f32.xlu0 %v1691
    %v1723 = vpop.xlane.xlu0 %1722
    %vm1724 = vcmp.eq.f32.partialorder %v1676, %v1693
    %vm1725 = vcmp.eq.f32.partialorder %v1677, %v1695
    %vm1726 = vcmp.eq.f32.partialorder %v1678, %v1697
    %vm1727 = vcmp.eq.f32.partialorder %v1679, %v1699
    %vm1728 = vcmp.eq.f32.partialorder %v1680, %v1701
    %vm1729 = vcmp.eq.f32.partialorder %v1681, %v1703
    %vm1730 = vcmp.eq.f32.partialorder %v1682, %v1705
    %vm1731 = vcmp.eq.f32.partialorder %v1683, %v1707
    %vm1732 = vcmp.eq.f32.partialorder %v1684, %v1709
    %vm1733 = vcmp.eq.f32.partialorder %v1685, %v1711
    %vm1734 = vcmp.eq.f32.partialorder %v1686, %v1713
    %vm1735 = vcmp.eq.f32.partialorder %v1687, %v1715
    %vm1736 = vcmp.eq.f32.partialorder %v1688, %v1717
    %vm1737 = vcmp.eq.f32.partialorder %v1689, %v1719
    %vm1738 = vcmp.eq.f32.partialorder %v1690, %v1721
    %vm1739 = vcmp.eq.f32.partialorder %v1691, %v1723
    %v1740 = vsel %vm1724, %v94, 128
    %v1741 = vsel %vm1725, %v94, 128
    %v1742 = vsel %vm1726, %v94, 128
    %v1743 = vsel %vm1727, %v94, 128
    %v1744 = vsel %vm1728, %v94, 128
    %v1745 = vsel %vm1729, %v94, 128
    %v1746 = vsel %vm1730, %v94, 128
    %v1747 = vsel %vm1731, %v94, 128
    %v1748 = vsel %vm1732, %v94, 128
    %v1749 = vsel %vm1733, %v94, 128
    %v1750 = vsel %vm1734, %v94, 128
    %v1751 = vsel %vm1735, %v94, 128
    %v1752 = vsel %vm1736, %v94, 128
    %v1753 = vsel %vm1737, %v94, 128
    %v1754 = vsel %vm1738, %v94, 128
    %v1755 = vsel %vm1739, %v94, 128
    %v1756 = vand.u32 %v1740, 65535
    %v1757 = vshra.s32 %v1740, 16
    %v1758 = vcvt.s32.f32 %v1756
    %v1759 = vcvt.s32.f32 %v1757
    %1760 = vmin.xlane.f32.xlu0 %v1759
    %v1761 = vpop.xlane.xlu0 %1760
    %vm1762 = vcmp.eq.f32.partialorder %v1759, %v1761
    %v1763 = vsel %vm1762, %v1758, inf
    %1764 = vmin.xlane.f32.xlu0 %v1763
    %v1765 = vpop.xlane.xlu0 %1764
    %v1766 = vcvt.f32.s32 %v1765
    %v1767 = vcvt.f32.s32 %v1761
    %v1768 = vshll.u32 %v1767, 16
    %v1769 = vadd.s32 %v1768, %v1766
    %v1770 = vand.u32 %v1741, 65535
    %v1771 = vshra.s32 %v1741, 16
    %v1772 = vcvt.s32.f32 %v1770
    %v1773 = vcvt.s32.f32 %v1771
    %1774 = vmin.xlane.f32.xlu0 %v1773
    %v1775 = vpop.xlane.xlu0 %1774
    %vm1776 = vcmp.eq.f32.partialorder %v1773, %v1775
    %v1777 = vsel %vm1776, %v1772, inf
    %1778 = vmin.xlane.f32.xlu0 %v1777
    %v1779 = vpop.xlane.xlu0 %1778
    %v1780 = vcvt.f32.s32 %v1779
    %v1781 = vcvt.f32.s32 %v1775
    %v1782 = vshll.u32 %v1781, 16
    %v1783 = vadd.s32 %v1782, %v1780
    %v1784 = vand.u32 %v1742, 65535
    %v1785 = vshra.s32 %v1742, 16
    %v1786 = vcvt.s32.f32 %v1784
    %v1787 = vcvt.s32.f32 %v1785
    %1788 = vmin.xlane.f32.xlu0 %v1787
    %v1789 = vpop.xlane.xlu0 %1788
    %vm1790 = vcmp.eq.f32.partialorder %v1787, %v1789
    %v1791 = vsel %vm1790, %v1786, inf
    %1792 = vmin.xlane.f32.xlu0 %v1791
    %v1793 = vpop.xlane.xlu0 %1792
    %v1794 = vcvt.f32.s32 %v1793
    %v1795 = vcvt.f32.s32 %v1789
    %v1796 = vshll.u32 %v1795, 16
    %v1797 = vadd.s32 %v1796, %v1794
    %v1798 = vand.u32 %v1743, 65535
    %v1799 = vshra.s32 %v1743, 16
    %v1800 = vcvt.s32.f32 %v1798
    %v1801 = vcvt.s32.f32 %v1799
    %1802 = vmin.xlane.f32.xlu0 %v1801
    %v1803 = vpop.xlane.xlu0 %1802
    %vm1804 = vcmp.eq.f32.partialorder %v1801, %v1803
    %v1805 = vsel %vm1804, %v1800, inf
    %1806 = vmin.xlane.f32.xlu0 %v1805
    %v1807 = vpop.xlane.xlu0 %1806
    %v1808 = vcvt.f32.s32 %v1807
    %v1809 = vcvt.f32.s32 %v1803
    %v1810 = vshll.u32 %v1809, 16
    %v1811 = vadd.s32 %v1810, %v1808
    %v1812 = vand.u32 %v1744, 65535
    %v1813 = vshra.s32 %v1744, 16
    %v1814 = vcvt.s32.f32 %v1812
    %v1815 = vcvt.s32.f32 %v1813
    %1816 = vmin.xlane.f32.xlu0 %v1815
    %v1817 = vpop.xlane.xlu0 %1816
    %vm1818 = vcmp.eq.f32.partialorder %v1815, %v1817
    %v1819 = vsel %vm1818, %v1814, inf
    %1820 = vmin.xlane.f32.xlu0 %v1819
    %v1821 = vpop.xlane.xlu0 %1820
    %v1822 = vcvt.f32.s32 %v1821
    %v1823 = vcvt.f32.s32 %v1817
    %v1824 = vshll.u32 %v1823, 16
    %v1825 = vadd.s32 %v1824, %v1822
    %v1826 = vand.u32 %v1745, 65535
    %v1827 = vshra.s32 %v1745, 16
    %v1828 = vcvt.s32.f32 %v1826
    %v1829 = vcvt.s32.f32 %v1827
    %1830 = vmin.xlane.f32.xlu0 %v1829
    %v1831 = vpop.xlane.xlu0 %1830
    %vm1832 = vcmp.eq.f32.partialorder %v1829, %v1831
    %v1833 = vsel %vm1832, %v1828, inf
    %1834 = vmin.xlane.f32.xlu0 %v1833
    %v1835 = vpop.xlane.xlu0 %1834
    %v1836 = vcvt.f32.s32 %v1835
    %v1837 = vcvt.f32.s32 %v1831
    %v1838 = vshll.u32 %v1837, 16
    %v1839 = vadd.s32 %v1838, %v1836
    %v1840 = vand.u32 %v1746, 65535
    %v1841 = vshra.s32 %v1746, 16
    %v1842 = vcvt.s32.f32 %v1840
    %v1843 = vcvt.s32.f32 %v1841
    %1844 = vmin.xlane.f32.xlu0 %v1843
    %v1845 = vpop.xlane.xlu0 %1844
    %vm1846 = vcmp.eq.f32.partialorder %v1843, %v1845
    %v1847 = vsel %vm1846, %v1842, inf
    %1848 = vmin.xlane.f32.xlu0 %v1847
    %v1849 = vpop.xlane.xlu0 %1848
    %v1850 = vcvt.f32.s32 %v1849
    %v1851 = vcvt.f32.s32 %v1845
    %v1852 = vshll.u32 %v1851, 16
    %v1853 = vadd.s32 %v1852, %v1850
    %v1854 = vand.u32 %v1747, 65535
    %v1855 = vshra.s32 %v1747, 16
    %v1856 = vcvt.s32.f32 %v1854
    %v1857 = vcvt.s32.f32 %v1855
    %1858 = vmin.xlane.f32.xlu0 %v1857
    %v1859 = vpop.xlane.xlu0 %1858
    %vm1860 = vcmp.eq.f32.partialorder %v1857, %v1859
    %v1861 = vsel %vm1860, %v1856, inf
    %1862 = vmin.xlane.f32.xlu0 %v1861
    %v1863 = vpop.xlane.xlu0 %1862
    %v1864 = vcvt.f32.s32 %v1863
    %v1865 = vcvt.f32.s32 %v1859
    %v1866 = vshll.u32 %v1865, 16
    %v1867 = vadd.s32 %v1866, %v1864
    %v1868 = vand.u32 %v1748, 65535
    %v1869 = vshra.s32 %v1748, 16
    %v1870 = vcvt.s32.f32 %v1868
    %v1871 = vcvt.s32.f32 %v1869
    %1872 = vmin.xlane.f32.xlu0 %v1871
    %v1873 = vpop.xlane.xlu0 %1872
    %vm1874 = vcmp.eq.f32.partialorder %v1871, %v1873
    %v1875 = vsel %vm1874, %v1870, inf
    %1876 = vmin.xlane.f32.xlu0 %v1875
    %v1877 = vpop.xlane.xlu0 %1876
    %v1878 = vcvt.f32.s32 %v1877
    %v1879 = vcvt.f32.s32 %v1873
    %v1880 = vshll.u32 %v1879, 16
    %v1881 = vadd.s32 %v1880, %v1878
    %v1882 = vand.u32 %v1749, 65535
    %v1883 = vshra.s32 %v1749, 16
    %v1884 = vcvt.s32.f32 %v1882
    %v1885 = vcvt.s32.f32 %v1883
    %1886 = vmin.xlane.f32.xlu0 %v1885
    %v1887 = vpop.xlane.xlu0 %1886
    %vm1888 = vcmp.eq.f32.partialorder %v1885, %v1887
    %v1889 = vsel %vm1888, %v1884, inf
    %1890 = vmin.xlane.f32.xlu0 %v1889
    %v1891 = vpop.xlane.xlu0 %1890
    %v1892 = vcvt.f32.s32 %v1891
    %v1893 = vcvt.f32.s32 %v1887
    %v1894 = vshll.u32 %v1893, 16
    %v1895 = vadd.s32 %v1894, %v1892
    %v1896 = vand.u32 %v1750, 65535
    %v1897 = vshra.s32 %v1750, 16
    %v1898 = vcvt.s32.f32 %v1896
    %v1899 = vcvt.s32.f32 %v1897
    %1900 = vmin.xlane.f32.xlu0 %v1899
    %v1901 = vpop.xlane.xlu0 %1900
    %vm1902 = vcmp.eq.f32.partialorder %v1899, %v1901
    %v1903 = vsel %vm1902, %v1898, inf
    %1904 = vmin.xlane.f32.xlu0 %v1903
    %v1905 = vpop.xlane.xlu0 %1904
    %v1906 = vcvt.f32.s32 %v1905
    %v1907 = vcvt.f32.s32 %v1901
    %v1908 = vshll.u32 %v1907, 16
    %v1909 = vadd.s32 %v1908, %v1906
    %v1910 = vand.u32 %v1751, 65535
    %v1911 = vshra.s32 %v1751, 16
    %v1912 = vcvt.s32.f32 %v1910
    %v1913 = vcvt.s32.f32 %v1911
    %1914 = vmin.xlane.f32.xlu0 %v1913
    %v1915 = vpop.xlane.xlu0 %1914
    %vm1916 = vcmp.eq.f32.partialorder %v1913, %v1915
    %v1917 = vsel %vm1916, %v1912, inf
    %1918 = vmin.xlane.f32.xlu0 %v1917
    %v1919 = vpop.xlane.xlu0 %1918
    %v1920 = vcvt.f32.s32 %v1919
    %v1921 = vcvt.f32.s32 %v1915
    %v1922 = vshll.u32 %v1921, 16
    %v1923 = vadd.s32 %v1922, %v1920
    %v1924 = vand.u32 %v1752, 65535
    %v1925 = vshra.s32 %v1752, 16
    %v1926 = vcvt.s32.f32 %v1924
    %v1927 = vcvt.s32.f32 %v1925
    %1928 = vmin.xlane.f32.xlu0 %v1927
    %v1929 = vpop.xlane.xlu0 %1928
    %vm1930 = vcmp.eq.f32.partialorder %v1927, %v1929
    %v1931 = vsel %vm1930, %v1926, inf
    %1932 = vmin.xlane.f32.xlu0 %v1931
    %v1933 = vpop.xlane.xlu0 %1932
    %v1934 = vcvt.f32.s32 %v1933
    %v1935 = vcvt.f32.s32 %v1929
    %v1936 = vshll.u32 %v1935, 16
    %v1937 = vadd.s32 %v1936, %v1934
    %v1938 = vand.u32 %v1753, 65535
    %v1939 = vshra.s32 %v1753, 16
    %v1940 = vcvt.s32.f32 %v1938
    %v1941 = vcvt.s32.f32 %v1939
    %1942 = vmin.xlane.f32.xlu0 %v1941
    %v1943 = vpop.xlane.xlu0 %1942
    %vm1944 = vcmp.eq.f32.partialorder %v1941, %v1943
    %v1945 = vsel %vm1944, %v1940, inf
    %1946 = vmin.xlane.f32.xlu0 %v1945
    %v1947 = vpop.xlane.xlu0 %1946
    %v1948 = vcvt.f32.s32 %v1947
    %v1949 = vcvt.f32.s32 %v1943
    %v1950 = vshll.u32 %v1949, 16
    %v1951 = vadd.s32 %v1950, %v1948
    %v1952 = vand.u32 %v1754, 65535
    %v1953 = vshra.s32 %v1754, 16
    %v1954 = vcvt.s32.f32 %v1952
    %v1955 = vcvt.s32.f32 %v1953
    %1956 = vmin.xlane.f32.xlu0 %v1955
    %v1957 = vpop.xlane.xlu0 %1956
    %vm1958 = vcmp.eq.f32.partialorder %v1955, %v1957
    %v1959 = vsel %vm1958, %v1954, inf
    %1960 = vmin.xlane.f32.xlu0 %v1959
    %v1961 = vpop.xlane.xlu0 %1960
    %v1962 = vcvt.f32.s32 %v1961
    %v1963 = vcvt.f32.s32 %v1957
    %v1964 = vshll.u32 %v1963, 16
    %v1965 = vadd.s32 %v1964, %v1962
    %v1966 = vand.u32 %v1755, 65535
    %v1967 = vshra.s32 %v1755, 16
    %v1968 = vcvt.s32.f32 %v1966
    %v1969 = vcvt.s32.f32 %v1967
    %1970 = vmin.xlane.f32.xlu0 %v1969
    %v1971 = vpop.xlane.xlu0 %1970
    %vm1972 = vcmp.eq.f32.partialorder %v1969, %v1971
    %v1973 = vsel %vm1972, %v1968, inf
    %1974 = vmin.xlane.f32.xlu0 %v1973
    %v1975 = vpop.xlane.xlu0 %1974
    %v1976 = vcvt.f32.s32 %v1975
    %v1977 = vcvt.f32.s32 %v1971
    %v1978 = vshll.u32 %v1977, 16
    %v1979 = vadd.s32 %v1978, %v1976
    %vm1980 = vcmp.eq.s32.totalorder %v94, %v1769
    %vm1981 = vcmp.eq.s32.totalorder %v94, %v1783
    %vm1982 = vcmp.eq.s32.totalorder %v94, %v1797
    %vm1983 = vcmp.eq.s32.totalorder %v94, %v1811
    %vm1984 = vcmp.eq.s32.totalorder %v94, %v1825
    %vm1985 = vcmp.eq.s32.totalorder %v94, %v1839
    %vm1986 = vcmp.eq.s32.totalorder %v94, %v1853
    %vm1987 = vcmp.eq.s32.totalorder %v94, %v1867
    %vm1988 = vcmp.eq.s32.totalorder %v94, %v1881
    %vm1989 = vcmp.eq.s32.totalorder %v94, %v1895
    %vm1990 = vcmp.eq.s32.totalorder %v94, %v1909
    %vm1991 = vcmp.eq.s32.totalorder %v94, %v1923
    %vm1992 = vcmp.eq.s32.totalorder %v94, %v1937
    %vm1993 = vcmp.eq.s32.totalorder %v94, %v1951
    %vm1994 = vcmp.eq.s32.totalorder %v94, %v1965
    %vm1995 = vcmp.eq.s32.totalorder %v94, %v1979
    %v1996 = vsel %vm1980, %v966, 0.0
    %v1997 = vsel %vm1981, %v968, 0.0
    %v1998 = vsel %vm1982, %v970, 0.0
    %v1999 = vsel %vm1983, %v972, 0.0
    %v2000 = vsel %vm1984, %v974, 0.0
    %v2001 = vsel %vm1985, %v976, 0.0
    %v2002 = vsel %vm1986, %v978, 0.0
    %v2003 = vsel %vm1987, %v980, 0.0
    %v2004 = vsel %vm1988, %v982, 0.0
    %v2005 = vsel %vm1989, %v984, 0.0
    %v2006 = vsel %vm1990, %v986, 0.0
    %v2007 = vsel %vm1991, %v988, 0.0
    %v2008 = vsel %vm1992, %v990, 0.0
    %v2009 = vsel %vm1993, %v992, 0.0
    %v2010 = vsel %vm1994, %v994, 0.0
    %v2011 = vsel %vm1995, %v996, 0.0
    %v2012 = vadd.f32 %v1996, 0.0
    %v2013 = vadd.f32 %v1997, 0.0
    %v2014 = vadd.f32 %v1998, 0.0
    %v2015 = vadd.f32 %v1999, 0.0
    %v2016 = vadd.f32 %v2000, 0.0
    %v2017 = vadd.f32 %v2001, 0.0
    %v2018 = vadd.f32 %v2002, 0.0
    %v2019 = vadd.f32 %v2003, 0.0
    %v2020 = vadd.f32 %v2004, 0.0
    %v2021 = vadd.f32 %v2005, 0.0
    %v2022 = vadd.f32 %v2006, 0.0
    %v2023 = vadd.f32 %v2007, 0.0
    %v2024 = vadd.f32 %v2008, 0.0
    %v2025 = vadd.f32 %v2009, 0.0
    %v2026 = vadd.f32 %v2010, 0.0
    %v2027 = vadd.f32 %v2011, 0.0
    %v2028 = vsel %vm1980, -1.0, %v1676
    %v2029 = vsel %vm1981, -1.0, %v1677
    %v2030 = vsel %vm1982, -1.0, %v1678
    %v2031 = vsel %vm1983, -1.0, %v1679
    %v2032 = vsel %vm1984, -1.0, %v1680
    %v2033 = vsel %vm1985, -1.0, %v1681
    %v2034 = vsel %vm1986, -1.0, %v1682
    %v2035 = vsel %vm1987, -1.0, %v1683
    %v2036 = vsel %vm1988, -1.0, %v1684
    %v2037 = vsel %vm1989, -1.0, %v1685
    %v2038 = vsel %vm1990, -1.0, %v1686
    %v2039 = vsel %vm1991, -1.0, %v1687
    %v2040 = vsel %vm1992, -1.0, %v1688
    %v2041 = vsel %vm1993, -1.0, %v1689
    %v2042 = vsel %vm1994, -1.0, %v1690
    %v2043 = vsel %vm1995, -1.0, %v1691
    %2044 = vmax.xlane.f32.xlu0 %v2028
    %v2045 = vpop.xlane.xlu0 %2044
    %2046 = vmax.xlane.f32.xlu0 %v2029
    %v2047 = vpop.xlane.xlu0 %2046
    %2048 = vmax.xlane.f32.xlu0 %v2030
    %v2049 = vpop.xlane.xlu0 %2048
    %2050 = vmax.xlane.f32.xlu0 %v2031
    %v2051 = vpop.xlane.xlu0 %2050
    %2052 = vmax.xlane.f32.xlu0 %v2032
    %v2053 = vpop.xlane.xlu0 %2052
    %2054 = vmax.xlane.f32.xlu0 %v2033
    %v2055 = vpop.xlane.xlu0 %2054
    %2056 = vmax.xlane.f32.xlu0 %v2034
    %v2057 = vpop.xlane.xlu0 %2056
    %2058 = vmax.xlane.f32.xlu0 %v2035
    %v2059 = vpop.xlane.xlu0 %2058
    %2060 = vmax.xlane.f32.xlu0 %v2036
    %v2061 = vpop.xlane.xlu0 %2060
    %2062 = vmax.xlane.f32.xlu0 %v2037
    %v2063 = vpop.xlane.xlu0 %2062
    %2064 = vmax.xlane.f32.xlu0 %v2038
    %v2065 = vpop.xlane.xlu0 %2064
    %2066 = vmax.xlane.f32.xlu0 %v2039
    %v2067 = vpop.xlane.xlu0 %2066
    %2068 = vmax.xlane.f32.xlu0 %v2040
    %v2069 = vpop.xlane.xlu0 %2068
    %2070 = vmax.xlane.f32.xlu0 %v2041
    %v2071 = vpop.xlane.xlu0 %2070
    %2072 = vmax.xlane.f32.xlu0 %v2042
    %v2073 = vpop.xlane.xlu0 %2072
    %2074 = vmax.xlane.f32.xlu0 %v2043
    %v2075 = vpop.xlane.xlu0 %2074
    %vm2076 = vcmp.eq.f32.partialorder %v2028, %v2045
    %vm2077 = vcmp.eq.f32.partialorder %v2029, %v2047
    %vm2078 = vcmp.eq.f32.partialorder %v2030, %v2049
    %vm2079 = vcmp.eq.f32.partialorder %v2031, %v2051
    %vm2080 = vcmp.eq.f32.partialorder %v2032, %v2053
    %vm2081 = vcmp.eq.f32.partialorder %v2033, %v2055
    %vm2082 = vcmp.eq.f32.partialorder %v2034, %v2057
    %vm2083 = vcmp.eq.f32.partialorder %v2035, %v2059
    %vm2084 = vcmp.eq.f32.partialorder %v2036, %v2061
    %vm2085 = vcmp.eq.f32.partialorder %v2037, %v2063
    %vm2086 = vcmp.eq.f32.partialorder %v2038, %v2065
    %vm2087 = vcmp.eq.f32.partialorder %v2039, %v2067
    %vm2088 = vcmp.eq.f32.partialorder %v2040, %v2069
    %vm2089 = vcmp.eq.f32.partialorder %v2041, %v2071
    %vm2090 = vcmp.eq.f32.partialorder %v2042, %v2073
    %vm2091 = vcmp.eq.f32.partialorder %v2043, %v2075
    %v2092 = vsel %vm2076, %v94, 128
    %v2093 = vsel %vm2077, %v94, 128
    %v2094 = vsel %vm2078, %v94, 128
    %v2095 = vsel %vm2079, %v94, 128
    %v2096 = vsel %vm2080, %v94, 128
    %v2097 = vsel %vm2081, %v94, 128
    %v2098 = vsel %vm2082, %v94, 128
    %v2099 = vsel %vm2083, %v94, 128
    %v2100 = vsel %vm2084, %v94, 128
    %v2101 = vsel %vm2085, %v94, 128
    %v2102 = vsel %vm2086, %v94, 128
    %v2103 = vsel %vm2087, %v94, 128
    %v2104 = vsel %vm2088, %v94, 128
    %v2105 = vsel %vm2089, %v94, 128
    %v2106 = vsel %vm2090, %v94, 128
    %v2107 = vsel %vm2091, %v94, 128
    %v2108 = vand.u32 %v2092, 65535
    %v2109 = vshra.s32 %v2092, 16
    %v2110 = vcvt.s32.f32 %v2108
    %v2111 = vcvt.s32.f32 %v2109
    %2112 = vmin.xlane.f32.xlu0 %v2111
    %v2113 = vpop.xlane.xlu0 %2112
    %vm2114 = vcmp.eq.f32.partialorder %v2111, %v2113
    %v2115 = vsel %vm2114, %v2110, inf
    %2116 = vmin.xlane.f32.xlu0 %v2115
    %v2117 = vpop.xlane.xlu0 %2116
    %v2118 = vcvt.f32.s32 %v2117
    %v2119 = vcvt.f32.s32 %v2113
    %v2120 = vshll.u32 %v2119, 16
    %v2121 = vadd.s32 %v2120, %v2118
    %v2122 = vand.u32 %v2093, 65535
    %v2123 = vshra.s32 %v2093, 16
    %v2124 = vcvt.s32.f32 %v2122
    %v2125 = vcvt.s32.f32 %v2123
    %2126 = vmin.xlane.f32.xlu0 %v2125
    %v2127 = vpop.xlane.xlu0 %2126
    %vm2128 = vcmp.eq.f32.partialorder %v2125, %v2127
    %v2129 = vsel %vm2128, %v2124, inf
    %2130 = vmin.xlane.f32.xlu0 %v2129
    %v2131 = vpop.xlane.xlu0 %2130
    %v2132 = vcvt.f32.s32 %v2131
    %v2133 = vcvt.f32.s32 %v2127
    %v2134 = vshll.u32 %v2133, 16
    %v2135 = vadd.s32 %v2134, %v2132
    %v2136 = vand.u32 %v2094, 65535
    %v2137 = vshra.s32 %v2094, 16
    %v2138 = vcvt.s32.f32 %v2136
    %v2139 = vcvt.s32.f32 %v2137
    %2140 = vmin.xlane.f32.xlu0 %v2139
    %v2141 = vpop.xlane.xlu0 %2140
    %vm2142 = vcmp.eq.f32.partialorder %v2139, %v2141
    %v2143 = vsel %vm2142, %v2138, inf
    %2144 = vmin.xlane.f32.xlu0 %v2143
    %v2145 = vpop.xlane.xlu0 %2144
    %v2146 = vcvt.f32.s32 %v2145
    %v2147 = vcvt.f32.s32 %v2141
    %v2148 = vshll.u32 %v2147, 16
    %v2149 = vadd.s32 %v2148, %v2146
    %v2150 = vand.u32 %v2095, 65535
    %v2151 = vshra.s32 %v2095, 16
    %v2152 = vcvt.s32.f32 %v2150
    %v2153 = vcvt.s32.f32 %v2151
    %2154 = vmin.xlane.f32.xlu0 %v2153
    %v2155 = vpop.xlane.xlu0 %2154
    %vm2156 = vcmp.eq.f32.partialorder %v2153, %v2155
    %v2157 = vsel %vm2156, %v2152, inf
    %2158 = vmin.xlane.f32.xlu0 %v2157
    %v2159 = vpop.xlane.xlu0 %2158
    %v2160 = vcvt.f32.s32 %v2159
    %v2161 = vcvt.f32.s32 %v2155
    %v2162 = vshll.u32 %v2161, 16
    %v2163 = vadd.s32 %v2162, %v2160
    %v2164 = vand.u32 %v2096, 65535
    %v2165 = vshra.s32 %v2096, 16
    %v2166 = vcvt.s32.f32 %v2164
    %v2167 = vcvt.s32.f32 %v2165
    %2168 = vmin.xlane.f32.xlu0 %v2167
    %v2169 = vpop.xlane.xlu0 %2168
    %vm2170 = vcmp.eq.f32.partialorder %v2167, %v2169
    %v2171 = vsel %vm2170, %v2166, inf
    %2172 = vmin.xlane.f32.xlu0 %v2171
    %v2173 = vpop.xlane.xlu0 %2172
    %v2174 = vcvt.f32.s32 %v2173
    %v2175 = vcvt.f32.s32 %v2169
    %v2176 = vshll.u32 %v2175, 16
    %v2177 = vadd.s32 %v2176, %v2174
    %v2178 = vand.u32 %v2097, 65535
    %v2179 = vshra.s32 %v2097, 16
    %v2180 = vcvt.s32.f32 %v2178
    %v2181 = vcvt.s32.f32 %v2179
    %2182 = vmin.xlane.f32.xlu0 %v2181
    %v2183 = vpop.xlane.xlu0 %2182
    %vm2184 = vcmp.eq.f32.partialorder %v2181, %v2183
    %v2185 = vsel %vm2184, %v2180, inf
    %2186 = vmin.xlane.f32.xlu0 %v2185
    %v2187 = vpop.xlane.xlu0 %2186
    %v2188 = vcvt.f32.s32 %v2187
    %v2189 = vcvt.f32.s32 %v2183
    %v2190 = vshll.u32 %v2189, 16
    %v2191 = vadd.s32 %v2190, %v2188
    %v2192 = vand.u32 %v2098, 65535
    %v2193 = vshra.s32 %v2098, 16
    %v2194 = vcvt.s32.f32 %v2192
    %v2195 = vcvt.s32.f32 %v2193
    %2196 = vmin.xlane.f32.xlu0 %v2195
    %v2197 = vpop.xlane.xlu0 %2196
    %vm2198 = vcmp.eq.f32.partialorder %v2195, %v2197
    %v2199 = vsel %vm2198, %v2194, inf
    %2200 = vmin.xlane.f32.xlu0 %v2199
    %v2201 = vpop.xlane.xlu0 %2200
    %v2202 = vcvt.f32.s32 %v2201
    %v2203 = vcvt.f32.s32 %v2197
    %v2204 = vshll.u32 %v2203, 16
    %v2205 = vadd.s32 %v2204, %v2202
    %v2206 = vand.u32 %v2099, 65535
    %v2207 = vshra.s32 %v2099, 16
    %v2208 = vcvt.s32.f32 %v2206
    %v2209 = vcvt.s32.f32 %v2207
    %2210 = vmin.xlane.f32.xlu0 %v2209
    %v2211 = vpop.xlane.xlu0 %2210
    %vm2212 = vcmp.eq.f32.partialorder %v2209, %v2211
    %v2213 = vsel %vm2212, %v2208, inf
    %2214 = vmin.xlane.f32.xlu0 %v2213
    %v2215 = vpop.xlane.xlu0 %2214
    %v2216 = vcvt.f32.s32 %v2215
    %v2217 = vcvt.f32.s32 %v2211
    %v2218 = vshll.u32 %v2217, 16
    %v2219 = vadd.s32 %v2218, %v2216
    %v2220 = vand.u32 %v2100, 65535
    %v2221 = vshra.s32 %v2100, 16
    %v2222 = vcvt.s32.f32 %v2220
    %v2223 = vcvt.s32.f32 %v2221
    %2224 = vmin.xlane.f32.xlu0 %v2223
    %v2225 = vpop.xlane.xlu0 %2224
    %vm2226 = vcmp.eq.f32.partialorder %v2223, %v2225
    %v2227 = vsel %vm2226, %v2222, inf
    %2228 = vmin.xlane.f32.xlu0 %v2227
    %v2229 = vpop.xlane.xlu0 %2228
    %v2230 = vcvt.f32.s32 %v2229
    %v2231 = vcvt.f32.s32 %v2225
    %v2232 = vshll.u32 %v2231, 16
    %v2233 = vadd.s32 %v2232, %v2230
    %v2234 = vand.u32 %v2101, 65535
    %v2235 = vshra.s32 %v2101, 16
    %v2236 = vcvt.s32.f32 %v2234
    %v2237 = vcvt.s32.f32 %v2235
    %2238 = vmin.xlane.f32.xlu0 %v2237
    %v2239 = vpop.xlane.xlu0 %2238
    %vm2240 = vcmp.eq.f32.partialorder %v2237, %v2239
    %v2241 = vsel %vm2240, %v2236, inf
    %2242 = vmin.xlane.f32.xlu0 %v2241
    %v2243 = vpop.xlane.xlu0 %2242
    %v2244 = vcvt.f32.s32 %v2243
    %v2245 = vcvt.f32.s32 %v2239
    %v2246 = vshll.u32 %v2245, 16
    %v2247 = vadd.s32 %v2246, %v2244
    %v2248 = vand.u32 %v2102, 65535
    %v2249 = vshra.s32 %v2102, 16
    %v2250 = vcvt.s32.f32 %v2248
    %v2251 = vcvt.s32.f32 %v2249
    %2252 = vmin.xlane.f32.xlu0 %v2251
    %v2253 = vpop.xlane.xlu0 %2252
    %vm2254 = vcmp.eq.f32.partialorder %v2251, %v2253
    %v2255 = vsel %vm2254, %v2250, inf
    %2256 = vmin.xlane.f32.xlu0 %v2255
    %v2257 = vpop.xlane.xlu0 %2256
    %v2258 = vcvt.f32.s32 %v2257
    %v2259 = vcvt.f32.s32 %v2253
    %v2260 = vshll.u32 %v2259, 16
    %v2261 = vadd.s32 %v2260, %v2258
    %v2262 = vand.u32 %v2103, 65535
    %v2263 = vshra.s32 %v2103, 16
    %v2264 = vcvt.s32.f32 %v2262
    %v2265 = vcvt.s32.f32 %v2263
    %2266 = vmin.xlane.f32.xlu0 %v2265
    %v2267 = vpop.xlane.xlu0 %2266
    %vm2268 = vcmp.eq.f32.partialorder %v2265, %v2267
    %v2269 = vsel %vm2268, %v2264, inf
    %2270 = vmin.xlane.f32.xlu0 %v2269
    %v2271 = vpop.xlane.xlu0 %2270
    %v2272 = vcvt.f32.s32 %v2271
    %v2273 = vcvt.f32.s32 %v2267
    %v2274 = vshll.u32 %v2273, 16
    %v2275 = vadd.s32 %v2274, %v2272
    %v2276 = vand.u32 %v2104, 65535
    %v2277 = vshra.s32 %v2104, 16
    %v2278 = vcvt.s32.f32 %v2276
    %v2279 = vcvt.s32.f32 %v2277
    %2280 = vmin.xlane.f32.xlu0 %v2279
    %v2281 = vpop.xlane.xlu0 %2280
    %vm2282 = vcmp.eq.f32.partialorder %v2279, %v2281
    %v2283 = vsel %vm2282, %v2278, inf
    %2284 = vmin.xlane.f32.xlu0 %v2283
    %v2285 = vpop.xlane.xlu0 %2284
    %v2286 = vcvt.f32.s32 %v2285
    %v2287 = vcvt.f32.s32 %v2281
    %v2288 = vshll.u32 %v2287, 16
    %v2289 = vadd.s32 %v2288, %v2286
    %v2290 = vand.u32 %v2105, 65535
    %v2291 = vshra.s32 %v2105, 16
    %v2292 = vcvt.s32.f32 %v2290
    %v2293 = vcvt.s32.f32 %v2291
    %2294 = vmin.xlane.f32.xlu0 %v2293
    %v2295 = vpop.xlane.xlu0 %2294
    %vm2296 = vcmp.eq.f32.partialorder %v2293, %v2295
    %v2297 = vsel %vm2296, %v2292, inf
    %2298 = vmin.xlane.f32.xlu0 %v2297
    %v2299 = vpop.xlane.xlu0 %2298
    %v2300 = vcvt.f32.s32 %v2299
    %v2301 = vcvt.f32.s32 %v2295
    %v2302 = vshll.u32 %v2301, 16
    %v2303 = vadd.s32 %v2302, %v2300
    %v2304 = vand.u32 %v2106, 65535
    %v2305 = vshra.s32 %v2106, 16
    %v2306 = vcvt.s32.f32 %v2304
    %v2307 = vcvt.s32.f32 %v2305
    %2308 = vmin.xlane.f32.xlu0 %v2307
    %v2309 = vpop.xlane.xlu0 %2308
    %vm2310 = vcmp.eq.f32.partialorder %v2307, %v2309
    %v2311 = vsel %vm2310, %v2306, inf
    %2312 = vmin.xlane.f32.xlu0 %v2311
    %v2313 = vpop.xlane.xlu0 %2312
    %v2314 = vcvt.f32.s32 %v2313
    %v2315 = vcvt.f32.s32 %v2309
    %v2316 = vshll.u32 %v2315, 16
    %v2317 = vadd.s32 %v2316, %v2314
    %v2318 = vand.u32 %v2107, 65535
    %v2319 = vshra.s32 %v2107, 16
    %v2320 = vcvt.s32.f32 %v2318
    %v2321 = vcvt.s32.f32 %v2319
    %2322 = vmin.xlane.f32.xlu0 %v2321
    %v2323 = vpop.xlane.xlu0 %2322
    %vm2324 = vcmp.eq.f32.partialorder %v2321, %v2323
    %v2325 = vsel %vm2324, %v2320, inf
    %2326 = vmin.xlane.f32.xlu0 %v2325
    %v2327 = vpop.xlane.xlu0 %2326
    %v2328 = vcvt.f32.s32 %v2327
    %v2329 = vcvt.f32.s32 %v2323
    %v2330 = vshll.u32 %v2329, 16
    %v2331 = vadd.s32 %v2330, %v2328
    %vm2332 = vcmp.eq.s32.totalorder %v94, %v2121
    %vm2333 = vcmp.eq.s32.totalorder %v94, %v2135
    %vm2334 = vcmp.eq.s32.totalorder %v94, %v2149
    %vm2335 = vcmp.eq.s32.totalorder %v94, %v2163
    %vm2336 = vcmp.eq.s32.totalorder %v94, %v2177
    %vm2337 = vcmp.eq.s32.totalorder %v94, %v2191
    %vm2338 = vcmp.eq.s32.totalorder %v94, %v2205
    %vm2339 = vcmp.eq.s32.totalorder %v94, %v2219
    %vm2340 = vcmp.eq.s32.totalorder %v94, %v2233
    %vm2341 = vcmp.eq.s32.totalorder %v94, %v2247
    %vm2342 = vcmp.eq.s32.totalorder %v94, %v2261
    %vm2343 = vcmp.eq.s32.totalorder %v94, %v2275
    %vm2344 = vcmp.eq.s32.totalorder %v94, %v2289
    %vm2345 = vcmp.eq.s32.totalorder %v94, %v2303
    %vm2346 = vcmp.eq.s32.totalorder %v94, %v2317
    %vm2347 = vcmp.eq.s32.totalorder %v94, %v2331
    %v2348 = vsel %vm2332, %v1046, 0.0
    %v2349 = vsel %vm2333, %v1048, 0.0
    %v2350 = vsel %vm2334, %v1050, 0.0
    %v2351 = vsel %vm2335, %v1052, 0.0
    %v2352 = vsel %vm2336, %v1054, 0.0
    %v2353 = vsel %vm2337, %v1056, 0.0
    %v2354 = vsel %vm2338, %v1058, 0.0
    %v2355 = vsel %vm2339, %v1060, 0.0
    %v2356 = vsel %vm2340, %v1062, 0.0
    %v2357 = vsel %vm2341, %v1064, 0.0
    %v2358 = vsel %vm2342, %v1066, 0.0
    %v2359 = vsel %vm2343, %v1068, 0.0
    %v2360 = vsel %vm2344, %v1070, 0.0
    %v2361 = vsel %vm2345, %v1072, 0.0
    %v2362 = vsel %vm2346, %v1074, 0.0
    %v2363 = vsel %vm2347, %v1076, 0.0
    %v2364 = vadd.f32 %v2012, %v2348
    %v2365 = vadd.f32 %v2013, %v2349
    %v2366 = vadd.f32 %v2014, %v2350
    %v2367 = vadd.f32 %v2015, %v2351
    %v2368 = vadd.f32 %v2016, %v2352
    %v2369 = vadd.f32 %v2017, %v2353
    %v2370 = vadd.f32 %v2018, %v2354
    %v2371 = vadd.f32 %v2019, %v2355
    %v2372 = vadd.f32 %v2020, %v2356
    %v2373 = vadd.f32 %v2021, %v2357
    %v2374 = vadd.f32 %v2022, %v2358
    %v2375 = vadd.f32 %v2023, %v2359
    %v2376 = vadd.f32 %v2024, %v2360
    %v2377 = vadd.f32 %v2025, %v2361
    %v2378 = vadd.f32 %v2026, %v2362
    %v2379 = vadd.f32 %v2027, %v2363
    %v2380 = vsel %vm2332, -1.0, %v2028
    %v2381 = vsel %vm2333, -1.0, %v2029
    %v2382 = vsel %vm2334, -1.0, %v2030
    %v2383 = vsel %vm2335, -1.0, %v2031
    %v2384 = vsel %vm2336, -1.0, %v2032
    %v2385 = vsel %vm2337, -1.0, %v2033
    %v2386 = vsel %vm2338, -1.0, %v2034
    %v2387 = vsel %vm2339, -1.0, %v2035
    %v2388 = vsel %vm2340, -1.0, %v2036
    %v2389 = vsel %vm2341, -1.0, %v2037
    %v2390 = vsel %vm2342, -1.0, %v2038
    %v2391 = vsel %vm2343, -1.0, %v2039
    %v2392 = vsel %vm2344, -1.0, %v2040
    %v2393 = vsel %vm2345, -1.0, %v2041
    %v2394 = vsel %vm2346, -1.0, %v2042
    %v2395 = vsel %vm2347, -1.0, %v2043
    %2396 = vmax.xlane.f32.xlu0 %v2380
    %v2397 = vpop.xlane.xlu0 %2396
    %2398 = vmax.xlane.f32.xlu0 %v2381
    %v2399 = vpop.xlane.xlu0 %2398
    %2400 = vmax.xlane.f32.xlu0 %v2382
    %v2401 = vpop.xlane.xlu0 %2400
    %2402 = vmax.xlane.f32.xlu0 %v2383
    %v2403 = vpop.xlane.xlu0 %2402
    %2404 = vmax.xlane.f32.xlu0 %v2384
    %v2405 = vpop.xlane.xlu0 %2404
    %2406 = vmax.xlane.f32.xlu0 %v2385
    %v2407 = vpop.xlane.xlu0 %2406
    %2408 = vmax.xlane.f32.xlu0 %v2386
    %v2409 = vpop.xlane.xlu0 %2408
    %2410 = vmax.xlane.f32.xlu0 %v2387
    %v2411 = vpop.xlane.xlu0 %2410
    %2412 = vmax.xlane.f32.xlu0 %v2388
    %v2413 = vpop.xlane.xlu0 %2412
    %2414 = vmax.xlane.f32.xlu0 %v2389
    %v2415 = vpop.xlane.xlu0 %2414
    %2416 = vmax.xlane.f32.xlu0 %v2390
    %v2417 = vpop.xlane.xlu0 %2416
    %2418 = vmax.xlane.f32.xlu0 %v2391
    %v2419 = vpop.xlane.xlu0 %2418
    %2420 = vmax.xlane.f32.xlu0 %v2392
    %v2421 = vpop.xlane.xlu0 %2420
    %2422 = vmax.xlane.f32.xlu0 %v2393
    %v2423 = vpop.xlane.xlu0 %2422
    %2424 = vmax.xlane.f32.xlu0 %v2394
    %v2425 = vpop.xlane.xlu0 %2424
    %2426 = vmax.xlane.f32.xlu0 %v2395
    %v2427 = vpop.xlane.xlu0 %2426
    %vm2428 = vcmp.eq.f32.partialorder %v2380, %v2397
    %vm2429 = vcmp.eq.f32.partialorder %v2381, %v2399
    %vm2430 = vcmp.eq.f32.partialorder %v2382, %v2401
    %vm2431 = vcmp.eq.f32.partialorder %v2383, %v2403
    %vm2432 = vcmp.eq.f32.partialorder %v2384, %v2405
    %vm2433 = vcmp.eq.f32.partialorder %v2385, %v2407
    %vm2434 = vcmp.eq.f32.partialorder %v2386, %v2409
    %vm2435 = vcmp.eq.f32.partialorder %v2387, %v2411
    %vm2436 = vcmp.eq.f32.partialorder %v2388, %v2413
    %vm2437 = vcmp.eq.f32.partialorder %v2389, %v2415
    %vm2438 = vcmp.eq.f32.partialorder %v2390, %v2417
    %vm2439 = vcmp.eq.f32.partialorder %v2391, %v2419
    %vm2440 = vcmp.eq.f32.partialorder %v2392, %v2421
    %vm2441 = vcmp.eq.f32.partialorder %v2393, %v2423
    %vm2442 = vcmp.eq.f32.partialorder %v2394, %v2425
    %vm2443 = vcmp.eq.f32.partialorder %v2395, %v2427
    %v2444 = vsel %vm2428, %v94, 128
    %v2445 = vsel %vm2429, %v94, 128
    %v2446 = vsel %vm2430, %v94, 128
    %v2447 = vsel %vm2431, %v94, 128
    %v2448 = vsel %vm2432, %v94, 128
    %v2449 = vsel %vm2433, %v94, 128
    %v2450 = vsel %vm2434, %v94, 128
    %v2451 = vsel %vm2435, %v94, 128
    %v2452 = vsel %vm2436, %v94, 128
    %v2453 = vsel %vm2437, %v94, 128
    %v2454 = vsel %vm2438, %v94, 128
    %v2455 = vsel %vm2439, %v94, 128
    %v2456 = vsel %vm2440, %v94, 128
    %v2457 = vsel %vm2441, %v94, 128
    %v2458 = vsel %vm2442, %v94, 128
    %v2459 = vsel %vm2443, %v94, 128
    %v2460 = vand.u32 %v2444, 65535
    %v2461 = vshra.s32 %v2444, 16
    %v2462 = vcvt.s32.f32 %v2460
    %v2463 = vcvt.s32.f32 %v2461
    %2464 = vmin.xlane.f32.xlu0 %v2463
    %v2465 = vpop.xlane.xlu0 %2464
    %vm2466 = vcmp.eq.f32.partialorder %v2463, %v2465
    %v2467 = vsel %vm2466, %v2462, inf
    %2468 = vmin.xlane.f32.xlu0 %v2467
    %v2469 = vpop.xlane.xlu0 %2468
    %v2470 = vcvt.f32.s32 %v2469
    %v2471 = vcvt.f32.s32 %v2465
    %v2472 = vshll.u32 %v2471, 16
    %v2473 = vadd.s32 %v2472, %v2470
    %v2474 = vand.u32 %v2445, 65535
    %v2475 = vshra.s32 %v2445, 16
    %v2476 = vcvt.s32.f32 %v2474
    %v2477 = vcvt.s32.f32 %v2475
    %2478 = vmin.xlane.f32.xlu0 %v2477
    %v2479 = vpop.xlane.xlu0 %2478
    %vm2480 = vcmp.eq.f32.partialorder %v2477, %v2479
    %v2481 = vsel %vm2480, %v2476, inf
    %2482 = vmin.xlane.f32.xlu0 %v2481
    %v2483 = vpop.xlane.xlu0 %2482
    %v2484 = vcvt.f32.s32 %v2483
    %v2485 = vcvt.f32.s32 %v2479
    %v2486 = vshll.u32 %v2485, 16
    %v2487 = vadd.s32 %v2486, %v2484
    %v2488 = vand.u32 %v2446, 65535
    %v2489 = vshra.s32 %v2446, 16
    %v2490 = vcvt.s32.f32 %v2488
    %v2491 = vcvt.s32.f32 %v2489
    %2492 = vmin.xlane.f32.xlu0 %v2491
    %v2493 = vpop.xlane.xlu0 %2492
    %vm2494 = vcmp.eq.f32.partialorder %v2491, %v2493
    %v2495 = vsel %vm2494, %v2490, inf
    %2496 = vmin.xlane.f32.xlu0 %v2495
    %v2497 = vpop.xlane.xlu0 %2496
    %v2498 = vcvt.f32.s32 %v2497
    %v2499 = vcvt.f32.s32 %v2493
    %v2500 = vshll.u32 %v2499, 16
    %v2501 = vadd.s32 %v2500, %v2498
    %v2502 = vand.u32 %v2447, 65535
    %v2503 = vshra.s32 %v2447, 16
    %v2504 = vcvt.s32.f32 %v2502
    %v2505 = vcvt.s32.f32 %v2503
    %2506 = vmin.xlane.f32.xlu0 %v2505
    %v2507 = vpop.xlane.xlu0 %2506
    %vm2508 = vcmp.eq.f32.partialorder %v2505, %v2507
    %v2509 = vsel %vm2508, %v2504, inf
    %2510 = vmin.xlane.f32.xlu0 %v2509
    %v2511 = vpop.xlane.xlu0 %2510
    %v2512 = vcvt.f32.s32 %v2511
    %v2513 = vcvt.f32.s32 %v2507
    %v2514 = vshll.u32 %v2513, 16
    %v2515 = vadd.s32 %v2514, %v2512
    %v2516 = vand.u32 %v2448, 65535
    %v2517 = vshra.s32 %v2448, 16
    %v2518 = vcvt.s32.f32 %v2516
    %v2519 = vcvt.s32.f32 %v2517
    %2520 = vmin.xlane.f32.xlu0 %v2519
    %v2521 = vpop.xlane.xlu0 %2520
    %vm2522 = vcmp.eq.f32.partialorder %v2519, %v2521
    %v2523 = vsel %vm2522, %v2518, inf
    %2524 = vmin.xlane.f32.xlu0 %v2523
    %v2525 = vpop.xlane.xlu0 %2524
    %v2526 = vcvt.f32.s32 %v2525
    %v2527 = vcvt.f32.s32 %v2521
    %v2528 = vshll.u32 %v2527, 16
    %v2529 = vadd.s32 %v2528, %v2526
    %v2530 = vand.u32 %v2449, 65535
    %v2531 = vshra.s32 %v2449, 16
    %v2532 = vcvt.s32.f32 %v2530
    %v2533 = vcvt.s32.f32 %v2531
    %2534 = vmin.xlane.f32.xlu0 %v2533
    %v2535 = vpop.xlane.xlu0 %2534
    %vm2536 = vcmp.eq.f32.partialorder %v2533, %v2535
    %v2537 = vsel %vm2536, %v2532, inf
    %2538 = vmin.xlane.f32.xlu0 %v2537
    %v2539 = vpop.xlane.xlu0 %2538
    %v2540 = vcvt.f32.s32 %v2539
    %v2541 = vcvt.f32.s32 %v2535
    %v2542 = vshll.u32 %v2541, 16
    %v2543 = vadd.s32 %v2542, %v2540
    %v2544 = vand.u32 %v2450, 65535
    %v2545 = vshra.s32 %v2450, 16
    %v2546 = vcvt.s32.f32 %v2544
    %v2547 = vcvt.s32.f32 %v2545
    %2548 = vmin.xlane.f32.xlu0 %v2547
    %v2549 = vpop.xlane.xlu0 %2548
    %vm2550 = vcmp.eq.f32.partialorder %v2547, %v2549
    %v2551 = vsel %vm2550, %v2546, inf
    %2552 = vmin.xlane.f32.xlu0 %v2551
    %v2553 = vpop.xlane.xlu0 %2552
    %v2554 = vcvt.f32.s32 %v2553
    %v2555 = vcvt.f32.s32 %v2549
    %v2556 = vshll.u32 %v2555, 16
    %v2557 = vadd.s32 %v2556, %v2554
    %v2558 = vand.u32 %v2451, 65535
    %v2559 = vshra.s32 %v2451, 16
    %v2560 = vcvt.s32.f32 %v2558
    %v2561 = vcvt.s32.f32 %v2559
    %2562 = vmin.xlane.f32.xlu0 %v2561
    %v2563 = vpop.xlane.xlu0 %2562
    %vm2564 = vcmp.eq.f32.partialorder %v2561, %v2563
    %v2565 = vsel %vm2564, %v2560, inf
    %2566 = vmin.xlane.f32.xlu0 %v2565
    %v2567 = vpop.xlane.xlu0 %2566
    %v2568 = vcvt.f32.s32 %v2567
    %v2569 = vcvt.f32.s32 %v2563
    %v2570 = vshll.u32 %v2569, 16
    %v2571 = vadd.s32 %v2570, %v2568
    %v2572 = vand.u32 %v2452, 65535
    %v2573 = vshra.s32 %v2452, 16
    %v2574 = vcvt.s32.f32 %v2572
    %v2575 = vcvt.s32.f32 %v2573
    %2576 = vmin.xlane.f32.xlu0 %v2575
    %v2577 = vpop.xlane.xlu0 %2576
    %vm2578 = vcmp.eq.f32.partialorder %v2575, %v2577
    %v2579 = vsel %vm2578, %v2574, inf
    %2580 = vmin.xlane.f32.xlu0 %v2579
    %v2581 = vpop.xlane.xlu0 %2580
    %v2582 = vcvt.f32.s32 %v2581
    %v2583 = vcvt.f32.s32 %v2577
    %v2584 = vshll.u32 %v2583, 16
    %v2585 = vadd.s32 %v2584, %v2582
    %v2586 = vand.u32 %v2453, 65535
    %v2587 = vshra.s32 %v2453, 16
    %v2588 = vcvt.s32.f32 %v2586
    %v2589 = vcvt.s32.f32 %v2587
    %2590 = vmin.xlane.f32.xlu0 %v2589
    %v2591 = vpop.xlane.xlu0 %2590
    %vm2592 = vcmp.eq.f32.partialorder %v2589, %v2591
    %v2593 = vsel %vm2592, %v2588, inf
    %2594 = vmin.xlane.f32.xlu0 %v2593
    %v2595 = vpop.xlane.xlu0 %2594
    %v2596 = vcvt.f32.s32 %v2595
    %v2597 = vcvt.f32.s32 %v2591
    %v2598 = vshll.u32 %v2597, 16
    %v2599 = vadd.s32 %v2598, %v2596
    %v2600 = vand.u32 %v2454, 65535
    %v2601 = vshra.s32 %v2454, 16
    %v2602 = vcvt.s32.f32 %v2600
    %v2603 = vcvt.s32.f32 %v2601
    %2604 = vmin.xlane.f32.xlu0 %v2603
    %v2605 = vpop.xlane.xlu0 %2604
    %vm2606 = vcmp.eq.f32.partialorder %v2603, %v2605
    %v2607 = vsel %vm2606, %v2602, inf
    %2608 = vmin.xlane.f32.xlu0 %v2607
    %v2609 = vpop.xlane.xlu0 %2608
    %v2610 = vcvt.f32.s32 %v2609
    %v2611 = vcvt.f32.s32 %v2605
    %v2612 = vshll.u32 %v2611, 16
    %v2613 = vadd.s32 %v2612, %v2610
    %v2614 = vand.u32 %v2455, 65535
    %v2615 = vshra.s32 %v2455, 16
    %v2616 = vcvt.s32.f32 %v2614
    %v2617 = vcvt.s32.f32 %v2615
    %2618 = vmin.xlane.f32.xlu0 %v2617
    %v2619 = vpop.xlane.xlu0 %2618
    %vm2620 = vcmp.eq.f32.partialorder %v2617, %v2619
    %v2621 = vsel %vm2620, %v2616, inf
    %2622 = vmin.xlane.f32.xlu0 %v2621
    %v2623 = vpop.xlane.xlu0 %2622
    %v2624 = vcvt.f32.s32 %v2623
    %v2625 = vcvt.f32.s32 %v2619
    %v2626 = vshll.u32 %v2625, 16
    %v2627 = vadd.s32 %v2626, %v2624
    %v2628 = vand.u32 %v2456, 65535
    %v2629 = vshra.s32 %v2456, 16
    %v2630 = vcvt.s32.f32 %v2628
    %v2631 = vcvt.s32.f32 %v2629
    %2632 = vmin.xlane.f32.xlu0 %v2631
    %v2633 = vpop.xlane.xlu0 %2632
    %vm2634 = vcmp.eq.f32.partialorder %v2631, %v2633
    %v2635 = vsel %vm2634, %v2630, inf
    %2636 = vmin.xlane.f32.xlu0 %v2635
    %v2637 = vpop.xlane.xlu0 %2636
    %v2638 = vcvt.f32.s32 %v2637
    %v2639 = vcvt.f32.s32 %v2633
    %v2640 = vshll.u32 %v2639, 16
    %v2641 = vadd.s32 %v2640, %v2638
    %v2642 = vand.u32 %v2457, 65535
    %v2643 = vshra.s32 %v2457, 16
    %v2644 = vcvt.s32.f32 %v2642
    %v2645 = vcvt.s32.f32 %v2643
    %2646 = vmin.xlane.f32.xlu0 %v2645
    %v2647 = vpop.xlane.xlu0 %2646
    %vm2648 = vcmp.eq.f32.partialorder %v2645, %v2647
    %v2649 = vsel %vm2648, %v2644, inf
    %2650 = vmin.xlane.f32.xlu0 %v2649
    %v2651 = vpop.xlane.xlu0 %2650
    %v2652 = vcvt.f32.s32 %v2651
    %v2653 = vcvt.f32.s32 %v2647
    %v2654 = vshll.u32 %v2653, 16
    %v2655 = vadd.s32 %v2654, %v2652
    %v2656 = vand.u32 %v2458, 65535
    %v2657 = vshra.s32 %v2458, 16
    %v2658 = vcvt.s32.f32 %v2656
    %v2659 = vcvt.s32.f32 %v2657
    %2660 = vmin.xlane.f32.xlu0 %v2659
    %v2661 = vpop.xlane.xlu0 %2660
    %vm2662 = vcmp.eq.f32.partialorder %v2659, %v2661
    %v2663 = vsel %vm2662, %v2658, inf
    %2664 = vmin.xlane.f32.xlu0 %v2663
    %v2665 = vpop.xlane.xlu0 %2664
    %v2666 = vcvt.f32.s32 %v2665
    %v2667 = vcvt.f32.s32 %v2661
    %v2668 = vshll.u32 %v2667, 16
    %v2669 = vadd.s32 %v2668, %v2666
    %v2670 = vand.u32 %v2459, 65535
    %v2671 = vshra.s32 %v2459, 16
    %v2672 = vcvt.s32.f32 %v2670
    %v2673 = vcvt.s32.f32 %v2671
    %2674 = vmin.xlane.f32.xlu0 %v2673
    %v2675 = vpop.xlane.xlu0 %2674
    %vm2676 = vcmp.eq.f32.partialorder %v2673, %v2675
    %v2677 = vsel %vm2676, %v2672, inf
    %2678 = vmin.xlane.f32.xlu0 %v2677
    %v2679 = vpop.xlane.xlu0 %2678
    %v2680 = vcvt.f32.s32 %v2679
    %v2681 = vcvt.f32.s32 %v2675
    %v2682 = vshll.u32 %v2681, 16
    %v2683 = vadd.s32 %v2682, %v2680
    %vm2684 = vcmp.eq.s32.totalorder %v94, %v2473
    %vm2685 = vcmp.eq.s32.totalorder %v94, %v2487
    %vm2686 = vcmp.eq.s32.totalorder %v94, %v2501
    %vm2687 = vcmp.eq.s32.totalorder %v94, %v2515
    %vm2688 = vcmp.eq.s32.totalorder %v94, %v2529
    %vm2689 = vcmp.eq.s32.totalorder %v94, %v2543
    %vm2690 = vcmp.eq.s32.totalorder %v94, %v2557
    %vm2691 = vcmp.eq.s32.totalorder %v94, %v2571
    %vm2692 = vcmp.eq.s32.totalorder %v94, %v2585
    %vm2693 = vcmp.eq.s32.totalorder %v94, %v2599
    %vm2694 = vcmp.eq.s32.totalorder %v94, %v2613
    %vm2695 = vcmp.eq.s32.totalorder %v94, %v2627
    %vm2696 = vcmp.eq.s32.totalorder %v94, %v2641
    %vm2697 = vcmp.eq.s32.totalorder %v94, %v2655
    %vm2698 = vcmp.eq.s32.totalorder %v94, %v2669
    %vm2699 = vcmp.eq.s32.totalorder %v94, %v2683
    %v2700 = vsel %vm2684, %v1126, 0.0
    %v2701 = vsel %vm2685, %v1128, 0.0
    %v2702 = vsel %vm2686, %v1130, 0.0
    %v2703 = vsel %vm2687, %v1132, 0.0
    %v2704 = vsel %vm2688, %v1134, 0.0
    %v2705 = vsel %vm2689, %v1136, 0.0
    %v2706 = vsel %vm2690, %v1138, 0.0
    %v2707 = vsel %vm2691, %v1140, 0.0
    %v2708 = vsel %vm2692, %v1142, 0.0
    %v2709 = vsel %vm2693, %v1144, 0.0
    %v2710 = vsel %vm2694, %v1146, 0.0
    %v2711 = vsel %vm2695, %v1148, 0.0
    %v2712 = vsel %vm2696, %v1150, 0.0
    %v2713 = vsel %vm2697, %v1152, 0.0
    %v2714 = vsel %vm2698, %v1154, 0.0
    %v2715 = vsel %vm2699, %v1156, 0.0
    %v2716 = vadd.f32 %v2364, %v2700
    %v2717 = vadd.f32 %v2365, %v2701
    %v2718 = vadd.f32 %v2366, %v2702
    %v2719 = vadd.f32 %v2367, %v2703
    %v2720 = vadd.f32 %v2368, %v2704
    %v2721 = vadd.f32 %v2369, %v2705
    %v2722 = vadd.f32 %v2370, %v2706
    %v2723 = vadd.f32 %v2371, %v2707
    %v2724 = vadd.f32 %v2372, %v2708
    %v2725 = vadd.f32 %v2373, %v2709
    %v2726 = vadd.f32 %v2374, %v2710
    %v2727 = vadd.f32 %v2375, %v2711
    %v2728 = vadd.f32 %v2376, %v2712
    %v2729 = vadd.f32 %v2377, %v2713
    %v2730 = vadd.f32 %v2378, %v2714
    %v2731 = vadd.f32 %v2379, %v2715
    %v2732 = vsel %vm2684, -1.0, %v2380
    %v2733 = vsel %vm2685, -1.0, %v2381
    %v2734 = vsel %vm2686, -1.0, %v2382
    %v2735 = vsel %vm2687, -1.0, %v2383
    %v2736 = vsel %vm2688, -1.0, %v2384
    %v2737 = vsel %vm2689, -1.0, %v2385
    %v2738 = vsel %vm2690, -1.0, %v2386
    %v2739 = vsel %vm2691, -1.0, %v2387
    %v2740 = vsel %vm2692, -1.0, %v2388
    %v2741 = vsel %vm2693, -1.0, %v2389
    %v2742 = vsel %vm2694, -1.0, %v2390
    %v2743 = vsel %vm2695, -1.0, %v2391
    %v2744 = vsel %vm2696, -1.0, %v2392
    %v2745 = vsel %vm2697, -1.0, %v2393
    %v2746 = vsel %vm2698, -1.0, %v2394
    %v2747 = vsel %vm2699, -1.0, %v2395
    %2748 = vmax.xlane.f32.xlu0 %v2732
    %v2749 = vpop.xlane.xlu0 %2748
    %2750 = vmax.xlane.f32.xlu0 %v2733
    %v2751 = vpop.xlane.xlu0 %2750
    %2752 = vmax.xlane.f32.xlu0 %v2734
    %v2753 = vpop.xlane.xlu0 %2752
    %2754 = vmax.xlane.f32.xlu0 %v2735
    %v2755 = vpop.xlane.xlu0 %2754
    %2756 = vmax.xlane.f32.xlu0 %v2736
    %v2757 = vpop.xlane.xlu0 %2756
    %2758 = vmax.xlane.f32.xlu0 %v2737
    %v2759 = vpop.xlane.xlu0 %2758
    %2760 = vmax.xlane.f32.xlu0 %v2738
    %v2761 = vpop.xlane.xlu0 %2760
    %2762 = vmax.xlane.f32.xlu0 %v2739
    %v2763 = vpop.xlane.xlu0 %2762
    %2764 = vmax.xlane.f32.xlu0 %v2740
    %v2765 = vpop.xlane.xlu0 %2764
    %2766 = vmax.xlane.f32.xlu0 %v2741
    %v2767 = vpop.xlane.xlu0 %2766
    %2768 = vmax.xlane.f32.xlu0 %v2742
    %v2769 = vpop.xlane.xlu0 %2768
    %2770 = vmax.xlane.f32.xlu0 %v2743
    %v2771 = vpop.xlane.xlu0 %2770
    %2772 = vmax.xlane.f32.xlu0 %v2744
    %v2773 = vpop.xlane.xlu0 %2772
    %2774 = vmax.xlane.f32.xlu0 %v2745
    %v2775 = vpop.xlane.xlu0 %2774
    %2776 = vmax.xlane.f32.xlu0 %v2746
    %v2777 = vpop.xlane.xlu0 %2776
    %2778 = vmax.xlane.f32.xlu0 %v2747
    %v2779 = vpop.xlane.xlu0 %2778
    %vm2780 = vcmp.eq.f32.partialorder %v2732, %v2749
    %vm2781 = vcmp.eq.f32.partialorder %v2733, %v2751
    %vm2782 = vcmp.eq.f32.partialorder %v2734, %v2753
    %vm2783 = vcmp.eq.f32.partialorder %v2735, %v2755
    %vm2784 = vcmp.eq.f32.partialorder %v2736, %v2757
    %vm2785 = vcmp.eq.f32.partialorder %v2737, %v2759
    %vm2786 = vcmp.eq.f32.partialorder %v2738, %v2761
    %vm2787 = vcmp.eq.f32.partialorder %v2739, %v2763
    %vm2788 = vcmp.eq.f32.partialorder %v2740, %v2765
    %vm2789 = vcmp.eq.f32.partialorder %v2741, %v2767
    %vm2790 = vcmp.eq.f32.partialorder %v2742, %v2769
    %vm2791 = vcmp.eq.f32.partialorder %v2743, %v2771
    %vm2792 = vcmp.eq.f32.partialorder %v2744, %v2773
    %vm2793 = vcmp.eq.f32.partialorder %v2745, %v2775
    %vm2794 = vcmp.eq.f32.partialorder %v2746, %v2777
    %vm2795 = vcmp.eq.f32.partialorder %v2747, %v2779
    %v2796 = vsel %vm2780, %v94, 128
    %v2797 = vsel %vm2781, %v94, 128
    %v2798 = vsel %vm2782, %v94, 128
    %v2799 = vsel %vm2783, %v94, 128
    %v2800 = vsel %vm2784, %v94, 128
    %v2801 = vsel %vm2785, %v94, 128
    %v2802 = vsel %vm2786, %v94, 128
    %v2803 = vsel %vm2787, %v94, 128
    %v2804 = vsel %vm2788, %v94, 128
    %v2805 = vsel %vm2789, %v94, 128
    %v2806 = vsel %vm2790, %v94, 128
    %v2807 = vsel %vm2791, %v94, 128
    %v2808 = vsel %vm2792, %v94, 128
    %v2809 = vsel %vm2793, %v94, 128
    %v2810 = vsel %vm2794, %v94, 128
    %v2811 = vsel %vm2795, %v94, 128
    %v2812 = vand.u32 %v2796, 65535
    %v2813 = vshra.s32 %v2796, 16
    %v2814 = vcvt.s32.f32 %v2812
    %v2815 = vcvt.s32.f32 %v2813
    %2816 = vmin.xlane.f32.xlu0 %v2815
    %v2817 = vpop.xlane.xlu0 %2816
    %vm2818 = vcmp.eq.f32.partialorder %v2815, %v2817
    %v2819 = vsel %vm2818, %v2814, inf
    %2820 = vmin.xlane.f32.xlu0 %v2819
    %v2821 = vpop.xlane.xlu0 %2820
    %v2822 = vcvt.f32.s32 %v2821
    %v2823 = vcvt.f32.s32 %v2817
    %v2824 = vshll.u32 %v2823, 16
    %v2825 = vadd.s32 %v2824, %v2822
    %v2826 = vand.u32 %v2797, 65535
    %v2827 = vshra.s32 %v2797, 16
    %v2828 = vcvt.s32.f32 %v2826
    %v2829 = vcvt.s32.f32 %v2827
    %2830 = vmin.xlane.f32.xlu0 %v2829
    %v2831 = vpop.xlane.xlu0 %2830
    %vm2832 = vcmp.eq.f32.partialorder %v2829, %v2831
    %v2833 = vsel %vm2832, %v2828, inf
    %2834 = vmin.xlane.f32.xlu0 %v2833
    %v2835 = vpop.xlane.xlu0 %2834
    %v2836 = vcvt.f32.s32 %v2835
    %v2837 = vcvt.f32.s32 %v2831
    %v2838 = vshll.u32 %v2837, 16
    %v2839 = vadd.s32 %v2838, %v2836
    %v2840 = vand.u32 %v2798, 65535
    %v2841 = vshra.s32 %v2798, 16
    %v2842 = vcvt.s32.f32 %v2840
    %v2843 = vcvt.s32.f32 %v2841
    %2844 = vmin.xlane.f32.xlu0 %v2843
    %v2845 = vpop.xlane.xlu0 %2844
    %vm2846 = vcmp.eq.f32.partialorder %v2843, %v2845
    %v2847 = vsel %vm2846, %v2842, inf
    %2848 = vmin.xlane.f32.xlu0 %v2847
    %v2849 = vpop.xlane.xlu0 %2848
    %v2850 = vcvt.f32.s32 %v2849
    %v2851 = vcvt.f32.s32 %v2845
    %v2852 = vshll.u32 %v2851, 16
    %v2853 = vadd.s32 %v2852, %v2850
    %v2854 = vand.u32 %v2799, 65535
    %v2855 = vshra.s32 %v2799, 16
    %v2856 = vcvt.s32.f32 %v2854
    %v2857 = vcvt.s32.f32 %v2855
    %2858 = vmin.xlane.f32.xlu0 %v2857
    %v2859 = vpop.xlane.xlu0 %2858
    %vm2860 = vcmp.eq.f32.partialorder %v2857, %v2859
    %v2861 = vsel %vm2860, %v2856, inf
    %2862 = vmin.xlane.f32.xlu0 %v2861
    %v2863 = vpop.xlane.xlu0 %2862
    %v2864 = vcvt.f32.s32 %v2863
    %v2865 = vcvt.f32.s32 %v2859
    %v2866 = vshll.u32 %v2865, 16
    %v2867 = vadd.s32 %v2866, %v2864
    %v2868 = vand.u32 %v2800, 65535
    %v2869 = vshra.s32 %v2800, 16
    %v2870 = vcvt.s32.f32 %v2868
    %v2871 = vcvt.s32.f32 %v2869
    %2872 = vmin.xlane.f32.xlu0 %v2871
    %v2873 = vpop.xlane.xlu0 %2872
    %vm2874 = vcmp.eq.f32.partialorder %v2871, %v2873
    %v2875 = vsel %vm2874, %v2870, inf
    %2876 = vmin.xlane.f32.xlu0 %v2875
    %v2877 = vpop.xlane.xlu0 %2876
    %v2878 = vcvt.f32.s32 %v2877
    %v2879 = vcvt.f32.s32 %v2873
    %v2880 = vshll.u32 %v2879, 16
    %v2881 = vadd.s32 %v2880, %v2878
    %v2882 = vand.u32 %v2801, 65535
    %v2883 = vshra.s32 %v2801, 16
    %v2884 = vcvt.s32.f32 %v2882
    %v2885 = vcvt.s32.f32 %v2883
    %2886 = vmin.xlane.f32.xlu0 %v2885
    %v2887 = vpop.xlane.xlu0 %2886
    %vm2888 = vcmp.eq.f32.partialorder %v2885, %v2887
    %v2889 = vsel %vm2888, %v2884, inf
    %2890 = vmin.xlane.f32.xlu0 %v2889
    %v2891 = vpop.xlane.xlu0 %2890
    %v2892 = vcvt.f32.s32 %v2891
    %v2893 = vcvt.f32.s32 %v2887
    %v2894 = vshll.u32 %v2893, 16
    %v2895 = vadd.s32 %v2894, %v2892
    %v2896 = vand.u32 %v2802, 65535
    %v2897 = vshra.s32 %v2802, 16
    %v2898 = vcvt.s32.f32 %v2896
    %v2899 = vcvt.s32.f32 %v2897
    %2900 = vmin.xlane.f32.xlu0 %v2899
    %v2901 = vpop.xlane.xlu0 %2900
    %vm2902 = vcmp.eq.f32.partialorder %v2899, %v2901
    %v2903 = vsel %vm2902, %v2898, inf
    %2904 = vmin.xlane.f32.xlu0 %v2903
    %v2905 = vpop.xlane.xlu0 %2904
    %v2906 = vcvt.f32.s32 %v2905
    %v2907 = vcvt.f32.s32 %v2901
    %v2908 = vshll.u32 %v2907, 16
    %v2909 = vadd.s32 %v2908, %v2906
    %v2910 = vand.u32 %v2803, 65535
    %v2911 = vshra.s32 %v2803, 16
    %v2912 = vcvt.s32.f32 %v2910
    %v2913 = vcvt.s32.f32 %v2911
    %2914 = vmin.xlane.f32.xlu0 %v2913
    %v2915 = vpop.xlane.xlu0 %2914
    %vm2916 = vcmp.eq.f32.partialorder %v2913, %v2915
    %v2917 = vsel %vm2916, %v2912, inf
    %2918 = vmin.xlane.f32.xlu0 %v2917
    %v2919 = vpop.xlane.xlu0 %2918
    %v2920 = vcvt.f32.s32 %v2919
    %v2921 = vcvt.f32.s32 %v2915
    %v2922 = vshll.u32 %v2921, 16
    %v2923 = vadd.s32 %v2922, %v2920
    %v2924 = vand.u32 %v2804, 65535
    %v2925 = vshra.s32 %v2804, 16
    %v2926 = vcvt.s32.f32 %v2924
    %v2927 = vcvt.s32.f32 %v2925
    %2928 = vmin.xlane.f32.xlu0 %v2927
    %v2929 = vpop.xlane.xlu0 %2928
    %vm2930 = vcmp.eq.f32.partialorder %v2927, %v2929
    %v2931 = vsel %vm2930, %v2926, inf
    %2932 = vmin.xlane.f32.xlu0 %v2931
    %v2933 = vpop.xlane.xlu0 %2932
    %v2934 = vcvt.f32.s32 %v2933
    %v2935 = vcvt.f32.s32 %v2929
    %v2936 = vshll.u32 %v2935, 16
    %v2937 = vadd.s32 %v2936, %v2934
    %v2938 = vand.u32 %v2805, 65535
    %v2939 = vshra.s32 %v2805, 16
    %v2940 = vcvt.s32.f32 %v2938
    %v2941 = vcvt.s32.f32 %v2939
    %2942 = vmin.xlane.f32.xlu0 %v2941
    %v2943 = vpop.xlane.xlu0 %2942
    %vm2944 = vcmp.eq.f32.partialorder %v2941, %v2943
    %v2945 = vsel %vm2944, %v2940, inf
    %2946 = vmin.xlane.f32.xlu0 %v2945
    %v2947 = vpop.xlane.xlu0 %2946
    %v2948 = vcvt.f32.s32 %v2947
    %v2949 = vcvt.f32.s32 %v2943
    %v2950 = vshll.u32 %v2949, 16
    %v2951 = vadd.s32 %v2950, %v2948
    %v2952 = vand.u32 %v2806, 65535
    %v2953 = vshra.s32 %v2806, 16
    %v2954 = vcvt.s32.f32 %v2952
    %v2955 = vcvt.s32.f32 %v2953
    %2956 = vmin.xlane.f32.xlu0 %v2955
    %v2957 = vpop.xlane.xlu0 %2956
    %vm2958 = vcmp.eq.f32.partialorder %v2955, %v2957
    %v2959 = vsel %vm2958, %v2954, inf
    %2960 = vmin.xlane.f32.xlu0 %v2959
    %v2961 = vpop.xlane.xlu0 %2960
    %v2962 = vcvt.f32.s32 %v2961
    %v2963 = vcvt.f32.s32 %v2957
    %v2964 = vshll.u32 %v2963, 16
    %v2965 = vadd.s32 %v2964, %v2962
    %v2966 = vand.u32 %v2807, 65535
    %v2967 = vshra.s32 %v2807, 16
    %v2968 = vcvt.s32.f32 %v2966
    %v2969 = vcvt.s32.f32 %v2967
    %2970 = vmin.xlane.f32.xlu0 %v2969
    %v2971 = vpop.xlane.xlu0 %2970
    %vm2972 = vcmp.eq.f32.partialorder %v2969, %v2971
    %v2973 = vsel %vm2972, %v2968, inf
    %2974 = vmin.xlane.f32.xlu0 %v2973
    %v2975 = vpop.xlane.xlu0 %2974
    %v2976 = vcvt.f32.s32 %v2975
    %v2977 = vcvt.f32.s32 %v2971
    %v2978 = vshll.u32 %v2977, 16
    %v2979 = vadd.s32 %v2978, %v2976
    %v2980 = vand.u32 %v2808, 65535
    %v2981 = vshra.s32 %v2808, 16
    %v2982 = vcvt.s32.f32 %v2980
    %v2983 = vcvt.s32.f32 %v2981
    %2984 = vmin.xlane.f32.xlu0 %v2983
    %v2985 = vpop.xlane.xlu0 %2984
    %vm2986 = vcmp.eq.f32.partialorder %v2983, %v2985
    %v2987 = vsel %vm2986, %v2982, inf
    %2988 = vmin.xlane.f32.xlu0 %v2987
    %v2989 = vpop.xlane.xlu0 %2988
    %v2990 = vcvt.f32.s32 %v2989
    %v2991 = vcvt.f32.s32 %v2985
    %v2992 = vshll.u32 %v2991, 16
    %v2993 = vadd.s32 %v2992, %v2990
    %v2994 = vand.u32 %v2809, 65535
    %v2995 = vshra.s32 %v2809, 16
    %v2996 = vcvt.s32.f32 %v2994
    %v2997 = vcvt.s32.f32 %v2995
    %2998 = vmin.xlane.f32.xlu0 %v2997
    %v2999 = vpop.xlane.xlu0 %2998
    %vm3000 = vcmp.eq.f32.partialorder %v2997, %v2999
    %v3001 = vsel %vm3000, %v2996, inf
    %3002 = vmin.xlane.f32.xlu0 %v3001
    %v3003 = vpop.xlane.xlu0 %3002
    %v3004 = vcvt.f32.s32 %v3003
    %v3005 = vcvt.f32.s32 %v2999
    %v3006 = vshll.u32 %v3005, 16
    %v3007 = vadd.s32 %v3006, %v3004
    %v3008 = vand.u32 %v2810, 65535
    %v3009 = vshra.s32 %v2810, 16
    %v3010 = vcvt.s32.f32 %v3008
    %v3011 = vcvt.s32.f32 %v3009
    %3012 = vmin.xlane.f32.xlu0 %v3011
    %v3013 = vpop.xlane.xlu0 %3012
    %vm3014 = vcmp.eq.f32.partialorder %v3011, %v3013
    %v3015 = vsel %vm3014, %v3010, inf
    %3016 = vmin.xlane.f32.xlu0 %v3015
    %v3017 = vpop.xlane.xlu0 %3016
    %v3018 = vcvt.f32.s32 %v3017
    %v3019 = vcvt.f32.s32 %v3013
    %v3020 = vshll.u32 %v3019, 16
    %v3021 = vadd.s32 %v3020, %v3018
    %v3022 = vand.u32 %v2811, 65535
    %v3023 = vshra.s32 %v2811, 16
    %v3024 = vcvt.s32.f32 %v3022
    %v3025 = vcvt.s32.f32 %v3023
    %3026 = vmin.xlane.f32.xlu0 %v3025
    %v3027 = vpop.xlane.xlu0 %3026
    %vm3028 = vcmp.eq.f32.partialorder %v3025, %v3027
    %v3029 = vsel %vm3028, %v3024, inf
    %3030 = vmin.xlane.f32.xlu0 %v3029
    %v3031 = vpop.xlane.xlu0 %3030
    %v3032 = vcvt.f32.s32 %v3031
    %v3033 = vcvt.f32.s32 %v3027
    %v3034 = vshll.u32 %v3033, 16
    %v3035 = vadd.s32 %v3034, %v3032
    %vm3036 = vcmp.eq.s32.totalorder %v94, %v2825
    %vm3037 = vcmp.eq.s32.totalorder %v94, %v2839
    %vm3038 = vcmp.eq.s32.totalorder %v94, %v2853
    %vm3039 = vcmp.eq.s32.totalorder %v94, %v2867
    %vm3040 = vcmp.eq.s32.totalorder %v94, %v2881
    %vm3041 = vcmp.eq.s32.totalorder %v94, %v2895
    %vm3042 = vcmp.eq.s32.totalorder %v94, %v2909
    %vm3043 = vcmp.eq.s32.totalorder %v94, %v2923
    %vm3044 = vcmp.eq.s32.totalorder %v94, %v2937
    %vm3045 = vcmp.eq.s32.totalorder %v94, %v2951
    %vm3046 = vcmp.eq.s32.totalorder %v94, %v2965
    %vm3047 = vcmp.eq.s32.totalorder %v94, %v2979
    %vm3048 = vcmp.eq.s32.totalorder %v94, %v2993
    %vm3049 = vcmp.eq.s32.totalorder %v94, %v3007
    %vm3050 = vcmp.eq.s32.totalorder %v94, %v3021
    %vm3051 = vcmp.eq.s32.totalorder %v94, %v3035
    %v3052 = vsel %vm3036, %v1206, 0.0
    %v3053 = vsel %vm3037, %v1208, 0.0
    %v3054 = vsel %vm3038, %v1210, 0.0
    %v3055 = vsel %vm3039, %v1212, 0.0
    %v3056 = vsel %vm3040, %v1214, 0.0
    %v3057 = vsel %vm3041, %v1216, 0.0
    %v3058 = vsel %vm3042, %v1218, 0.0
    %v3059 = vsel %vm3043, %v1220, 0.0
    %v3060 = vsel %vm3044, %v1222, 0.0
    %v3061 = vsel %vm3045, %v1224, 0.0
    %v3062 = vsel %vm3046, %v1226, 0.0
    %v3063 = vsel %vm3047, %v1228, 0.0
    %v3064 = vsel %vm3048, %v1230, 0.0
    %v3065 = vsel %vm3049, %v1232, 0.0
    %v3066 = vsel %vm3050, %v1234, 0.0
    %v3067 = vsel %vm3051, %v1236, 0.0
    %v3068 = vadd.f32 %v2716, %v3052
    %v3069 = vadd.f32 %v2717, %v3053
    %v3070 = vadd.f32 %v2718, %v3054
    %v3071 = vadd.f32 %v2719, %v3055
    %v3072 = vadd.f32 %v2720, %v3056
    %v3073 = vadd.f32 %v2721, %v3057
    %v3074 = vadd.f32 %v2722, %v3058
    %v3075 = vadd.f32 %v2723, %v3059
    %v3076 = vadd.f32 %v2724, %v3060
    %v3077 = vadd.f32 %v2725, %v3061
    %v3078 = vadd.f32 %v2726, %v3062
    %v3079 = vadd.f32 %v2727, %v3063
    %v3080 = vadd.f32 %v2728, %v3064
    %v3081 = vadd.f32 %v2729, %v3065
    %v3082 = vadd.f32 %v2730, %v3066
    %v3083 = vadd.f32 %v2731, %v3067
    %3084 = vxpose.xlu0.b32.start [1/16] %v3068, 128
    %3085 = vxpose.xlu0.b32.cont [2/16] %v3069, 128
    %3086 = vxpose.xlu0.b32.cont [3/16] %v3070, 128
    %3087 = vxpose.xlu0.b32.cont [4/16] %v3071, 128
    %3088 = vxpose.xlu0.b32.cont [5/16] %v3072, 128
    %3089 = vxpose.xlu0.b32.cont [6/16] %v3073, 128
    %3090 = vxpose.xlu0.b32.cont [7/16] %v3074, 128
    %3091 = vxpose.xlu0.b32.cont [8/16] %v3075, 128
    %3092 = vxpose.xlu0.b32.cont [9/16] %v3076, 128
    %3093 = vxpose.xlu0.b32.cont [10/16] %v3077, 128
    %3094 = vxpose.xlu0.b32.cont [11/16] %v3078, 128
    %3095 = vxpose.xlu0.b32.cont [12/16] %v3079, 128
    %3096 = vxpose.xlu0.b32.cont [13/16] %v3080, 128
    %3097 = vxpose.xlu0.b32.cont [14/16] %v3081, 128
    %3098 = vxpose.xlu0.b32.cont [15/16] %v3082, 128
    %3099 = vxpose.xlu0.b32.end [16/16] %v3083, 128
    %v3100 = vpop.trf.xlu0
    %v3101 = vpop.trf.xlu0
    %v3102 = vpop.trf.xlu0
    %v3103 = vpop.trf.xlu0
    %v3104 = vpop.trf.xlu0
    %v3105 = vpop.trf.xlu0
    %v3106 = vpop.trf.xlu0
    %v3107 = vpop.trf.xlu0
    %v3108 = vpop.trf.xlu0
    %v3109 = vpop.trf.xlu0
    %v3110 = vpop.trf.xlu0
    %v3111 = vpop.trf.xlu0
    %v3112 = vpop.trf.xlu0
    %v3113 = vpop.trf.xlu0
    %v3114 = vpop.trf.xlu0
    %v3115 = vpop.trf.xlu0
    %v3116 = vadd.f32 %v3068, %v3100
    %v3117 = vadd.f32 %v3069, %v3101
    %v3118 = vadd.f32 %v3070, %v3102
    %v3119 = vadd.f32 %v3071, %v3103
    %v3120 = vadd.f32 %v3072, %v3104
    %v3121 = vadd.f32 %v3073, %v3105
    %v3122 = vadd.f32 %v3074, %v3106
    %v3123 = vadd.f32 %v3075, %v3107
    %v3124 = vadd.f32 %v3076, %v3108
    %v3125 = vadd.f32 %v3077, %v3109
    %v3126 = vadd.f32 %v3078, %v3110
    %v3127 = vadd.f32 %v3079, %v3111
    %v3128 = vadd.f32 %v3080, %v3112
    %v3129 = vadd.f32 %v3081, %v3113
    %v3130 = vadd.f32 %v3082, %v3114
    %v3131 = vadd.f32 %v3083, %v3115
    %vm3132 = vcmp.eq.f32.partialorder %v3116, 1.0
    %vm3133 = vcmp.eq.f32.partialorder %v3117, 1.0
    %vm3134 = vcmp.eq.f32.partialorder %v3118, 1.0
    %vm3135 = vcmp.eq.f32.partialorder %v3119, 1.0
    %vm3136 = vcmp.eq.f32.partialorder %v3120, 1.0
    %vm3137 = vcmp.eq.f32.partialorder %v3121, 1.0
    %vm3138 = vcmp.eq.f32.partialorder %v3122, 1.0
    %vm3139 = vcmp.eq.f32.partialorder %v3123, 1.0
    %vm3140 = vcmp.eq.f32.partialorder %v3124, 1.0
    %vm3141 = vcmp.eq.f32.partialorder %v3125, 1.0
    %vm3142 = vcmp.eq.f32.partialorder %v3126, 1.0
    %vm3143 = vcmp.eq.f32.partialorder %v3127, 1.0
    %vm3144 = vcmp.eq.f32.partialorder %v3128, 1.0
    %vm3145 = vcmp.eq.f32.partialorder %v3129, 1.0
    %vm3146 = vcmp.eq.f32.partialorder %v3130, 1.0
    %vm3147 = vcmp.eq.f32.partialorder %v3131, 1.0
    %v3148 = vsel %vm3132, 1, 0
    %v3149 = vsel %vm3133, 1, 0
    %v3150 = vsel %vm3134, 1, 0
    %v3151 = vsel %vm3135, 1, 0
    %v3152 = vsel %vm3136, 1, 0
    %v3153 = vsel %vm3137, 1, 0
    %v3154 = vsel %vm3138, 1, 0
    %v3155 = vsel %vm3139, 1, 0
    %v3156 = vsel %vm3140, 1, 0
    %v3157 = vsel %vm3141, 1, 0
    %v3158 = vsel %vm3142, 1, 0
    %v3159 = vsel %vm3143, 1, 0
    %v3160 = vsel %vm3144, 1, 0
    %v3161 = vsel %vm3145, 1, 0
    %v3162 = vsel %vm3146, 1, 0
    %v3163 = vsel %vm3147, 1, 0
    %v3164 = vcvt.s32.f32 %v3148
    %v3165 = vcvt.s32.f32 %v3149
    %v3166 = vcvt.s32.f32 %v3150
    %v3167 = vcvt.s32.f32 %v3151
    %v3168 = vcvt.s32.f32 %v3152
    %v3169 = vcvt.s32.f32 %v3153
    %v3170 = vcvt.s32.f32 %v3154
    %v3171 = vcvt.s32.f32 %v3155
    %v3172 = vcvt.s32.f32 %v3156
    %v3173 = vcvt.s32.f32 %v3157
    %v3174 = vcvt.s32.f32 %v3158
    %v3175 = vcvt.s32.f32 %v3159
    %v3176 = vcvt.s32.f32 %v3160
    %v3177 = vcvt.s32.f32 %v3161
    %v3178 = vcvt.s32.f32 %v3162
    %v3179 = vcvt.s32.f32 %v3163
    %vm3180 = vmxor %vm400, 1
    %vm3181 = vmxor %vm401, 1
    %vm3182 = vmxor %vm402, 1
    %vm3183 = vmxor %vm403, 1
    %vm3184 = vmxor %vm404, 1
    %vm3185 = vmxor %vm405, 1
    %vm3186 = vmxor %vm406, 1
    %vm3187 = vmxor %vm407, 1
    %vm3188 = vmxor %vm408, 1
    %vm3189 = vmxor %vm409, 1
    %vm3190 = vmxor %vm410, 1
    %vm3191 = vmxor %vm411, 1
    %vm3192 = vmxor %vm412, 1
    %vm3193 = vmxor %vm413, 1
    %vm3194 = vmxor %vm414, 1
    %vm3195 = vmxor %vm415, 1
    %vm3196 = vmand %vm832, %vm3180
    %vm3197 = vmand %vm833, %vm3181
    %vm3198 = vmand %vm834, %vm3182
    %vm3199 = vmand %vm835, %vm3183
    %vm3200 = vmand %vm836, %vm3184
    %vm3201 = vmand %vm837, %vm3185
    %vm3202 = vmand %vm838, %vm3186
    %vm3203 = vmand %vm839, %vm3187
    %vm3204 = vmand %vm840, %vm3188
    %vm3205 = vmand %vm841, %vm3189
    %vm3206 = vmand %vm842, %vm3190
    %vm3207 = vmand %vm843, %vm3191
    %vm3208 = vmand %vm844, %vm3192
    %vm3209 = vmand %vm845, %vm3193
    %vm3210 = vmand %vm846, %vm3194
    %vm3211 = vmand %vm847, %vm3195
    %v3212 = vsel %vm3196, 1.0, 0.0
    %v3213 = vsel %vm3197, 1.0, 0.0
    %v3214 = vsel %vm3198, 1.0, 0.0
    %v3215 = vsel %vm3199, 1.0, 0.0
    %v3216 = vsel %vm3200, 1.0, 0.0
    %v3217 = vsel %vm3201, 1.0, 0.0
    %v3218 = vsel %vm3202, 1.0, 0.0
    %v3219 = vsel %vm3203, 1.0, 0.0
    %v3220 = vsel %vm3204, 1.0, 0.0
    %v3221 = vsel %vm3205, 1.0, 0.0
    %v3222 = vsel %vm3206, 1.0, 0.0
    %v3223 = vsel %vm3207, 1.0, 0.0
    %v3224 = vsel %vm3208, 1.0, 0.0
    %v3225 = vsel %vm3209, 1.0, 0.0
    %v3226 = vsel %vm3210, 1.0, 0.0
    %v3227 = vsel %vm3211, 1.0, 0.0
    %v3228 = vmul.f32 %v3164, %v3212
    %v3229 = vmul.f32 %v3165, %v3213
    %v3230 = vmul.f32 %v3166, %v3214
    %v3231 = vmul.f32 %v3167, %v3215
    %v3232 = vmul.f32 %v3168, %v3216
    %v3233 = vmul.f32 %v3169, %v3217
    %v3234 = vmul.f32 %v3170, %v3218
    %v3235 = vmul.f32 %v3171, %v3219
    %v3236 = vmul.f32 %v3172, %v3220
    %v3237 = vmul.f32 %v3173, %v3221
    %v3238 = vmul.f32 %v3174, %v3222
    %v3239 = vmul.f32 %v3175, %v3223
    %v3240 = vmul.f32 %v3176, %v3224
    %v3241 = vmul.f32 %v3177, %v3225
    %v3242 = vmul.f32 %v3178, %v3226
    %v3243 = vmul.f32 %v3179, %v3227
    %v3244 = vsub.f32 1.0, %v3164
    %v3245 = vsub.f32 1.0, %v3165
    %v3246 = vsub.f32 1.0, %v3166
    %v3247 = vsub.f32 1.0, %v3167
    %v3248 = vsub.f32 1.0, %v3168
    %v3249 = vsub.f32 1.0, %v3169
    %v3250 = vsub.f32 1.0, %v3170
    %v3251 = vsub.f32 1.0, %v3171
    %v3252 = vsub.f32 1.0, %v3172
    %v3253 = vsub.f32 1.0, %v3173
    %v3254 = vsub.f32 1.0, %v3174
    %v3255 = vsub.f32 1.0, %v3175
    %v3256 = vsub.f32 1.0, %v3176
    %v3257 = vsub.f32 1.0, %v3177
    %v3258 = vsub.f32 1.0, %v3178
    %v3259 = vsub.f32 1.0, %v3179
    %v3260 = vmul.f32 %v3244, %v3212
    %v3261 = vmul.f32 %v3245, %v3213
    %v3262 = vmul.f32 %v3246, %v3214
    %v3263 = vmul.f32 %v3247, %v3215
    %v3264 = vmul.f32 %v3248, %v3216
    %v3265 = vmul.f32 %v3249, %v3217
    %v3266 = vmul.f32 %v3250, %v3218
    %v3267 = vmul.f32 %v3251, %v3219
    %v3268 = vmul.f32 %v3252, %v3220
    %v3269 = vmul.f32 %v3253, %v3221
    %v3270 = vmul.f32 %v3254, %v3222
    %v3271 = vmul.f32 %v3255, %v3223
    %v3272 = vmul.f32 %v3256, %v3224
    %v3273 = vmul.f32 %v3257, %v3225
    %v3274 = vmul.f32 %v3258, %v3226
    %v3275 = vmul.f32 %v3259, %v3227
    %v3276 = vsub.f32 1.0, %v1495
    %v3277 = vsub.f32 1.0, %v1507
    %v3278 = vsub.f32 1.0, %v1519
    %v3279 = vsub.f32 1.0, %v1531
    %v3280 = vsub.f32 1.0, %v1543
    %v3281 = vsub.f32 1.0, %v1555
    %v3282 = vsub.f32 1.0, %v1567
    %v3283 = vsub.f32 1.0, %v1579
    %v3284 = vsub.f32 1.0, %v1591
    %v3285 = vsub.f32 1.0, %v1603
    %v3286 = vsub.f32 1.0, %v1615
    %v3287 = vsub.f32 1.0, %v1627
    %v3288 = vsub.f32 1.0, %v1639
    %v3289 = vsub.f32 1.0, %v1651
    %v3290 = vsub.f32 1.0, %v1663
    %v3291 = vsub.f32 1.0, %v1675
    %v3292 = vmax.f32 %v3276, 0.0
    %v3293 = vmax.f32 %v3277, 0.0
    %v3294 = vmax.f32 %v3278, 0.0
    %v3295 = vmax.f32 %v3279, 0.0
    %v3296 = vmax.f32 %v3280, 0.0
    %v3297 = vmax.f32 %v3281, 0.0
    %v3298 = vmax.f32 %v3282, 0.0
    %v3299 = vmax.f32 %v3283, 0.0
    %v3300 = vmax.f32 %v3284, 0.0
    %v3301 = vmax.f32 %v3285, 0.0
    %v3302 = vmax.f32 %v3286, 0.0
    %v3303 = vmax.f32 %v3287, 0.0
    %v3304 = vmax.f32 %v3288, 0.0
    %v3305 = vmax.f32 %v3289, 0.0
    %v3306 = vmax.f32 %v3290, 0.0
    %v3307 = vmax.f32 %v3291, 0.0
    %v3308 = vmul.f32 %v1468, %v3228
    %v3309 = vmul.f32 %v1469, %v3229
    %v3310 = vmul.f32 %v1470, %v3230
    %v3311 = vmul.f32 %v1471, %v3231
    %v3312 = vmul.f32 %v1472, %v3232
    %v3313 = vmul.f32 %v1473, %v3233
    %v3314 = vmul.f32 %v1474, %v3234
    %v3315 = vmul.f32 %v1475, %v3235
    %v3316 = vmul.f32 %v1476, %v3236
    %v3317 = vmul.f32 %v1477, %v3237
    %v3318 = vmul.f32 %v1478, %v3238
    %v3319 = vmul.f32 %v1479, %v3239
    %v3320 = vmul.f32 %v1480, %v3240
    %v3321 = vmul.f32 %v1481, %v3241
    %v3322 = vmul.f32 %v1482, %v3242
    %v3323 = vmul.f32 %v1483, %v3243
    %v3324 = vmul.f32 %v3292, %v3292
    %v3325 = vmul.f32 %v3293, %v3293
    %v3326 = vmul.f32 %v3294, %v3294
    %v3327 = vmul.f32 %v3295, %v3295
    %v3328 = vmul.f32 %v3296, %v3296
    %v3329 = vmul.f32 %v3297, %v3297
    %v3330 = vmul.f32 %v3298, %v3298
    %v3331 = vmul.f32 %v3299, %v3299
    %v3332 = vmul.f32 %v3300, %v3300
    %v3333 = vmul.f32 %v3301, %v3301
    %v3334 = vmul.f32 %v3302, %v3302
    %v3335 = vmul.f32 %v3303, %v3303
    %v3336 = vmul.f32 %v3304, %v3304
    %v3337 = vmul.f32 %v3305, %v3305
    %v3338 = vmul.f32 %v3306, %v3306
    %v3339 = vmul.f32 %v3307, %v3307
    %v3340 = vmul.f32 %v3324, %v3260
    %v3341 = vmul.f32 %v3325, %v3261
    %v3342 = vmul.f32 %v3326, %v3262
    %v3343 = vmul.f32 %v3327, %v3263
    %v3344 = vmul.f32 %v3328, %v3264
    %v3345 = vmul.f32 %v3329, %v3265
    %v3346 = vmul.f32 %v3330, %v3266
    %v3347 = vmul.f32 %v3331, %v3267
    %v3348 = vmul.f32 %v3332, %v3268
    %v3349 = vmul.f32 %v3333, %v3269
    %v3350 = vmul.f32 %v3334, %v3270
    %v3351 = vmul.f32 %v3335, %v3271
    %v3352 = vmul.f32 %v3336, %v3272
    %v3353 = vmul.f32 %v3337, %v3273
    %v3354 = vmul.f32 %v3338, %v3274
    %v3355 = vmul.f32 %v3339, %v3275
    %v3356 = vadd.f32 %v3308, %v3340
    %v3357 = vadd.f32 %v3309, %v3341
    %v3358 = vadd.f32 %v3310, %v3342
    %v3359 = vadd.f32 %v3311, %v3343
    %v3360 = vadd.f32 %v3312, %v3344
    %v3361 = vadd.f32 %v3313, %v3345
    %v3362 = vadd.f32 %v3314, %v3346
    %v3363 = vadd.f32 %v3315, %v3347
    %v3364 = vadd.f32 %v3316, %v3348
    %v3365 = vadd.f32 %v3317, %v3349
    %v3366 = vadd.f32 %v3318, %v3350
    %v3367 = vadd.f32 %v3319, %v3351
    %v3368 = vadd.f32 %v3320, %v3352
    %v3369 = vadd.f32 %v3321, %v3353
    %v3370 = vadd.f32 %v3322, %v3354
    %v3371 = vadd.f32 %v3323, %v3355
    %3372 = vadd.xlane.f32.xlu0 %v3356
    %v3373 = vpop.xlane.xlu0 %3372
    %3374 = vadd.xlane.f32.xlu0 %v3357
    %v3375 = vpop.xlane.xlu0 %3374
    %3376 = vadd.xlane.f32.xlu0 %v3358
    %v3377 = vpop.xlane.xlu0 %3376
    %3378 = vadd.xlane.f32.xlu0 %v3359
    %v3379 = vpop.xlane.xlu0 %3378
    %3380 = vadd.xlane.f32.xlu0 %v3360
    %v3381 = vpop.xlane.xlu0 %3380
    %3382 = vadd.xlane.f32.xlu0 %v3361
    %v3383 = vpop.xlane.xlu0 %3382
    %3384 = vadd.xlane.f32.xlu0 %v3362
    %v3385 = vpop.xlane.xlu0 %3384
    %3386 = vadd.xlane.f32.xlu0 %v3363
    %v3387 = vpop.xlane.xlu0 %3386
    %3388 = vadd.xlane.f32.xlu0 %v3364
    %v3389 = vpop.xlane.xlu0 %3388
    %3390 = vadd.xlane.f32.xlu0 %v3365
    %v3391 = vpop.xlane.xlu0 %3390
    %3392 = vadd.xlane.f32.xlu0 %v3366
    %v3393 = vpop.xlane.xlu0 %3392
    %3394 = vadd.xlane.f32.xlu0 %v3367
    %v3395 = vpop.xlane.xlu0 %3394
    %3396 = vadd.xlane.f32.xlu0 %v3368
    %v3397 = vpop.xlane.xlu0 %3396
    %3398 = vadd.xlane.f32.xlu0 %v3369
    %v3399 = vpop.xlane.xlu0 %3398
    %3400 = vadd.xlane.f32.xlu0 %v3370
    %v3401 = vpop.xlane.xlu0 %3400
    %3402 = vadd.xlane.f32.xlu0 %v3371
    %v3403 = vpop.xlane.xlu0 %3402
    %vm3404 = vcmp.eq.s32.totalorder %v94, %v752
    %vm3405 = vcmp.eq.s32.totalorder %v94, %v753
    %vm3406 = vcmp.eq.s32.totalorder %v94, %v754
    %vm3407 = vcmp.eq.s32.totalorder %v94, %v755
    %vm3408 = vcmp.eq.s32.totalorder %v94, %v756
    %vm3409 = vcmp.eq.s32.totalorder %v94, %v757
    %vm3410 = vcmp.eq.s32.totalorder %v94, %v758
    %vm3411 = vcmp.eq.s32.totalorder %v94, %v759
    %vm3412 = vcmp.eq.s32.totalorder %v94, %v760
    %vm3413 = vcmp.eq.s32.totalorder %v94, %v761
    %vm3414 = vcmp.eq.s32.totalorder %v94, %v762
    %vm3415 = vcmp.eq.s32.totalorder %v94, %v763
    %vm3416 = vcmp.eq.s32.totalorder %v94, %v764
    %vm3417 = vcmp.eq.s32.totalorder %v94, %v765
    %vm3418 = vcmp.eq.s32.totalorder %v94, %v766
    %vm3419 = vcmp.eq.s32.totalorder %v94, %v767
    %v3420 = vsel %vm3404, 1, 0
    %v3421 = vsel %vm3405, 1, 0
    %v3422 = vsel %vm3406, 1, 0
    %v3423 = vsel %vm3407, 1, 0
    %v3424 = vsel %vm3408, 1, 0
    %v3425 = vsel %vm3409, 1, 0
    %v3426 = vsel %vm3410, 1, 0
    %v3427 = vsel %vm3411, 1, 0
    %v3428 = vsel %vm3412, 1, 0
    %v3429 = vsel %vm3413, 1, 0
    %v3430 = vsel %vm3414, 1, 0
    %v3431 = vsel %vm3415, 1, 0
    %v3432 = vsel %vm3416, 1, 0
    %v3433 = vsel %vm3417, 1, 0
    %v3434 = vsel %vm3418, 1, 0
    %v3435 = vsel %vm3419, 1, 0
    %v3436 = vcvt.s32.f32 %v3420
    %v3437 = vcvt.s32.f32 %v3421
    %v3438 = vcvt.s32.f32 %v3422
    %v3439 = vcvt.s32.f32 %v3423
    %v3440 = vcvt.s32.f32 %v3424
    %v3441 = vcvt.s32.f32 %v3425
    %v3442 = vcvt.s32.f32 %v3426
    %v3443 = vcvt.s32.f32 %v3427
    %v3444 = vcvt.s32.f32 %v3428
    %v3445 = vcvt.s32.f32 %v3429
    %v3446 = vcvt.s32.f32 %v3430
    %v3447 = vcvt.s32.f32 %v3431
    %v3448 = vcvt.s32.f32 %v3432
    %v3449 = vcvt.s32.f32 %v3433
    %v3450 = vcvt.s32.f32 %v3434
    %v3451 = vcvt.s32.f32 %v3435
    %v3452 = vmul.f32 %v3373, %v3436
    %v3453 = vmul.f32 %v3375, %v3437
    %v3454 = vmul.f32 %v3377, %v3438
    %v3455 = vmul.f32 %v3379, %v3439
    %v3456 = vmul.f32 %v3381, %v3440
    %v3457 = vmul.f32 %v3383, %v3441
    %v3458 = vmul.f32 %v3385, %v3442
    %v3459 = vmul.f32 %v3387, %v3443
    %v3460 = vmul.f32 %v3389, %v3444
    %v3461 = vmul.f32 %v3391, %v3445
    %v3462 = vmul.f32 %v3393, %v3446
    %v3463 = vmul.f32 %v3395, %v3447
    %v3464 = vmul.f32 %v3397, %v3448
    %v3465 = vmul.f32 %v3399, %v3449
    %v3466 = vmul.f32 %v3401, %v3450
    %v3467 = vmul.f32 %v3403, %v3451
    %v3468 = vadd.f32 %v3452, %v3453
    %v3469 = vadd.f32 %v3468, %v3454
    %v3470 = vadd.f32 %v3469, %v3455
    %v3471 = vadd.f32 %v3470, %v3456
    %v3472 = vadd.f32 %v3471, %v3457
    %v3473 = vadd.f32 %v3472, %v3458
    %v3474 = vadd.f32 %v3473, %v3459
    %v3475 = vadd.f32 %v3474, %v3460
    %v3476 = vadd.f32 %v3475, %v3461
    %v3477 = vadd.f32 %v3476, %v3462
    %v3478 = vadd.f32 %v3477, %v3463
    %v3479 = vadd.f32 %v3478, %v3464
    %v3480 = vadd.f32 %v3479, %v3465
    %v3481 = vadd.f32 %v3480, %v3466
    %v3482 = vadd.f32 %v3481, %v3467
    %v3483 = vrot.slane %v3482, 4
    %v3484 = vadd.f32 %v3482, %v3483
    %v3485 = vrot.slane %v3484, 2
    %v3486 = vadd.f32 %v3484, %v3485
    %v3487 = vrot.slane %v3486, 1
    %v3488 = vadd.f32 %v3486, %v3487
    %v3489 = vmul.f32 %v3488, 0.004166667
    %3490 = vst [vmem:[#allocation2] sm:$0xff] %v3489
    // Predicated region
    $region10: #{tpu_custom_call.1} parent=1 // pred_check
      _
    $region11: #{tpu_custom_call.1} parent=1 // pred_check_branch
      %3492 = sbr.rel (0) target = $region13
    $region12: #{tpu_custom_call.1} parent=1 // pred_region
      %3494 = vsyncadd [#allocation3], 0
      %s3496 = sshll.u32 [#allocation2], 4
      %s3497 = int_to_ptr.vmem [resolvable:$true] %s3496
      %s3498 = sshll.u32 %s2, 4
      %s3499 = int_to_ptr.hbm [resolvable:$true] %s3498
      %3501 = dma.vmem_to_hbm [thread:$0]  %s3497, 128, %s3499, [#allocation3]
    $region13: #{tpu_custom_call.1} parent=1 // pred_fallthru
      _
    // Predicated region
    $region14: #{tpu_custom_call.1} parent=1 // pred_check
      _
    $region15: #{tpu_custom_call.1} parent=1 // pred_check_branch
      %3503 = sbr.rel (0) target = $region17
    $region16: #{tpu_custom_call.1} parent=1 // pred_region
      %3505 = dma.done [#allocation3], 128
    $region17: #{tpu_custom_call.1} parent=1 // pred_fallthru
      _
    %3506 = vsyncpa [#allocation3], 1

</llo_original>
